<compile_context>
chip_gen: v5e
topology: v5e:2x2
jax: 0.10.0
libtpu: 0.0.40
codegen_flags: <defaults>
</compile_context>

<pallas_src>
import functools
import math

import jax
import jax.numpy as jnp
from jax.experimental import pallas as pl
from jax.experimental.pallas import tpu as pltpu


def _layer_norm(x, gamma, beta, eps=1e-5):
    mu = jnp.mean(x, axis=-1, keepdims=True)
    var = jnp.mean((x - mu) ** 2, axis=-1, keepdims=True)
    return (x - mu) * jax.lax.rsqrt(var + eps) * gamma + beta


# ----------------------------- fused Pallas kernel --------------------------

def _fused_stack_kernel(xin_ref, mask_ref, hmask_ref, we_ref, be_ref,
                        wqkv_ref, bqkv_ref, wo_ref, bo_ref,
                        ln1g_ref, ln1b_ref,
                        w1_ref, b1_ref, w2_ref, b2_ref,
                        ln2g_ref, ln2b_ref,
                        o_ref, *, n_layers, n_heads, batch, seq, hid):
    """One grid step = one full encoder stack (expand + L layers + mask)."""
    bs = batch * seq
    inv_scale = 1.0 / math.sqrt(hid // n_heads)

    # expand: (B*S, D_in) @ (D_in, H) + b
    x2 = jnp.dot(xin_ref[...], we_ref[...],
                 preferred_element_type=jnp.float32) + be_ref[...]

    hmask = hmask_ref[...]                      # (n_heads, 1, 1, H) lane masks

    # L is small and static -> unrolled loop, weight reads are static ref views.
    # (For large L, switch to lax.fori_loop with dynamic first-axis ref reads.)
    for l in range(n_layers):
        # ---- multi-head self attention (fused QKV, mask-selected heads) ----
        qkv = jnp.dot(x2, wqkv_ref[l],
                      preferred_element_type=jnp.float32) + bqkv_ref[l]
        q3 = qkv[:, 0 * hid:1 * hid].reshape(batch, seq, hid)
        k3 = qkv[:, 1 * hid:2 * hid].reshape(batch, seq, hid)
        v3 = qkv[:, 2 * hid:3 * hid].reshape(batch, seq, hid)

        acc = jnp.zeros((batch, seq, hid), jnp.float32)
        for h in range(n_heads):
            mh = hmask[h]                       # (1, 1, H): 1.0 on head-h lanes
            # masked lanes contribute exact zeros to the contraction, so this
            # equals the per-head (S, hd) @ (hd, S) score without lane slicing.
            e = jnp.einsum('bqc,bkc->bqk', q3 * mh, k3,
                           preferred_element_type=jnp.float32) * inv_scale
            e = e - jnp.max(e, axis=-1, keepdims=True)
            p = jnp.exp(e)
            p = p * pl.reciprocal(jnp.sum(p, axis=-1, keepdims=True), approx=True)
            acc = acc + jnp.einsum('bqk,bkc->bqc', p, v3 * mh,
                                   preferred_element_type=jnp.float32)

        a2 = jnp.dot(acc.reshape(bs, hid), wo_ref[l],
                     preferred_element_type=jnp.float32) + bo_ref[l]
        x2 = _layer_norm(x2 + a2, ln1g_ref[l], ln1b_ref[l])

        # ---- position-wise feedforward (ReLU) ----
        f = jnp.dot(x2, w1_ref[l], preferred_element_type=jnp.float32) + b1_ref[l]
        f = jnp.maximum(f, 0.0)
        f = jnp.dot(f, w2_ref[l], preferred_element_type=jnp.float32) + b2_ref[l]
        x2 = _layer_norm(x2 + f, ln2g_ref[l], ln2b_ref[l])

    # stack 0: multiply by src_mask; stack 1: mask is all-ones (no-op).
    o_ref[...] = x2 * mask_ref[...]


# ----------------------------- parameter prep (once) ------------------------

def prepare_fused_params(params, n_heads):
    """Pre-transpose / pre-concatenate weights out of the forward hot path."""
    h = params['expand_w'].shape[0]
    pf = params['s_layers'][0]['w1'].shape[0]

    def stack2(get):
        # -> (2, L, ...): axis 0 = [src stack, walk stack]
        return jnp.stack([jnp.stack([get(lp) for lp in params[name]])
                          for name in ('s_layers', 'layers')])

    hd = h // n_heads
    hmask = (jnp.arange(h)[None, :] // hd ==
             jnp.arange(n_heads)[:, None]).astype(jnp.float32)
    hmask = hmask.reshape(n_heads, 1, 1, h)

    return dict(
        emb=params['emb'], att_w=params['att_w'],
        expand_wt=jnp.transpose(params['expand_w']),          # (D_in, H)
        expand_b=params['expand_b'].reshape(1, h),
        hmask=hmask,                                          # (n_heads,1,1,H)
        wqkv=stack2(lambda lp: jnp.concatenate(
            [jnp.transpose(lp['wq']), jnp.transpose(lp['wk']),
             jnp.transpose(lp['wv'])], axis=1)),              # (2, L, H, 3H)
        bqkv=stack2(lambda lp: jnp.concatenate(
            [lp['bq'], lp['bk'], lp['bv']]).reshape(1, 3 * h)),
        wo=stack2(lambda lp: jnp.transpose(lp['wo'])),        # (2, L, H, H)
        bo=stack2(lambda lp: lp['bo'].reshape(1, h)),
        ln1g=stack2(lambda lp: lp['ln1_g'].reshape(1, h)),
        ln1b=stack2(lambda lp: lp['ln1_b'].reshape(1, h)),
        w1=stack2(lambda lp: jnp.transpose(lp['w1'])),        # (2, L, H, PF)
        b1=stack2(lambda lp: lp['b1'].reshape(1, pf)),
        w2=stack2(lambda lp: jnp.transpose(lp['w2'])),        # (2, L, PF, H)
        b2=stack2(lambda lp: lp['b2'].reshape(1, h)),
        ln2g=stack2(lambda lp: lp['ln2_g'].reshape(1, h)),
        ln2b=stack2(lambda lp: lp['ln2_b'].reshape(1, h)),
    )


# ----------------------------- model forward --------------------------------

def sees_encoder_forward(fp, src, src_mask, walk, walk_src, self_node):
    b, s, din = src.shape
    h = fp['expand_wt'].shape[1]
    n_heads = fp['hmask'].shape[0]
    n_layers = fp['wqkv'].shape[1]
    bs = b * s
    w = walk.shape[1]

    # Graph-attention gate over the walk (tiny data-dependent embedding gather
    # + softmax, kept as XLA glue).
    scale = math.sqrt(h)
    walk_emb = fp['emb'][walk] * scale                        # (B, W, H)
    self_emb = fp['emb'][self_node] * scale                   # (B, H)
    self_emb = jnp.broadcast_to(self_emb[:, None, :], (b, w, h))
    cat = jnp.concatenate([walk_emb, self_emb], axis=2)       # (B, W, 2H)
    walk_att = jax.nn.softmax(jnp.einsum('bwh,h->bw', cat, fp['att_w'][0]),
                              axis=-1)
    # expand() is affine and walk_att sums to 1, so aggregating the raw walk
    # before expand == aggregating the expanded walk (original ordering).
    walk_in = jnp.einsum('bwsd,bw->bsd', walk_src, walk_att)  # (B, S, D_in)

    xin = jnp.stack([src.reshape(bs, din), walk_in.reshape(bs, din)])  # (2,BS,Din)
    mask = jnp.stack([src_mask.reshape(bs, 1),
                      jnp.ones((bs, 1), jnp.float32)])                  # (2,BS,1)

    kern = functools.partial(_fused_stack_kernel, n_layers=n_layers,
                             n_heads=n_heads, batch=b, seq=s, hid=h)

    def shared(a):
        sh = tuple(a.shape)
        zero = (0,) * len(sh)
        return pl.BlockSpec(sh, lambda g, _z=zero: _z)

    def per_stack(a):
        rest = tuple(a.shape[1:])
        tail = (0,) * len(rest)
        return pl.BlockSpec((None,) + rest, lambda g, _t=tail: (g,) + _t)

    args = (xin, mask, fp['hmask'], fp['expand_wt'], fp['expand_b'],
            fp['wqkv'], fp['bqkv'], fp['wo'], fp['bo'],
            fp['ln1g'], fp['ln1b'], fp['w1'], fp['b1'], fp['w2'], fp['b2'],
            fp['ln2g'], fp['ln2b'])
    in_specs = [per_stack(xin), per_stack(mask), shared(fp['hmask']),
                shared(fp['expand_wt']), shared(fp['expand_b'])]
    in_specs += [per_stack(a) for a in args[5:]]

    out = pl.pallas_call(
        kern,
        out_shape=jax.ShapeDtypeStruct((2, bs, h), jnp.float32),
        grid=(2,),
        in_specs=in_specs,
        out_specs=pl.BlockSpec((None, bs, h), lambda g: (g, 0, 0)),
        compiler_params=pltpu.CompilerParams(
            dimension_semantics=("parallel",)),
    )(*args)

    # (2, B*S, H) -> (B, S, 2H) == concat([masked src_out, walk_out], axis=2)
    out = out.reshape(2, b, s, h).transpose(1, 2, 0, 3).reshape(b, s, 2 * h)
    return out, src_mask


# ------------------------- pure-JAX reference --------------------------------

def _ref_linear(x, w, b):
    return jnp.einsum('...i,oi->...o', x, w) + b


def _ref_encoder_layer(x, lp, n_heads):
    b, s, h = x.shape
    hd = h // n_heads
    q = _ref_linear(x, lp['wq'], lp['bq']).reshape(b, s, n_heads, hd).transpose(0, 2, 1, 3)
    k = _ref_linear(x, lp['wk'], lp['bk']).reshape(b, s, n_heads, hd).transpose(0, 2, 1, 3)
    v = _ref_linear(x, lp['wv'], lp['bv']).reshape(b, s, n_heads, hd).transpose(0, 2, 1, 3)
    e = jnp.einsum('bhqd,bhkd->bhqk', q, k) / math.sqrt(hd)
    p = jax.nn.softmax(e, axis=-1)
    a = jnp.einsum('bhqk,bhkd->bhqd', p, v).transpose(0, 2, 1, 3).reshape(b, s, h)
    a = _ref_linear(a, lp['wo'], lp['bo'])
    x1 = _layer_norm(x + a, lp['ln1_g'], lp['ln1_b'])
    f = jax.nn.relu(_ref_linear(x1, lp['w1'], lp['b1']))
    f = _ref_linear(f, lp['w2'], lp['b2'])
    return _layer_norm(x1 + f, lp['ln2_g'], lp['ln2_b'])


def reference_forward(params, src, src_mask, walk, walk_src, self_node,
                      n_heads, walk_len):
    b, s, din = src.shape
    h = params['expand_w'].shape[0]
    w = walk_len
    src_h = _ref_linear(src, params['expand_w'], params['expand_b'])
    walk_src_h = _ref_linear(walk_src, params['expand_w'], params['expand_b'])
    x = src_h
    for lp in params['s_layers']:
        x = _ref_encoder_layer(x, lp, n_heads)
    src_out = x * src_mask[:, :, None]
    scale = math.sqrt(h)
    walk_emb = params['emb'][walk] * scale
    self_emb = jnp.broadcast_to((params['emb'][self_node] * scale)[:, None, :], (b, w, h))
    cat = jnp.concatenate([walk_emb, self_emb], axis=2)
    walk_att = jax.nn.softmax(jnp.einsum('bwh,h->bw', cat, params['att_w'][0]), axis=-1)
    y = jnp.einsum('bwsh,bw->bsh', walk_src_h, walk_att)
    for lp in params['layers']:
        y = _ref_encoder_layer(y, lp, n_heads)
    return jnp.concatenate([src_out, y], axis=2), src_mask


# --------------------------- parameter init ----------------------------------

def init_params(key, input_dim, hid_dim, n_layers, pf_dim, walk_len, n_nodes):
    state = [key]

    def nk():
        state[0], sub = jax.random.split(state[0])
        return sub

    def lin(out_d, in_d, bias=True):
        w = jax.random.normal(nk(), (out_d, in_d), jnp.float32) / math.sqrt(in_d)
        b = jax.random.normal(nk(), (out_d,), jnp.float32) * 0.01 if bias else None
        return w, b

    def enc():
        wq, bq = lin(hid_dim, hid_dim)
        wk, bk = lin(hid_dim, hid_dim)
        wv, bv = lin(hid_dim, hid_dim)
        wo, bo = lin(hid_dim, hid_dim)
        w1, b1 = lin(pf_dim, hid_dim)
        w2, b2 = lin(hid_dim, pf_dim)
        return dict(wq=wq, bq=bq, wk=wk, bk=bk, wv=wv, bv=bv, wo=wo, bo=bo,
                    ln1_g=jnp.ones((hid_dim,), jnp.float32),
                    ln1_b=jnp.zeros((hid_dim,), jnp.float32),
                    w1=w1, b1=b1, w2=w2, b2=b2,
                    ln2_g=jnp.ones((hid_dim,), jnp.float32),
                    ln2_b=jnp.zeros((hid_dim,), jnp.float32))

    expand_w, expand_b = lin(hid_dim, input_dim)
    emb = jax.random.normal(nk(), (n_nodes + 1, hid_dim), jnp.float32)
    att_w, _ = lin(1, 2 * hid_dim, bias=False)
    pool = jax.random.uniform(nk(), (walk_len,), jnp.float32)  # unused in forward (matches PyTorch)
    return dict(expand_w=expand_w, expand_b=expand_b, emb=emb, att_w=att_w,
                pool=pool,
                s_layers=[enc() for _ in range(n_layers)],
                layers=[enc() for _ in range(n_layers)])


# --------------------------------- main ---------------------------------------

if __name__ == "__main__":
    B, D_IN, HID, N_LAYERS, N_HEADS = 2, 4, 32, 2, 4
    PF_DIM, SEQ_LEN, WALK_LEN, N_NODES = 64, 8, 4, 10

    root = jax.random.PRNGKey(0)
    kp, kd = jax.random.split(root)
    params = init_params(kp, D_IN, HID, N_LAYERS, PF_DIM, WALK_LEN, N_NODES)
    fused = prepare_fused_params(params, N_HEADS)   # one-time weight prep

    k1, k2, k3, k4, k5 = jax.random.split(kd, 5)
    src = jax.random.normal(k1, (B, SEQ_LEN, D_IN), jnp.float32)
    src_mask = (jax.random.uniform(k2, (B, SEQ_LEN)) > 0.2).astype(jnp.float32)
    walk = jax.random.randint(k3, (B, WALK_LEN), 0, N_NODES + 1)
    walk_src = jax.random.normal(k4, (B, WALK_LEN, SEQ_LEN, D_IN), jnp.float32)
    self_node = jax.random.randint(k5, (B,), 0, N_NODES + 1)

    forward = jax.jit(sees_encoder_forward)
    out, mask_out = forward(fused, src, src_mask, walk, walk_src, self_node)
    out = jax.block_until_ready(out)

    ref, _ = reference_forward(params, src, src_mask, walk, walk_src,
                               self_node, N_HEADS, WALK_LEN)

    assert out.shape == (B, SEQ_LEN, 2 * HID)
    assert mask_out.shape == (B, SEQ_LEN)
    assert bool(jnp.all(jnp.isfinite(out)))
    max_err = float(jnp.max(jnp.abs(out - ref)))
    assert max_err < 5e-2, f"mismatch vs reference, max abs err {max_err}"
    print("KERNEL_OK")
</pallas_src>

<mosaic_0001>
module attributes {stable_mosaic.version = 11 : i64} {
  func.func @_fused_stack_kernel(%arg0: i32, %arg1: memref<1x16x4xf32, #tpu.memory_space<vmem>>, %arg2: memref<1x16x1xf32, #tpu.memory_space<vmem>>, %arg3: memref<4x1x1x32xf32, #tpu.memory_space<vmem>>, %arg4: memref<4x32xf32, #tpu.memory_space<vmem>>, %arg5: memref<1x32xf32, #tpu.memory_space<vmem>>, %arg6: memref<1x2x32x96xf32, #tpu.memory_space<vmem>>, %arg7: memref<1x2x1x96xf32, #tpu.memory_space<vmem>>, %arg8: memref<1x2x32x32xf32, #tpu.memory_space<vmem>>, %arg9: memref<1x2x1x32xf32, #tpu.memory_space<vmem>>, %arg10: memref<1x2x1x32xf32, #tpu.memory_space<vmem>>, %arg11: memref<1x2x1x32xf32, #tpu.memory_space<vmem>>, %arg12: memref<1x2x32x64xf32, #tpu.memory_space<vmem>>, %arg13: memref<1x2x1x64xf32, #tpu.memory_space<vmem>>, %arg14: memref<1x2x64x32xf32, #tpu.memory_space<vmem>>, %arg15: memref<1x2x1x32xf32, #tpu.memory_space<vmem>>, %arg16: memref<1x2x1x32xf32, #tpu.memory_space<vmem>>, %arg17: memref<1x2x1x32xf32, #tpu.memory_space<vmem>>, %arg18: memref<1x16x32xf32, #tpu.memory_space<vmem>>) attributes {dimension_semantics = [#tpu.dimension_semantics<parallel>], iteration_bounds = array<i64: 2>, scalar_prefetch = 0 : i64, scratch_operands = 0 : i64, tpu.core_type = #tpu.core_type<tc>, window_params = [{transform_indices = @transform_0, window_bounds = array<i64: 1, 16, 4>}, {transform_indices = @transform_1, window_bounds = array<i64: 1, 16, 1>}, {pipeline_mode = #tpu.pipeline_mode<synchronous>, transform_indices = @transform_2, window_bounds = array<i64: 4, 1, 1, 32>}, {pipeline_mode = #tpu.pipeline_mode<synchronous>, transform_indices = @transform_3, window_bounds = array<i64: 4, 32>}, {pipeline_mode = #tpu.pipeline_mode<synchronous>, transform_indices = @transform_4, window_bounds = array<i64: 1, 32>}, {transform_indices = @transform_5, window_bounds = array<i64: 1, 2, 32, 96>}, {transform_indices = @transform_6, window_bounds = array<i64: 1, 2, 1, 96>}, {transform_indices = @transform_7, window_bounds = array<i64: 1, 2, 32, 32>}, {transform_indices = @transform_8, window_bounds = array<i64: 1, 2, 1, 32>}, {transform_indices = @transform_9, window_bounds = array<i64: 1, 2, 1, 32>}, {transform_indices = @transform_10, window_bounds = array<i64: 1, 2, 1, 32>}, {transform_indices = @transform_11, window_bounds = array<i64: 1, 2, 32, 64>}, {transform_indices = @transform_12, window_bounds = array<i64: 1, 2, 1, 64>}, {transform_indices = @transform_13, window_bounds = array<i64: 1, 2, 64, 32>}, {transform_indices = @transform_14, window_bounds = array<i64: 1, 2, 1, 32>}, {transform_indices = @transform_15, window_bounds = array<i64: 1, 2, 1, 32>}, {transform_indices = @transform_16, window_bounds = array<i64: 1, 2, 1, 32>}, {transform_indices = @transform_17, window_bounds = array<i64: 1, 16, 32>}]} {
    %c0 = arith.constant 0 : index
    %c0_0 = arith.constant 0 : index
    %c0_1 = arith.constant 0 : index
    %0 = vector.load %arg1[%c0, %c0_0, %c0_1] : memref<1x16x4xf32, #tpu.memory_space<vmem>>, vector<1x16x4xf32>
    %1 = vector.shape_cast %0 : vector<1x16x4xf32> to vector<16x4xf32>
    %c0_2 = arith.constant 0 : index
    %c0_3 = arith.constant 0 : index
    %2 = vector.load %arg4[%c0_2, %c0_3] : memref<4x32xf32, #tpu.memory_space<vmem>>, vector<4x32xf32>
    %cst = arith.constant dense<0.000000e+00> : vector<16x32xf32>
    %3 = tpu.matmul %1, %2, %cst {dimension_numbers = #tpu.dot_dimension_numbers<[1], [0], [0], [1], [0, 0, 1, 1], [], []>} : vector<16x4xf32>, vector<4x32xf32>, vector<16x32xf32> -> vector<16x32xf32>
    %c0_4 = arith.constant 0 : index
    %c0_5 = arith.constant 0 : index
    %4 = vector.load %arg5[%c0_4, %c0_5] : memref<1x32xf32, #tpu.memory_space<vmem>>, vector<1x32xf32>
    %5 = vector.broadcast %4 : vector<1x32xf32> to vector<16x32xf32>
    %6 = arith.addf %3, %5 : vector<16x32xf32>
    %c0_6 = arith.constant 0 : index
    %c0_7 = arith.constant 0 : index
    %c0_8 = arith.constant 0 : index
    %c0_9 = arith.constant 0 : index
    %7 = vector.load %arg3[%c0_6, %c0_7, %c0_8, %c0_9] : memref<4x1x1x32xf32, #tpu.memory_space<vmem>>, vector<4x1x1x32xf32>
    %c0_10 = arith.constant 0 : index
    %c0_11 = arith.constant 0 : index
    %c0_12 = arith.constant 0 : index
    %c0_13 = arith.constant 0 : index
    %8 = vector.load %arg6[%c0_10, %c0_11, %c0_12, %c0_13] : memref<1x2x32x96xf32, #tpu.memory_space<vmem>>, vector<1x1x32x96xf32>
    %9 = vector.shape_cast %8 : vector<1x1x32x96xf32> to vector<32x96xf32>
    %cst_14 = arith.constant dense<0.000000e+00> : vector<16x96xf32>
    %10 = tpu.matmul %6, %9, %cst_14 {dimension_numbers = #tpu.dot_dimension_numbers<[1], [0], [0], [1], [0, 0, 1, 1], [], []>} : vector<16x32xf32>, vector<32x96xf32>, vector<16x96xf32> -> vector<16x96xf32>
    %c0_15 = arith.constant 0 : index
    %c0_16 = arith.constant 0 : index
    %c0_17 = arith.constant 0 : index
    %c0_18 = arith.constant 0 : index
    %11 = vector.load %arg7[%c0_15, %c0_16, %c0_17, %c0_18] : memref<1x2x1x96xf32, #tpu.memory_space<vmem>>, vector<1x1x1x96xf32>
    %12 = vector.shape_cast %11 : vector<1x1x1x96xf32> to vector<1x96xf32>
    %13 = vector.broadcast %12 : vector<1x96xf32> to vector<16x96xf32>
    %14 = arith.addf %10, %13 : vector<16x96xf32>
    %15 = vector.extract_strided_slice %14 {offsets = [0, 0], sizes = [16, 32], strides = [1, 1]} : vector<16x96xf32> to vector<16x32xf32>
    %16 = vector.shape_cast %15 : vector<16x32xf32> to vector<2x8x32xf32>
    %17 = vector.extract_strided_slice %14 {offsets = [0, 32], sizes = [16, 32], strides = [1, 1]} : vector<16x96xf32> to vector<16x32xf32>
    %18 = vector.shape_cast %17 : vector<16x32xf32> to vector<2x8x32xf32>
    %19 = vector.extract_strided_slice %14 {offsets = [0, 64], sizes = [16, 32], strides = [1, 1]} : vector<16x96xf32> to vector<16x32xf32>
    %20 = vector.shape_cast %19 : vector<16x32xf32> to vector<2x8x32xf32>
    %cst_19 = arith.constant 0.000000e+00 : f32
    %21 = vector.broadcast %cst_19 : f32 to vector<2x8x32xf32>
    %22 = vector.extract_strided_slice %7 {offsets = [0, 0, 0, 0], sizes = [1, 1, 1, 32], strides = [1, 1, 1, 1]} : vector<4x1x1x32xf32> to vector<1x1x1x32xf32>
    %23 = vector.shape_cast %22 : vector<1x1x1x32xf32> to vector<1x1x32xf32>
    %24 = vector.broadcast %23 : vector<1x1x32xf32> to vector<2x8x32xf32>
    %25 = arith.mulf %16, %24 : vector<2x8x32xf32>
    "tpu.trace_start"() <{level = 10 : i32, message = "bqc,bkc->bqk"}> : () -> ()
    %cst_20 = arith.constant dense<0.000000e+00> : vector<2x8x8xf32>
    %26 = tpu.matmul %25, %18, %cst_20 {dimension_numbers = #tpu.dot_dimension_numbers<[2], [2], [1], [1], [0, 0, 0, 1, 1, 1], [0], [0]>} : vector<2x8x32xf32>, vector<2x8x32xf32>, vector<2x8x8xf32> -> vector<2x8x8xf32>
    "tpu.trace_stop"() : () -> ()
    %cst_21 = arith.constant 0.353553385 : f32
    %27 = vector.broadcast %cst_21 : f32 to vector<2x8x8xf32>
    %28 = arith.mulf %26, %27 : vector<2x8x8xf32>
    %cst_22 = arith.constant dense<0xFF800000> : vector<2x8xf32>
    %29 = vector.multi_reduction <maximumf>, %28, %cst_22 [2] : vector<2x8x8xf32> to vector<2x8xf32>
    %30 = vector.shape_cast %29 : vector<2x8xf32> to vector<2x8x1xf32>
    %31 = vector.broadcast %30 : vector<2x8x1xf32> to vector<2x8x8xf32>
    %32 = arith.subf %28, %31 : vector<2x8x8xf32>
    %33 = math.exp %32 : vector<2x8x8xf32>
    %cst_23 = arith.constant dense<0.000000e+00> : vector<2x8xf32>
    %34 = vector.multi_reduction <add>, %33, %cst_23 [2] : vector<2x8x8xf32> to vector<2x8xf32>
    %35 = vector.shape_cast %34 : vector<2x8xf32> to vector<2x8x1xf32>
    %36 = tpu.reciprocal %35 {approx = true} : vector<2x8x1xf32> -> vector<2x8x1xf32>
    %37 = vector.broadcast %36 : vector<2x8x1xf32> to vector<2x8x8xf32>
    %38 = arith.mulf %33, %37 : vector<2x8x8xf32>
    %39 = vector.broadcast %23 : vector<1x1x32xf32> to vector<2x8x32xf32>
    %40 = arith.mulf %20, %39 : vector<2x8x32xf32>
    "tpu.trace_start"() <{level = 10 : i32, message = "bqk,bkc->bqc"}> : () -> ()
    %cst_24 = arith.constant dense<0.000000e+00> : vector<2x8x32xf32>
    %41 = tpu.matmul %38, %40, %cst_24 {dimension_numbers = #tpu.dot_dimension_numbers<[2], [1], [1], [2], [0, 0, 0, 1, 1, 2], [0], [0]>} : vector<2x8x8xf32>, vector<2x8x32xf32>, vector<2x8x32xf32> -> vector<2x8x32xf32>
    "tpu.trace_stop"() : () -> ()
    %42 = arith.addf %21, %41 : vector<2x8x32xf32>
    %43 = vector.extract_strided_slice %7 {offsets = [1, 0, 0, 0], sizes = [1, 1, 1, 32], strides = [1, 1, 1, 1]} : vector<4x1x1x32xf32> to vector<1x1x1x32xf32>
    %44 = vector.shape_cast %43 : vector<1x1x1x32xf32> to vector<1x1x32xf32>
    %45 = vector.broadcast %44 : vector<1x1x32xf32> to vector<2x8x32xf32>
    %46 = arith.mulf %16, %45 : vector<2x8x32xf32>
    "tpu.trace_start"() <{level = 10 : i32, message = "bqc,bkc->bqk"}> : () -> ()
    %cst_25 = arith.constant dense<0.000000e+00> : vector<2x8x8xf32>
    %47 = tpu.matmul %46, %18, %cst_25 {dimension_numbers = #tpu.dot_dimension_numbers<[2], [2], [1], [1], [0, 0, 0, 1, 1, 1], [0], [0]>} : vector<2x8x32xf32>, vector<2x8x32xf32>, vector<2x8x8xf32> -> vector<2x8x8xf32>
    "tpu.trace_stop"() : () -> ()
    %cst_26 = arith.constant 0.353553385 : f32
    %48 = vector.broadcast %cst_26 : f32 to vector<2x8x8xf32>
    %49 = arith.mulf %47, %48 : vector<2x8x8xf32>
    %cst_27 = arith.constant dense<0xFF800000> : vector<2x8xf32>
    %50 = vector.multi_reduction <maximumf>, %49, %cst_27 [2] : vector<2x8x8xf32> to vector<2x8xf32>
    %51 = vector.shape_cast %50 : vector<2x8xf32> to vector<2x8x1xf32>
    %52 = vector.broadcast %51 : vector<2x8x1xf32> to vector<2x8x8xf32>
    %53 = arith.subf %49, %52 : vector<2x8x8xf32>
    %54 = math.exp %53 : vector<2x8x8xf32>
    %cst_28 = arith.constant dense<0.000000e+00> : vector<2x8xf32>
    %55 = vector.multi_reduction <add>, %54, %cst_28 [2] : vector<2x8x8xf32> to vector<2x8xf32>
    %56 = vector.shape_cast %55 : vector<2x8xf32> to vector<2x8x1xf32>
    %57 = tpu.reciprocal %56 {approx = true} : vector<2x8x1xf32> -> vector<2x8x1xf32>
    %58 = vector.broadcast %57 : vector<2x8x1xf32> to vector<2x8x8xf32>
    %59 = arith.mulf %54, %58 : vector<2x8x8xf32>
    %60 = vector.broadcast %44 : vector<1x1x32xf32> to vector<2x8x32xf32>
    %61 = arith.mulf %20, %60 : vector<2x8x32xf32>
    "tpu.trace_start"() <{level = 10 : i32, message = "bqk,bkc->bqc"}> : () -> ()
    %cst_29 = arith.constant dense<0.000000e+00> : vector<2x8x32xf32>
    %62 = tpu.matmul %59, %61, %cst_29 {dimension_numbers = #tpu.dot_dimension_numbers<[2], [1], [1], [2], [0, 0, 0, 1, 1, 2], [0], [0]>} : vector<2x8x8xf32>, vector<2x8x32xf32>, vector<2x8x32xf32> -> vector<2x8x32xf32>
    "tpu.trace_stop"() : () -> ()
    %63 = arith.addf %42, %62 : vector<2x8x32xf32>
    %64 = vector.extract_strided_slice %7 {offsets = [2, 0, 0, 0], sizes = [1, 1, 1, 32], strides = [1, 1, 1, 1]} : vector<4x1x1x32xf32> to vector<1x1x1x32xf32>
    %65 = vector.shape_cast %64 : vector<1x1x1x32xf32> to vector<1x1x32xf32>
    %66 = vector.broadcast %65 : vector<1x1x32xf32> to vector<2x8x32xf32>
    %67 = arith.mulf %16, %66 : vector<2x8x32xf32>
    "tpu.trace_start"() <{level = 10 : i32, message = "bqc,bkc->bqk"}> : () -> ()
    %cst_30 = arith.constant dense<0.000000e+00> : vector<2x8x8xf32>
    %68 = tpu.matmul %67, %18, %cst_30 {dimension_numbers = #tpu.dot_dimension_numbers<[2], [2], [1], [1], [0, 0, 0, 1, 1, 1], [0], [0]>} : vector<2x8x32xf32>, vector<2x8x32xf32>, vector<2x8x8xf32> -> vector<2x8x8xf32>
    "tpu.trace_stop"() : () -> ()
    %cst_31 = arith.constant 0.353553385 : f32
    %69 = vector.broadcast %cst_31 : f32 to vector<2x8x8xf32>
    %70 = arith.mulf %68, %69 : vector<2x8x8xf32>
    %cst_32 = arith.constant dense<0xFF800000> : vector<2x8xf32>
    %71 = vector.multi_reduction <maximumf>, %70, %cst_32 [2] : vector<2x8x8xf32> to vector<2x8xf32>
    %72 = vector.shape_cast %71 : vector<2x8xf32> to vector<2x8x1xf32>
    %73 = vector.broadcast %72 : vector<2x8x1xf32> to vector<2x8x8xf32>
    %74 = arith.subf %70, %73 : vector<2x8x8xf32>
    %75 = math.exp %74 : vector<2x8x8xf32>
    %cst_33 = arith.constant dense<0.000000e+00> : vector<2x8xf32>
    %76 = vector.multi_reduction <add>, %75, %cst_33 [2] : vector<2x8x8xf32> to vector<2x8xf32>
    %77 = vector.shape_cast %76 : vector<2x8xf32> to vector<2x8x1xf32>
    %78 = tpu.reciprocal %77 {approx = true} : vector<2x8x1xf32> -> vector<2x8x1xf32>
    %79 = vector.broadcast %78 : vector<2x8x1xf32> to vector<2x8x8xf32>
    %80 = arith.mulf %75, %79 : vector<2x8x8xf32>
    %81 = vector.broadcast %65 : vector<1x1x32xf32> to vector<2x8x32xf32>
    %82 = arith.mulf %20, %81 : vector<2x8x32xf32>
    "tpu.trace_start"() <{level = 10 : i32, message = "bqk,bkc->bqc"}> : () -> ()
    %cst_34 = arith.constant dense<0.000000e+00> : vector<2x8x32xf32>
    %83 = tpu.matmul %80, %82, %cst_34 {dimension_numbers = #tpu.dot_dimension_numbers<[2], [1], [1], [2], [0, 0, 0, 1, 1, 2], [0], [0]>} : vector<2x8x8xf32>, vector<2x8x32xf32>, vector<2x8x32xf32> -> vector<2x8x32xf32>
    "tpu.trace_stop"() : () -> ()
    %84 = arith.addf %63, %83 : vector<2x8x32xf32>
    %85 = vector.extract_strided_slice %7 {offsets = [3, 0, 0, 0], sizes = [1, 1, 1, 32], strides = [1, 1, 1, 1]} : vector<4x1x1x32xf32> to vector<1x1x1x32xf32>
    %86 = vector.shape_cast %85 : vector<1x1x1x32xf32> to vector<1x1x32xf32>
    %87 = vector.broadcast %86 : vector<1x1x32xf32> to vector<2x8x32xf32>
    %88 = arith.mulf %16, %87 : vector<2x8x32xf32>
    "tpu.trace_start"() <{level = 10 : i32, message = "bqc,bkc->bqk"}> : () -> ()
    %cst_35 = arith.constant dense<0.000000e+00> : vector<2x8x8xf32>
    %89 = tpu.matmul %88, %18, %cst_35 {dimension_numbers = #tpu.dot_dimension_numbers<[2], [2], [1], [1], [0, 0, 0, 1, 1, 1], [0], [0]>} : vector<2x8x32xf32>, vector<2x8x32xf32>, vector<2x8x8xf32> -> vector<2x8x8xf32>
    "tpu.trace_stop"() : () -> ()
    %cst_36 = arith.constant 0.353553385 : f32
    %90 = vector.broadcast %cst_36 : f32 to vector<2x8x8xf32>
    %91 = arith.mulf %89, %90 : vector<2x8x8xf32>
    %cst_37 = arith.constant dense<0xFF800000> : vector<2x8xf32>
    %92 = vector.multi_reduction <maximumf>, %91, %cst_37 [2] : vector<2x8x8xf32> to vector<2x8xf32>
    %93 = vector.shape_cast %92 : vector<2x8xf32> to vector<2x8x1xf32>
    %94 = vector.broadcast %93 : vector<2x8x1xf32> to vector<2x8x8xf32>
    %95 = arith.subf %91, %94 : vector<2x8x8xf32>
    %96 = math.exp %95 : vector<2x8x8xf32>
    %cst_38 = arith.constant dense<0.000000e+00> : vector<2x8xf32>
    %97 = vector.multi_reduction <add>, %96, %cst_38 [2] : vector<2x8x8xf32> to vector<2x8xf32>
    %98 = vector.shape_cast %97 : vector<2x8xf32> to vector<2x8x1xf32>
    %99 = tpu.reciprocal %98 {approx = true} : vector<2x8x1xf32> -> vector<2x8x1xf32>
    %100 = vector.broadcast %99 : vector<2x8x1xf32> to vector<2x8x8xf32>
    %101 = arith.mulf %96, %100 : vector<2x8x8xf32>
    %102 = vector.broadcast %86 : vector<1x1x32xf32> to vector<2x8x32xf32>
    %103 = arith.mulf %20, %102 : vector<2x8x32xf32>
    "tpu.trace_start"() <{level = 10 : i32, message = "bqk,bkc->bqc"}> : () -> ()
    %cst_39 = arith.constant dense<0.000000e+00> : vector<2x8x32xf32>
    %104 = tpu.matmul %101, %103, %cst_39 {dimension_numbers = #tpu.dot_dimension_numbers<[2], [1], [1], [2], [0, 0, 0, 1, 1, 2], [0], [0]>} : vector<2x8x8xf32>, vector<2x8x32xf32>, vector<2x8x32xf32> -> vector<2x8x32xf32>
    "tpu.trace_stop"() : () -> ()
    %105 = arith.addf %84, %104 : vector<2x8x32xf32>
    %106 = vector.shape_cast %105 : vector<2x8x32xf32> to vector<16x32xf32>
    %c0_40 = arith.constant 0 : index
    %c0_41 = arith.constant 0 : index
    %c0_42 = arith.constant 0 : index
    %c0_43 = arith.constant 0 : index
    %107 = vector.load %arg8[%c0_40, %c0_41, %c0_42, %c0_43] : memref<1x2x32x32xf32, #tpu.memory_space<vmem>>, vector<1x1x32x32xf32>
    %108 = vector.shape_cast %107 : vector<1x1x32x32xf32> to vector<32x32xf32>
    %cst_44 = arith.constant dense<0.000000e+00> : vector<16x32xf32>
    %109 = tpu.matmul %106, %108, %cst_44 {dimension_numbers = #tpu.dot_dimension_numbers<[1], [0], [0], [1], [0, 0, 1, 1], [], []>} : vector<16x32xf32>, vector<32x32xf32>, vector<16x32xf32> -> vector<16x32xf32>
    %c0_45 = arith.constant 0 : index
    %c0_46 = arith.constant 0 : index
    %c0_47 = arith.constant 0 : index
    %c0_48 = arith.constant 0 : index
    %110 = vector.load %arg9[%c0_45, %c0_46, %c0_47, %c0_48] : memref<1x2x1x32xf32, #tpu.memory_space<vmem>>, vector<1x1x1x32xf32>
    %111 = vector.shape_cast %110 : vector<1x1x1x32xf32> to vector<1x32xf32>
    %112 = vector.broadcast %111 : vector<1x32xf32> to vector<16x32xf32>
    %113 = arith.addf %109, %112 : vector<16x32xf32>
    %114 = arith.addf %6, %113 : vector<16x32xf32>
    %c0_49 = arith.constant 0 : index
    %c0_50 = arith.constant 0 : index
    %c0_51 = arith.constant 0 : index
    %c0_52 = arith.constant 0 : index
    %115 = vector.load %arg10[%c0_49, %c0_50, %c0_51, %c0_52] : memref<1x2x1x32xf32, #tpu.memory_space<vmem>>, vector<1x1x1x32xf32>
    %116 = vector.shape_cast %115 : vector<1x1x1x32xf32> to vector<1x32xf32>
    %c0_53 = arith.constant 0 : index
    %c0_54 = arith.constant 0 : index
    %c0_55 = arith.constant 0 : index
    %c0_56 = arith.constant 0 : index
    %117 = vector.load %arg11[%c0_53, %c0_54, %c0_55, %c0_56] : memref<1x2x1x32xf32, #tpu.memory_space<vmem>>, vector<1x1x1x32xf32>
    %118 = vector.shape_cast %117 : vector<1x1x1x32xf32> to vector<1x32xf32>
    %cst_57 = arith.constant dense<0.000000e+00> : vector<16xf32>
    %119 = vector.multi_reduction <add>, %114, %cst_57 [1] : vector<16x32xf32> to vector<16xf32>
    %120 = vector.shape_cast %119 : vector<16xf32> to vector<16x1xf32>
    %cst_58 = arith.constant 3.200000e+01 : f32
    %121 = vector.broadcast %cst_58 : f32 to vector<16x1xf32>
    %122 = arith.divf %120, %121 : vector<16x1xf32>
    %123 = vector.broadcast %122 : vector<16x1xf32> to vector<16x32xf32>
    %124 = arith.subf %114, %123 : vector<16x32xf32>
    %125 = arith.mulf %124, %124 : vector<16x32xf32>
    %cst_59 = arith.constant dense<0.000000e+00> : vector<16xf32>
    %126 = vector.multi_reduction <add>, %125, %cst_59 [1] : vector<16x32xf32> to vector<16xf32>
    %127 = vector.shape_cast %126 : vector<16xf32> to vector<16x1xf32>
    %cst_60 = arith.constant 3.200000e+01 : f32
    %128 = vector.broadcast %cst_60 : f32 to vector<16x1xf32>
    %129 = arith.divf %127, %128 : vector<16x1xf32>
    %130 = vector.broadcast %122 : vector<16x1xf32> to vector<16x32xf32>
    %131 = arith.subf %114, %130 : vector<16x32xf32>
    %cst_61 = arith.constant 9.99999974E-6 : f32
    %132 = vector.broadcast %cst_61 : f32 to vector<16x1xf32>
    %133 = arith.addf %129, %132 : vector<16x1xf32>
    %134 = math.rsqrt %133 : vector<16x1xf32>
    %135 = vector.broadcast %134 : vector<16x1xf32> to vector<16x32xf32>
    %136 = arith.mulf %131, %135 : vector<16x32xf32>
    %137 = vector.broadcast %116 : vector<1x32xf32> to vector<16x32xf32>
    %138 = arith.mulf %136, %137 : vector<16x32xf32>
    %139 = vector.broadcast %118 : vector<1x32xf32> to vector<16x32xf32>
    %140 = arith.addf %138, %139 : vector<16x32xf32>
    %c0_62 = arith.constant 0 : index
    %c0_63 = arith.constant 0 : index
    %c0_64 = arith.constant 0 : index
    %c0_65 = arith.constant 0 : index
    %141 = vector.load %arg12[%c0_62, %c0_63, %c0_64, %c0_65] : memref<1x2x32x64xf32, #tpu.memory_space<vmem>>, vector<1x1x32x64xf32>
    %142 = vector.shape_cast %141 : vector<1x1x32x64xf32> to vector<32x64xf32>
    %cst_66 = arith.constant dense<0.000000e+00> : vector<16x64xf32>
    %143 = tpu.matmul %140, %142, %cst_66 {dimension_numbers = #tpu.dot_dimension_numbers<[1], [0], [0], [1], [0, 0, 1, 1], [], []>} : vector<16x32xf32>, vector<32x64xf32>, vector<16x64xf32> -> vector<16x64xf32>
    %c0_67 = arith.constant 0 : index
    %c0_68 = arith.constant 0 : index
    %c0_69 = arith.constant 0 : index
    %c0_70 = arith.constant 0 : index
    %144 = vector.load %arg13[%c0_67, %c0_68, %c0_69, %c0_70] : memref<1x2x1x64xf32, #tpu.memory_space<vmem>>, vector<1x1x1x64xf32>
    %145 = vector.shape_cast %144 : vector<1x1x1x64xf32> to vector<1x64xf32>
    %146 = vector.broadcast %145 : vector<1x64xf32> to vector<16x64xf32>
    %147 = arith.addf %143, %146 : vector<16x64xf32>
    %cst_71 = arith.constant 0.000000e+00 : f32
    %148 = vector.broadcast %cst_71 : f32 to vector<16x64xf32>
    %149 = arith.maximumf %147, %148 : vector<16x64xf32>
    %c0_72 = arith.constant 0 : index
    %c0_73 = arith.constant 0 : index
    %c0_74 = arith.constant 0 : index
    %c0_75 = arith.constant 0 : index
    %150 = vector.load %arg14[%c0_72, %c0_73, %c0_74, %c0_75] : memref<1x2x64x32xf32, #tpu.memory_space<vmem>>, vector<1x1x64x32xf32>
    %151 = vector.shape_cast %150 : vector<1x1x64x32xf32> to vector<64x32xf32>
    %cst_76 = arith.constant dense<0.000000e+00> : vector<16x32xf32>
    %152 = tpu.matmul %149, %151, %cst_76 {dimension_numbers = #tpu.dot_dimension_numbers<[1], [0], [0], [1], [0, 0, 1, 1], [], []>} : vector<16x64xf32>, vector<64x32xf32>, vector<16x32xf32> -> vector<16x32xf32>
    %c0_77 = arith.constant 0 : index
    %c0_78 = arith.constant 0 : index
    %c0_79 = arith.constant 0 : index
    %c0_80 = arith.constant 0 : index
    %153 = vector.load %arg15[%c0_77, %c0_78, %c0_79, %c0_80] : memref<1x2x1x32xf32, #tpu.memory_space<vmem>>, vector<1x1x1x32xf32>
    %154 = vector.shape_cast %153 : vector<1x1x1x32xf32> to vector<1x32xf32>
    %155 = vector.broadcast %154 : vector<1x32xf32> to vector<16x32xf32>
    %156 = arith.addf %152, %155 : vector<16x32xf32>
    %157 = arith.addf %140, %156 : vector<16x32xf32>
    %c0_81 = arith.constant 0 : index
    %c0_82 = arith.constant 0 : index
    %c0_83 = arith.constant 0 : index
    %c0_84 = arith.constant 0 : index
    %158 = vector.load %arg16[%c0_81, %c0_82, %c0_83, %c0_84] : memref<1x2x1x32xf32, #tpu.memory_space<vmem>>, vector<1x1x1x32xf32>
    %159 = vector.shape_cast %158 : vector<1x1x1x32xf32> to vector<1x32xf32>
    %c0_85 = arith.constant 0 : index
    %c0_86 = arith.constant 0 : index
    %c0_87 = arith.constant 0 : index
    %c0_88 = arith.constant 0 : index
    %160 = vector.load %arg17[%c0_85, %c0_86, %c0_87, %c0_88] : memref<1x2x1x32xf32, #tpu.memory_space<vmem>>, vector<1x1x1x32xf32>
    %161 = vector.shape_cast %160 : vector<1x1x1x32xf32> to vector<1x32xf32>
    %cst_89 = arith.constant dense<0.000000e+00> : vector<16xf32>
    %162 = vector.multi_reduction <add>, %157, %cst_89 [1] : vector<16x32xf32> to vector<16xf32>
    %163 = vector.shape_cast %162 : vector<16xf32> to vector<16x1xf32>
    %cst_90 = arith.constant 3.200000e+01 : f32
    %164 = vector.broadcast %cst_90 : f32 to vector<16x1xf32>
    %165 = arith.divf %163, %164 : vector<16x1xf32>
    %166 = vector.broadcast %165 : vector<16x1xf32> to vector<16x32xf32>
    %167 = arith.subf %157, %166 : vector<16x32xf32>
    %168 = arith.mulf %167, %167 : vector<16x32xf32>
    %cst_91 = arith.constant dense<0.000000e+00> : vector<16xf32>
    %169 = vector.multi_reduction <add>, %168, %cst_91 [1] : vector<16x32xf32> to vector<16xf32>
    %170 = vector.shape_cast %169 : vector<16xf32> to vector<16x1xf32>
    %cst_92 = arith.constant 3.200000e+01 : f32
    %171 = vector.broadcast %cst_92 : f32 to vector<16x1xf32>
    %172 = arith.divf %170, %171 : vector<16x1xf32>
    %173 = vector.broadcast %165 : vector<16x1xf32> to vector<16x32xf32>
    %174 = arith.subf %157, %173 : vector<16x32xf32>
    %cst_93 = arith.constant 9.99999974E-6 : f32
    %175 = vector.broadcast %cst_93 : f32 to vector<16x1xf32>
    %176 = arith.addf %172, %175 : vector<16x1xf32>
    %177 = math.rsqrt %176 : vector<16x1xf32>
    %178 = vector.broadcast %177 : vector<16x1xf32> to vector<16x32xf32>
    %179 = arith.mulf %174, %178 : vector<16x32xf32>
    %180 = vector.broadcast %159 : vector<1x32xf32> to vector<16x32xf32>
    %181 = arith.mulf %179, %180 : vector<16x32xf32>
    %182 = vector.broadcast %161 : vector<1x32xf32> to vector<16x32xf32>
    %183 = arith.addf %181, %182 : vector<16x32xf32>
    %c0_94 = arith.constant 0 : index
    %c1 = arith.constant 1 : index
    %c0_95 = arith.constant 0 : index
    %c0_96 = arith.constant 0 : index
    %184 = vector.load %arg6[%c0_94, %c1, %c0_95, %c0_96] : memref<1x2x32x96xf32, #tpu.memory_space<vmem>>, vector<1x1x32x96xf32>
    %185 = vector.shape_cast %184 : vector<1x1x32x96xf32> to vector<32x96xf32>
    %cst_97 = arith.constant dense<0.000000e+00> : vector<16x96xf32>
    %186 = tpu.matmul %183, %185, %cst_97 {dimension_numbers = #tpu.dot_dimension_numbers<[1], [0], [0], [1], [0, 0, 1, 1], [], []>} : vector<16x32xf32>, vector<32x96xf32>, vector<16x96xf32> -> vector<16x96xf32>
    %c0_98 = arith.constant 0 : index
    %c1_99 = arith.constant 1 : index
    %c0_100 = arith.constant 0 : index
    %c0_101 = arith.constant 0 : index
    %187 = vector.load %arg7[%c0_98, %c1_99, %c0_100, %c0_101] : memref<1x2x1x96xf32, #tpu.memory_space<vmem>>, vector<1x1x1x96xf32>
    %188 = vector.shape_cast %187 : vector<1x1x1x96xf32> to vector<1x96xf32>
    %189 = vector.broadcast %188 : vector<1x96xf32> to vector<16x96xf32>
    %190 = arith.addf %186, %189 : vector<16x96xf32>
    %191 = vector.extract_strided_slice %190 {offsets = [0, 0], sizes = [16, 32], strides = [1, 1]} : vector<16x96xf32> to vector<16x32xf32>
    %192 = vector.shape_cast %191 : vector<16x32xf32> to vector<2x8x32xf32>
    %193 = vector.extract_strided_slice %190 {offsets = [0, 32], sizes = [16, 32], strides = [1, 1]} : vector<16x96xf32> to vector<16x32xf32>
    %194 = vector.shape_cast %193 : vector<16x32xf32> to vector<2x8x32xf32>
    %195 = vector.extract_strided_slice %190 {offsets = [0, 64], sizes = [16, 32], strides = [1, 1]} : vector<16x96xf32> to vector<16x32xf32>
    %196 = vector.shape_cast %195 : vector<16x32xf32> to vector<2x8x32xf32>
    %cst_102 = arith.constant 0.000000e+00 : f32
    %197 = vector.broadcast %cst_102 : f32 to vector<2x8x32xf32>
    %198 = vector.extract_strided_slice %7 {offsets = [0, 0, 0, 0], sizes = [1, 1, 1, 32], strides = [1, 1, 1, 1]} : vector<4x1x1x32xf32> to vector<1x1x1x32xf32>
    %199 = vector.shape_cast %198 : vector<1x1x1x32xf32> to vector<1x1x32xf32>
    %200 = vector.broadcast %199 : vector<1x1x32xf32> to vector<2x8x32xf32>
    %201 = arith.mulf %192, %200 : vector<2x8x32xf32>
    "tpu.trace_start"() <{level = 10 : i32, message = "bqc,bkc->bqk"}> : () -> ()
    %cst_103 = arith.constant dense<0.000000e+00> : vector<2x8x8xf32>
    %202 = tpu.matmul %201, %194, %cst_103 {dimension_numbers = #tpu.dot_dimension_numbers<[2], [2], [1], [1], [0, 0, 0, 1, 1, 1], [0], [0]>} : vector<2x8x32xf32>, vector<2x8x32xf32>, vector<2x8x8xf32> -> vector<2x8x8xf32>
    "tpu.trace_stop"() : () -> ()
    %cst_104 = arith.constant 0.353553385 : f32
    %203 = vector.broadcast %cst_104 : f32 to vector<2x8x8xf32>
    %204 = arith.mulf %202, %203 : vector<2x8x8xf32>
    %cst_105 = arith.constant dense<0xFF800000> : vector<2x8xf32>
    %205 = vector.multi_reduction <maximumf>, %204, %cst_105 [2] : vector<2x8x8xf32> to vector<2x8xf32>
    %206 = vector.shape_cast %205 : vector<2x8xf32> to vector<2x8x1xf32>
    %207 = vector.broadcast %206 : vector<2x8x1xf32> to vector<2x8x8xf32>
    %208 = arith.subf %204, %207 : vector<2x8x8xf32>
    %209 = math.exp %208 : vector<2x8x8xf32>
    %cst_106 = arith.constant dense<0.000000e+00> : vector<2x8xf32>
    %210 = vector.multi_reduction <add>, %209, %cst_106 [2] : vector<2x8x8xf32> to vector<2x8xf32>
    %211 = vector.shape_cast %210 : vector<2x8xf32> to vector<2x8x1xf32>
    %212 = tpu.reciprocal %211 {approx = true} : vector<2x8x1xf32> -> vector<2x8x1xf32>
    %213 = vector.broadcast %212 : vector<2x8x1xf32> to vector<2x8x8xf32>
    %214 = arith.mulf %209, %213 : vector<2x8x8xf32>
    %215 = vector.broadcast %199 : vector<1x1x32xf32> to vector<2x8x32xf32>
    %216 = arith.mulf %196, %215 : vector<2x8x32xf32>
    "tpu.trace_start"() <{level = 10 : i32, message = "bqk,bkc->bqc"}> : () -> ()
    %cst_107 = arith.constant dense<0.000000e+00> : vector<2x8x32xf32>
    %217 = tpu.matmul %214, %216, %cst_107 {dimension_numbers = #tpu.dot_dimension_numbers<[2], [1], [1], [2], [0, 0, 0, 1, 1, 2], [0], [0]>} : vector<2x8x8xf32>, vector<2x8x32xf32>, vector<2x8x32xf32> -> vector<2x8x32xf32>
    "tpu.trace_stop"() : () -> ()
    %218 = arith.addf %197, %217 : vector<2x8x32xf32>
    %219 = vector.extract_strided_slice %7 {offsets = [1, 0, 0, 0], sizes = [1, 1, 1, 32], strides = [1, 1, 1, 1]} : vector<4x1x1x32xf32> to vector<1x1x1x32xf32>
    %220 = vector.shape_cast %219 : vector<1x1x1x32xf32> to vector<1x1x32xf32>
    %221 = vector.broadcast %220 : vector<1x1x32xf32> to vector<2x8x32xf32>
    %222 = arith.mulf %192, %221 : vector<2x8x32xf32>
    "tpu.trace_start"() <{level = 10 : i32, message = "bqc,bkc->bqk"}> : () -> ()
    %cst_108 = arith.constant dense<0.000000e+00> : vector<2x8x8xf32>
    %223 = tpu.matmul %222, %194, %cst_108 {dimension_numbers = #tpu.dot_dimension_numbers<[2], [2], [1], [1], [0, 0, 0, 1, 1, 1], [0], [0]>} : vector<2x8x32xf32>, vector<2x8x32xf32>, vector<2x8x8xf32> -> vector<2x8x8xf32>
    "tpu.trace_stop"() : () -> ()
    %cst_109 = arith.constant 0.353553385 : f32
    %224 = vector.broadcast %cst_109 : f32 to vector<2x8x8xf32>
    %225 = arith.mulf %223, %224 : vector<2x8x8xf32>
    %cst_110 = arith.constant dense<0xFF800000> : vector<2x8xf32>
    %226 = vector.multi_reduction <maximumf>, %225, %cst_110 [2] : vector<2x8x8xf32> to vector<2x8xf32>
    %227 = vector.shape_cast %226 : vector<2x8xf32> to vector<2x8x1xf32>
    %228 = vector.broadcast %227 : vector<2x8x1xf32> to vector<2x8x8xf32>
    %229 = arith.subf %225, %228 : vector<2x8x8xf32>
    %230 = math.exp %229 : vector<2x8x8xf32>
    %cst_111 = arith.constant dense<0.000000e+00> : vector<2x8xf32>
    %231 = vector.multi_reduction <add>, %230, %cst_111 [2] : vector<2x8x8xf32> to vector<2x8xf32>
    %232 = vector.shape_cast %231 : vector<2x8xf32> to vector<2x8x1xf32>
    %233 = tpu.reciprocal %232 {approx = true} : vector<2x8x1xf32> -> vector<2x8x1xf32>
    %234 = vector.broadcast %233 : vector<2x8x1xf32> to vector<2x8x8xf32>
    %235 = arith.mulf %230, %234 : vector<2x8x8xf32>
    %236 = vector.broadcast %220 : vector<1x1x32xf32> to vector<2x8x32xf32>
    %237 = arith.mulf %196, %236 : vector<2x8x32xf32>
    "tpu.trace_start"() <{level = 10 : i32, message = "bqk,bkc->bqc"}> : () -> ()
    %cst_112 = arith.constant dense<0.000000e+00> : vector<2x8x32xf32>
    %238 = tpu.matmul %235, %237, %cst_112 {dimension_numbers = #tpu.dot_dimension_numbers<[2], [1], [1], [2], [0, 0, 0, 1, 1, 2], [0], [0]>} : vector<2x8x8xf32>, vector<2x8x32xf32>, vector<2x8x32xf32> -> vector<2x8x32xf32>
    "tpu.trace_stop"() : () -> ()
    %239 = arith.addf %218, %238 : vector<2x8x32xf32>
    %240 = vector.extract_strided_slice %7 {offsets = [2, 0, 0, 0], sizes = [1, 1, 1, 32], strides = [1, 1, 1, 1]} : vector<4x1x1x32xf32> to vector<1x1x1x32xf32>
    %241 = vector.shape_cast %240 : vector<1x1x1x32xf32> to vector<1x1x32xf32>
    %242 = vector.broadcast %241 : vector<1x1x32xf32> to vector<2x8x32xf32>
    %243 = arith.mulf %192, %242 : vector<2x8x32xf32>
    "tpu.trace_start"() <{level = 10 : i32, message = "bqc,bkc->bqk"}> : () -> ()
    %cst_113 = arith.constant dense<0.000000e+00> : vector<2x8x8xf32>
    %244 = tpu.matmul %243, %194, %cst_113 {dimension_numbers = #tpu.dot_dimension_numbers<[2], [2], [1], [1], [0, 0, 0, 1, 1, 1], [0], [0]>} : vector<2x8x32xf32>, vector<2x8x32xf32>, vector<2x8x8xf32> -> vector<2x8x8xf32>
    "tpu.trace_stop"() : () -> ()
    %cst_114 = arith.constant 0.353553385 : f32
    %245 = vector.broadcast %cst_114 : f32 to vector<2x8x8xf32>
    %246 = arith.mulf %244, %245 : vector<2x8x8xf32>
    %cst_115 = arith.constant dense<0xFF800000> : vector<2x8xf32>
    %247 = vector.multi_reduction <maximumf>, %246, %cst_115 [2] : vector<2x8x8xf32> to vector<2x8xf32>
    %248 = vector.shape_cast %247 : vector<2x8xf32> to vector<2x8x1xf32>
    %249 = vector.broadcast %248 : vector<2x8x1xf32> to vector<2x8x8xf32>
    %250 = arith.subf %246, %249 : vector<2x8x8xf32>
    %251 = math.exp %250 : vector<2x8x8xf32>
    %cst_116 = arith.constant dense<0.000000e+00> : vector<2x8xf32>
    %252 = vector.multi_reduction <add>, %251, %cst_116 [2] : vector<2x8x8xf32> to vector<2x8xf32>
    %253 = vector.shape_cast %252 : vector<2x8xf32> to vector<2x8x1xf32>
    %254 = tpu.reciprocal %253 {approx = true} : vector<2x8x1xf32> -> vector<2x8x1xf32>
    %255 = vector.broadcast %254 : vector<2x8x1xf32> to vector<2x8x8xf32>
    %256 = arith.mulf %251, %255 : vector<2x8x8xf32>
    %257 = vector.broadcast %241 : vector<1x1x32xf32> to vector<2x8x32xf32>
    %258 = arith.mulf %196, %257 : vector<2x8x32xf32>
    "tpu.trace_start"() <{level = 10 : i32, message = "bqk,bkc->bqc"}> : () -> ()
    %cst_117 = arith.constant dense<0.000000e+00> : vector<2x8x32xf32>
    %259 = tpu.matmul %256, %258, %cst_117 {dimension_numbers = #tpu.dot_dimension_numbers<[2], [1], [1], [2], [0, 0, 0, 1, 1, 2], [0], [0]>} : vector<2x8x8xf32>, vector<2x8x32xf32>, vector<2x8x32xf32> -> vector<2x8x32xf32>
    "tpu.trace_stop"() : () -> ()
    %260 = arith.addf %239, %259 : vector<2x8x32xf32>
    %261 = vector.extract_strided_slice %7 {offsets = [3, 0, 0, 0], sizes = [1, 1, 1, 32], strides = [1, 1, 1, 1]} : vector<4x1x1x32xf32> to vector<1x1x1x32xf32>
    %262 = vector.shape_cast %261 : vector<1x1x1x32xf32> to vector<1x1x32xf32>
    %263 = vector.broadcast %262 : vector<1x1x32xf32> to vector<2x8x32xf32>
    %264 = arith.mulf %192, %263 : vector<2x8x32xf32>
    "tpu.trace_start"() <{level = 10 : i32, message = "bqc,bkc->bqk"}> : () -> ()
    %cst_118 = arith.constant dense<0.000000e+00> : vector<2x8x8xf32>
    %265 = tpu.matmul %264, %194, %cst_118 {dimension_numbers = #tpu.dot_dimension_numbers<[2], [2], [1], [1], [0, 0, 0, 1, 1, 1], [0], [0]>} : vector<2x8x32xf32>, vector<2x8x32xf32>, vector<2x8x8xf32> -> vector<2x8x8xf32>
    "tpu.trace_stop"() : () -> ()
    %cst_119 = arith.constant 0.353553385 : f32
    %266 = vector.broadcast %cst_119 : f32 to vector<2x8x8xf32>
    %267 = arith.mulf %265, %266 : vector<2x8x8xf32>
    %cst_120 = arith.constant dense<0xFF800000> : vector<2x8xf32>
    %268 = vector.multi_reduction <maximumf>, %267, %cst_120 [2] : vector<2x8x8xf32> to vector<2x8xf32>
    %269 = vector.shape_cast %268 : vector<2x8xf32> to vector<2x8x1xf32>
    %270 = vector.broadcast %269 : vector<2x8x1xf32> to vector<2x8x8xf32>
    %271 = arith.subf %267, %270 : vector<2x8x8xf32>
    %272 = math.exp %271 : vector<2x8x8xf32>
    %cst_121 = arith.constant dense<0.000000e+00> : vector<2x8xf32>
    %273 = vector.multi_reduction <add>, %272, %cst_121 [2] : vector<2x8x8xf32> to vector<2x8xf32>
    %274 = vector.shape_cast %273 : vector<2x8xf32> to vector<2x8x1xf32>
    %275 = tpu.reciprocal %274 {approx = true} : vector<2x8x1xf32> -> vector<2x8x1xf32>
    %276 = vector.broadcast %275 : vector<2x8x1xf32> to vector<2x8x8xf32>
    %277 = arith.mulf %272, %276 : vector<2x8x8xf32>
    %278 = vector.broadcast %262 : vector<1x1x32xf32> to vector<2x8x32xf32>
    %279 = arith.mulf %196, %278 : vector<2x8x32xf32>
    "tpu.trace_start"() <{level = 10 : i32, message = "bqk,bkc->bqc"}> : () -> ()
    %cst_122 = arith.constant dense<0.000000e+00> : vector<2x8x32xf32>
    %280 = tpu.matmul %277, %279, %cst_122 {dimension_numbers = #tpu.dot_dimension_numbers<[2], [1], [1], [2], [0, 0, 0, 1, 1, 2], [0], [0]>} : vector<2x8x8xf32>, vector<2x8x32xf32>, vector<2x8x32xf32> -> vector<2x8x32xf32>
    "tpu.trace_stop"() : () -> ()
    %281 = arith.addf %260, %280 : vector<2x8x32xf32>
    %282 = vector.shape_cast %281 : vector<2x8x32xf32> to vector<16x32xf32>
    %c0_123 = arith.constant 0 : index
    %c1_124 = arith.constant 1 : index
    %c0_125 = arith.constant 0 : index
    %c0_126 = arith.constant 0 : index
    %283 = vector.load %arg8[%c0_123, %c1_124, %c0_125, %c0_126] : memref<1x2x32x32xf32, #tpu.memory_space<vmem>>, vector<1x1x32x32xf32>
    %284 = vector.shape_cast %283 : vector<1x1x32x32xf32> to vector<32x32xf32>
    %cst_127 = arith.constant dense<0.000000e+00> : vector<16x32xf32>
    %285 = tpu.matmul %282, %284, %cst_127 {dimension_numbers = #tpu.dot_dimension_numbers<[1], [0], [0], [1], [0, 0, 1, 1], [], []>} : vector<16x32xf32>, vector<32x32xf32>, vector<16x32xf32> -> vector<16x32xf32>
    %c0_128 = arith.constant 0 : index
    %c1_129 = arith.constant 1 : index
    %c0_130 = arith.constant 0 : index
    %c0_131 = arith.constant 0 : index
    %286 = vector.load %arg9[%c0_128, %c1_129, %c0_130, %c0_131] : memref<1x2x1x32xf32, #tpu.memory_space<vmem>>, vector<1x1x1x32xf32>
    %287 = vector.shape_cast %286 : vector<1x1x1x32xf32> to vector<1x32xf32>
    %288 = vector.broadcast %287 : vector<1x32xf32> to vector<16x32xf32>
    %289 = arith.addf %285, %288 : vector<16x32xf32>
    %290 = arith.addf %183, %289 : vector<16x32xf32>
    %c0_132 = arith.constant 0 : index
    %c1_133 = arith.constant 1 : index
    %c0_134 = arith.constant 0 : index
    %c0_135 = arith.constant 0 : index
    %291 = vector.load %arg10[%c0_132, %c1_133, %c0_134, %c0_135] : memref<1x2x1x32xf32, #tpu.memory_space<vmem>>, vector<1x1x1x32xf32>
    %292 = vector.shape_cast %291 : vector<1x1x1x32xf32> to vector<1x32xf32>
    %c0_136 = arith.constant 0 : index
    %c1_137 = arith.constant 1 : index
    %c0_138 = arith.constant 0 : index
    %c0_139 = arith.constant 0 : index
    %293 = vector.load %arg11[%c0_136, %c1_137, %c0_138, %c0_139] : memref<1x2x1x32xf32, #tpu.memory_space<vmem>>, vector<1x1x1x32xf32>
    %294 = vector.shape_cast %293 : vector<1x1x1x32xf32> to vector<1x32xf32>
    %cst_140 = arith.constant dense<0.000000e+00> : vector<16xf32>
    %295 = vector.multi_reduction <add>, %290, %cst_140 [1] : vector<16x32xf32> to vector<16xf32>
    %296 = vector.shape_cast %295 : vector<16xf32> to vector<16x1xf32>
    %cst_141 = arith.constant 3.200000e+01 : f32
    %297 = vector.broadcast %cst_141 : f32 to vector<16x1xf32>
    %298 = arith.divf %296, %297 : vector<16x1xf32>
    %299 = vector.broadcast %298 : vector<16x1xf32> to vector<16x32xf32>
    %300 = arith.subf %290, %299 : vector<16x32xf32>
    %301 = arith.mulf %300, %300 : vector<16x32xf32>
    %cst_142 = arith.constant dense<0.000000e+00> : vector<16xf32>
    %302 = vector.multi_reduction <add>, %301, %cst_142 [1] : vector<16x32xf32> to vector<16xf32>
    %303 = vector.shape_cast %302 : vector<16xf32> to vector<16x1xf32>
    %cst_143 = arith.constant 3.200000e+01 : f32
    %304 = vector.broadcast %cst_143 : f32 to vector<16x1xf32>
    %305 = arith.divf %303, %304 : vector<16x1xf32>
    %306 = vector.broadcast %298 : vector<16x1xf32> to vector<16x32xf32>
    %307 = arith.subf %290, %306 : vector<16x32xf32>
    %cst_144 = arith.constant 9.99999974E-6 : f32
    %308 = vector.broadcast %cst_144 : f32 to vector<16x1xf32>
    %309 = arith.addf %305, %308 : vector<16x1xf32>
    %310 = math.rsqrt %309 : vector<16x1xf32>
    %311 = vector.broadcast %310 : vector<16x1xf32> to vector<16x32xf32>
    %312 = arith.mulf %307, %311 : vector<16x32xf32>
    %313 = vector.broadcast %292 : vector<1x32xf32> to vector<16x32xf32>
    %314 = arith.mulf %312, %313 : vector<16x32xf32>
    %315 = vector.broadcast %294 : vector<1x32xf32> to vector<16x32xf32>
    %316 = arith.addf %314, %315 : vector<16x32xf32>
    %c0_145 = arith.constant 0 : index
    %c1_146 = arith.constant 1 : index
    %c0_147 = arith.constant 0 : index
    %c0_148 = arith.constant 0 : index
    %317 = vector.load %arg12[%c0_145, %c1_146, %c0_147, %c0_148] : memref<1x2x32x64xf32, #tpu.memory_space<vmem>>, vector<1x1x32x64xf32>
    %318 = vector.shape_cast %317 : vector<1x1x32x64xf32> to vector<32x64xf32>
    %cst_149 = arith.constant dense<0.000000e+00> : vector<16x64xf32>
    %319 = tpu.matmul %316, %318, %cst_149 {dimension_numbers = #tpu.dot_dimension_numbers<[1], [0], [0], [1], [0, 0, 1, 1], [], []>} : vector<16x32xf32>, vector<32x64xf32>, vector<16x64xf32> -> vector<16x64xf32>
    %c0_150 = arith.constant 0 : index
    %c1_151 = arith.constant 1 : index
    %c0_152 = arith.constant 0 : index
    %c0_153 = arith.constant 0 : index
    %320 = vector.load %arg13[%c0_150, %c1_151, %c0_152, %c0_153] : memref<1x2x1x64xf32, #tpu.memory_space<vmem>>, vector<1x1x1x64xf32>
    %321 = vector.shape_cast %320 : vector<1x1x1x64xf32> to vector<1x64xf32>
    %322 = vector.broadcast %321 : vector<1x64xf32> to vector<16x64xf32>
    %323 = arith.addf %319, %322 : vector<16x64xf32>
    %cst_154 = arith.constant 0.000000e+00 : f32
    %324 = vector.broadcast %cst_154 : f32 to vector<16x64xf32>
    %325 = arith.maximumf %323, %324 : vector<16x64xf32>
    %c0_155 = arith.constant 0 : index
    %c1_156 = arith.constant 1 : index
    %c0_157 = arith.constant 0 : index
    %c0_158 = arith.constant 0 : index
    %326 = vector.load %arg14[%c0_155, %c1_156, %c0_157, %c0_158] : memref<1x2x64x32xf32, #tpu.memory_space<vmem>>, vector<1x1x64x32xf32>
    %327 = vector.shape_cast %326 : vector<1x1x64x32xf32> to vector<64x32xf32>
    %cst_159 = arith.constant dense<0.000000e+00> : vector<16x32xf32>
    %328 = tpu.matmul %325, %327, %cst_159 {dimension_numbers = #tpu.dot_dimension_numbers<[1], [0], [0], [1], [0, 0, 1, 1], [], []>} : vector<16x64xf32>, vector<64x32xf32>, vector<16x32xf32> -> vector<16x32xf32>
    %c0_160 = arith.constant 0 : index
    %c1_161 = arith.constant 1 : index
    %c0_162 = arith.constant 0 : index
    %c0_163 = arith.constant 0 : index
    %329 = vector.load %arg15[%c0_160, %c1_161, %c0_162, %c0_163] : memref<1x2x1x32xf32, #tpu.memory_space<vmem>>, vector<1x1x1x32xf32>
    %330 = vector.shape_cast %329 : vector<1x1x1x32xf32> to vector<1x32xf32>
    %331 = vector.broadcast %330 : vector<1x32xf32> to vector<16x32xf32>
    %332 = arith.addf %328, %331 : vector<16x32xf32>
    %333 = arith.addf %316, %332 : vector<16x32xf32>
    %c0_164 = arith.constant 0 : index
    %c1_165 = arith.constant 1 : index
    %c0_166 = arith.constant 0 : index
    %c0_167 = arith.constant 0 : index
    %334 = vector.load %arg16[%c0_164, %c1_165, %c0_166, %c0_167] : memref<1x2x1x32xf32, #tpu.memory_space<vmem>>, vector<1x1x1x32xf32>
    %335 = vector.shape_cast %334 : vector<1x1x1x32xf32> to vector<1x32xf32>
    %c0_168 = arith.constant 0 : index
    %c1_169 = arith.constant 1 : index
    %c0_170 = arith.constant 0 : index
    %c0_171 = arith.constant 0 : index
    %336 = vector.load %arg17[%c0_168, %c1_169, %c0_170, %c0_171] : memref<1x2x1x32xf32, #tpu.memory_space<vmem>>, vector<1x1x1x32xf32>
    %337 = vector.shape_cast %336 : vector<1x1x1x32xf32> to vector<1x32xf32>
    %cst_172 = arith.constant dense<0.000000e+00> : vector<16xf32>
    %338 = vector.multi_reduction <add>, %333, %cst_172 [1] : vector<16x32xf32> to vector<16xf32>
    %339 = vector.shape_cast %338 : vector<16xf32> to vector<16x1xf32>
    %cst_173 = arith.constant 3.200000e+01 : f32
    %340 = vector.broadcast %cst_173 : f32 to vector<16x1xf32>
    %341 = arith.divf %339, %340 : vector<16x1xf32>
    %342 = vector.broadcast %341 : vector<16x1xf32> to vector<16x32xf32>
    %343 = arith.subf %333, %342 : vector<16x32xf32>
    %344 = arith.mulf %343, %343 : vector<16x32xf32>
    %cst_174 = arith.constant dense<0.000000e+00> : vector<16xf32>
    %345 = vector.multi_reduction <add>, %344, %cst_174 [1] : vector<16x32xf32> to vector<16xf32>
    %346 = vector.shape_cast %345 : vector<16xf32> to vector<16x1xf32>
    %cst_175 = arith.constant 3.200000e+01 : f32
    %347 = vector.broadcast %cst_175 : f32 to vector<16x1xf32>
    %348 = arith.divf %346, %347 : vector<16x1xf32>
    %349 = vector.broadcast %341 : vector<16x1xf32> to vector<16x32xf32>
    %350 = arith.subf %333, %349 : vector<16x32xf32>
    %cst_176 = arith.constant 9.99999974E-6 : f32
    %351 = vector.broadcast %cst_176 : f32 to vector<16x1xf32>
    %352 = arith.addf %348, %351 : vector<16x1xf32>
    %353 = math.rsqrt %352 : vector<16x1xf32>
    %354 = vector.broadcast %353 : vector<16x1xf32> to vector<16x32xf32>
    %355 = arith.mulf %350, %354 : vector<16x32xf32>
    %356 = vector.broadcast %335 : vector<1x32xf32> to vector<16x32xf32>
    %357 = arith.mulf %355, %356 : vector<16x32xf32>
    %358 = vector.broadcast %337 : vector<1x32xf32> to vector<16x32xf32>
    %359 = arith.addf %357, %358 : vector<16x32xf32>
    %c0_177 = arith.constant 0 : index
    %c0_178 = arith.constant 0 : index
    %c0_179 = arith.constant 0 : index
    %360 = vector.load %arg2[%c0_177, %c0_178, %c0_179] : memref<1x16x1xf32, #tpu.memory_space<vmem>>, vector<1x16x1xf32>
    %361 = vector.shape_cast %360 : vector<1x16x1xf32> to vector<16x1xf32>
    %362 = vector.broadcast %361 : vector<16x1xf32> to vector<16x32xf32>
    %363 = arith.mulf %359, %362 : vector<16x32xf32>
    %c0_180 = arith.constant 0 : index
    %c0_181 = arith.constant 0 : index
    %c0_182 = arith.constant 0 : index
    %364 = vector.load %arg18[%c0_180, %c0_181, %c0_182] : memref<1x16x32xf32, #tpu.memory_space<vmem>>, vector<1x16x32xf32>
    %365 = vector.shape_cast %364 : vector<1x16x32xf32> to vector<16x32xf32>
    %366 = vector.shape_cast %363 : vector<16x32xf32> to vector<1x16x32xf32>
    tpu.vector_store %arg18[%c0_180, %c0_181, %c0_182], %366 {strides = array<i32>} : memref<1x16x32xf32, #tpu.memory_space<vmem>>, vector<1x16x32xf32>,
    return
  }
  func.func @transform_0(%arg0: i32) -> (i32, i32, i32) {
    %c0_i32 = arith.constant 0 : i32
    %c0_i32_0 = arith.constant 0 : i32
    %c0_i32_1 = arith.constant 0 : i32
    return %arg0, %c0_i32, %c0_i32_0 : i32, i32, i32
  }
  func.func @transform_1(%arg0: i32) -> (i32, i32, i32) {
    %c0_i32 = arith.constant 0 : i32
    %c0_i32_0 = arith.constant 0 : i32
    %c0_i32_1 = arith.constant 0 : i32
    return %arg0, %c0_i32, %c0_i32_0 : i32, i32, i32
  }
  func.func @transform_2(%arg0: i32) -> (i32, i32, i32, i32) {
    %c0_i32 = arith.constant 0 : i32
    %c0_i32_0 = arith.constant 0 : i32
    %c0_i32_1 = arith.constant 0 : i32
    %c0_i32_2 = arith.constant 0 : i32
    %c0_i32_3 = arith.constant 0 : i32
    return %c0_i32, %c0_i32_0, %c0_i32_1, %c0_i32_2 : i32, i32, i32, i32
  }
  func.func @transform_3(%arg0: i32) -> (i32, i32) {
    %c0_i32 = arith.constant 0 : i32
    %c0_i32_0 = arith.constant 0 : i32
    %c0_i32_1 = arith.constant 0 : i32
    return %c0_i32, %c0_i32_0 : i32, i32
  }
  func.func @transform_4(%arg0: i32) -> (i32, i32) {
    %c0_i32 = arith.constant 0 : i32
    %c0_i32_0 = arith.constant 0 : i32
    %c0_i32_1 = arith.constant 0 : i32
    return %c0_i32, %c0_i32_0 : i32, i32
  }
  func.func @transform_5(%arg0: i32) -> (i32, i32, i32, i32) {
    %c0_i32 = arith.constant 0 : i32
    %c0_i32_0 = arith.constant 0 : i32
    %c0_i32_1 = arith.constant 0 : i32
    %c0_i32_2 = arith.constant 0 : i32
    return %arg0, %c0_i32, %c0_i32_0, %c0_i32_1 : i32, i32, i32, i32
  }
  func.func @transform_6(%arg0: i32) -> (i32, i32, i32, i32) {
    %c0_i32 = arith.constant 0 : i32
    %c0_i32_0 = arith.constant 0 : i32
    %c0_i32_1 = arith.constant 0 : i32
    %c0_i32_2 = arith.constant 0 : i32
    return %arg0, %c0_i32, %c0_i32_0, %c0_i32_1 : i32, i32, i32, i32
  }
  func.func @transform_7(%arg0: i32) -> (i32, i32, i32, i32) {
    %c0_i32 = arith.constant 0 : i32
    %c0_i32_0 = arith.constant 0 : i32
    %c0_i32_1 = arith.constant 0 : i32
    %c0_i32_2 = arith.constant 0 : i32
    return %arg0, %c0_i32, %c0_i32_0, %c0_i32_1 : i32, i32, i32, i32
  }
  func.func @transform_8(%arg0: i32) -> (i32, i32, i32, i32) {
    %c0_i32 = arith.constant 0 : i32
    %c0_i32_0 = arith.constant 0 : i32
    %c0_i32_1 = arith.constant 0 : i32
    %c0_i32_2 = arith.constant 0 : i32
    return %arg0, %c0_i32, %c0_i32_0, %c0_i32_1 : i32, i32, i32, i32
  }
  func.func @transform_9(%arg0: i32) -> (i32, i32, i32, i32) {
    %c0_i32 = arith.constant 0 : i32
    %c0_i32_0 = arith.constant 0 : i32
    %c0_i32_1 = arith.constant 0 : i32
    %c0_i32_2 = arith.constant 0 : i32
    return %arg0, %c0_i32, %c0_i32_0, %c0_i32_1 : i32, i32, i32, i32
  }
  func.func @transform_10(%arg0: i32) -> (i32, i32, i32, i32) {
    %c0_i32 = arith.constant 0 : i32
    %c0_i32_0 = arith.constant 0 : i32
    %c0_i32_1 = arith.constant 0 : i32
    %c0_i32_2 = arith.constant 0 : i32
    return %arg0, %c0_i32, %c0_i32_0, %c0_i32_1 : i32, i32, i32, i32
  }
  func.func @transform_11(%arg0: i32) -> (i32, i32, i32, i32) {
    %c0_i32 = arith.constant 0 : i32
    %c0_i32_0 = arith.constant 0 : i32
    %c0_i32_1 = arith.constant 0 : i32
    %c0_i32_2 = arith.constant 0 : i32
    return %arg0, %c0_i32, %c0_i32_0, %c0_i32_1 : i32, i32, i32, i32
  }
  func.func @transform_12(%arg0: i32) -> (i32, i32, i32, i32) {
    %c0_i32 = arith.constant 0 : i32
    %c0_i32_0 = arith.constant 0 : i32
    %c0_i32_1 = arith.constant 0 : i32
    %c0_i32_2 = arith.constant 0 : i32
    return %arg0, %c0_i32, %c0_i32_0, %c0_i32_1 : i32, i32, i32, i32
  }
  func.func @transform_13(%arg0: i32) -> (i32, i32, i32, i32) {
    %c0_i32 = arith.constant 0 : i32
    %c0_i32_0 = arith.constant 0 : i32
    %c0_i32_1 = arith.constant 0 : i32
    %c0_i32_2 = arith.constant 0 : i32
    return %arg0, %c0_i32, %c0_i32_0, %c0_i32_1 : i32, i32, i32, i32
  }
  func.func @transform_14(%arg0: i32) -> (i32, i32, i32, i32) {
    %c0_i32 = arith.constant 0 : i32
    %c0_i32_0 = arith.constant 0 : i32
    %c0_i32_1 = arith.constant 0 : i32
    %c0_i32_2 = arith.constant 0 : i32
    return %arg0, %c0_i32, %c0_i32_0, %c0_i32_1 : i32, i32, i32, i32
  }
  func.func @transform_15(%arg0: i32) -> (i32, i32, i32, i32) {
    %c0_i32 = arith.constant 0 : i32
    %c0_i32_0 = arith.constant 0 : i32
    %c0_i32_1 = arith.constant 0 : i32
    %c0_i32_2 = arith.constant 0 : i32
    return %arg0, %c0_i32, %c0_i32_0, %c0_i32_1 : i32, i32, i32, i32
  }
  func.func @transform_16(%arg0: i32) -> (i32, i32, i32, i32) {
    %c0_i32 = arith.constant 0 : i32
    %c0_i32_0 = arith.constant 0 : i32
    %c0_i32_1 = arith.constant 0 : i32
    %c0_i32_2 = arith.constant 0 : i32
    return %arg0, %c0_i32, %c0_i32_0, %c0_i32_1 : i32, i32, i32, i32
  }
  func.func @transform_17(%arg0: i32) -> (i32, i32, i32) {
    %c0_i32 = arith.constant 0 : i32
    %c0_i32_0 = arith.constant 0 : i32
    %c0_i32_1 = arith.constant 0 : i32
    return %arg0, %c0_i32, %c0_i32_0 : i32, i32, i32
  }
}

</mosaic_0001>

<llo_original>
// kernel: sees_encoder_forward.1
$region0: #{sees_encoder_forward.1}
  #allocation0 [shape = 'u32[]', space=smem, size = 0x4, offset = 0x4, fixed_abs, tag = 'smem constant byte address 0x4 - core index']
  #allocation1 [shape = 'u32[72,128]{1,0:T(1,128)}', space=vmem, size = 0x9000, scoped, tag = 'internal scratch']
  %s0 = inlined_call_operand.vmem [shape: f32[2,16,4], index: 0, kind: input, shape index: {}]
  %s1 = inlined_call_operand.vmem [shape: f32[2,16,1], index: 1, kind: input, shape index: {}]
  %s2 = inlined_call_operand.vmem [shape: f32[4,1,1,32], index: 2, kind: input, shape index: {}]
  %s3 = inlined_call_operand.vmem [shape: f32[4,32], index: 3, kind: input, shape index: {}]
  %s4 = inlined_call_operand.vmem [shape: f32[1,32], index: 4, kind: input, shape index: {}]
  %s5 = inlined_call_operand.vmem [shape: f32[2,2,32,96], index: 5, kind: input, shape index: {}]
  %s6 = inlined_call_operand.vmem [shape: f32[2,2,1,96], index: 6, kind: input, shape index: {}]
  %s7 = inlined_call_operand.vmem [shape: f32[2,2,32,32], index: 7, kind: input, shape index: {}]
  %s8 = inlined_call_operand.vmem [shape: f32[2,2,1,32], index: 8, kind: input, shape index: {}]
  %s9 = inlined_call_operand.vmem [shape: f32[2,2,1,32], index: 9, kind: input, shape index: {}]
  %s10 = inlined_call_operand.vmem [shape: f32[2,2,1,32], index: 10, kind: input, shape index: {}]
  %s11 = inlined_call_operand.vmem [shape: f32[2,2,32,64], index: 11, kind: input, shape index: {}]
  %s12 = inlined_call_operand.vmem [shape: f32[2,2,1,64], index: 12, kind: input, shape index: {}]
  %s13 = inlined_call_operand.vmem [shape: f32[2,2,64,32], index: 13, kind: input, shape index: {}]
  %s14 = inlined_call_operand.vmem [shape: f32[2,2,1,32], index: 14, kind: input, shape index: {}]
  %s15 = inlined_call_operand.vmem [shape: f32[2,2,1,32], index: 15, kind: input, shape index: {}]
  %s16 = inlined_call_operand.vmem [shape: f32[2,2,1,32], index: 16, kind: input, shape index: {}]
  %s17 = inlined_call_operand.vmem [shape: f32[2,16,32], index: 17, kind: output, shape index: {}]
  %s18 = sld [smem:[#allocation0]]
  $region101: #{sees_encoder_forward.1} parent=0
    _
  %s20 = ssub.s32 1, %s18
  %s21 = scalar_select 0, %s20, %s18
  loop: start=0, step=1, limit=4
  $region2: #{sees_encoder_forward.1} parent=0 // loop_pre_header
    _
  $region3: #{sees_encoder_forward.1} parent=0 // loop_header
    %s23 = sphi 0, %s27
    %p24 = scmp.ge.s32.totalorder %s23, 4
    %s33 = sphi 0, %s35
    %s36 = sphi 0, %s33
    %s37 = sphi 0, %s36
    %s53 = sphi 0, %s37
    %s59 = sphi 0, %s61
    %s62 = sphi 0, %s59
    %s63 = sphi 0, %s62
    %s79 = sphi 0, %s63
    %s83 = sphi 0, %s83
    %s85 = sphi 0, %s83
    %s86 = sphi 0, %s85
    %s100 = sphi 0, %s86
    %s104 = sphi 0, %s104
    %s106 = sphi 0, %s104
    %s107 = sphi 0, %s106
    %s121 = sphi 0, %s107
    %s125 = sphi 0, %s125
    %s127 = sphi 0, %s125
    %s128 = sphi 0, %s127
    %s142 = sphi 0, %s128
    %s148 = sphi 0, %s150
    %s151 = sphi 0, %s148
    %s152 = sphi 0, %s151
    %s168 = sphi 0, %s152
    %s174 = sphi 0, %s176
    %s177 = sphi 0, %s174
    %s178 = sphi 0, %s177
    %s194 = sphi 0, %s178
    %s200 = sphi 0, %s202
    %s203 = sphi 0, %s200
    %s204 = sphi 0, %s203
    %s220 = sphi 0, %s204
    %s226 = sphi 0, %s228
    %s229 = sphi 0, %s226
    %s230 = sphi 0, %s229
    %s246 = sphi 0, %s230
    %s252 = sphi 0, %s254
    %s255 = sphi 0, %s252
    %s256 = sphi 0, %s255
    %s272 = sphi 0, %s256
    %s278 = sphi 0, %s280
    %s281 = sphi 0, %s278
    %s282 = sphi 0, %s281
    %s298 = sphi 0, %s282
    %s304 = sphi 0, %s306
    %s307 = sphi 0, %s304
    %s308 = sphi 0, %s307
    %s324 = sphi 0, %s308
    %s330 = sphi 0, %s332
    %s333 = sphi 0, %s330
    %s334 = sphi 0, %s333
    %s350 = sphi 0, %s334
    %s356 = sphi 0, %s358
    %s359 = sphi 0, %s356
    %s360 = sphi 0, %s359
    %s376 = sphi 0, %s360
    %s382 = sphi 0, %s384
    %s385 = sphi 0, %s382
    %s386 = sphi 0, %s385
    %s402 = sphi 0, %s386
    %s408 = sphi 0, %s410
    %s411 = sphi 0, %s408
    %s412 = sphi 0, %s411
    %s428 = sphi 0, %s412
    %s434 = sphi 0, %s436
    %s437 = sphi 0, %s434
    %s438 = sphi 0, %s437
    %s454 = sphi 0, %s438
    %s460 = sphi 0, %s462
    %s463 = sphi 0, %s460
    %s464 = sphi 0, %s463
    %s480 = sphi 0, %s464
  $region4: #{sees_encoder_forward.1} parent=0 // loop_header_branch
    %26 = sbr.rel (%p24) target = $region8
  $region5: #{sees_encoder_forward.1} parent=0 // loop_body
    %s28 = ssub.s32 %s23, 1
    %s29 = ssub.s32 %s23, 2
    %s30 = sadd.s32 %s23, 1
    %s31 = ssub.s32 %s23, %s30
    %p32 = scmp.eq.s32.totalorder %s31, 0
    %s34 = sadd.s32 %s33, 1
    %s35 = scalar_select %p32, %s33, %s34
    %p38 = pneg %p32
    %p39 = scmp.eq.s32.totalorder %s23, 1
    %p40 = por %p38, %p39
    %p41 = scmp.ne.s32.totalorder %s33, %s36
    %p42 = scmp.eq.s32.totalorder %s23, 0
    %p43 = por %p41, %p42
    %p44 = scmp.ne.s32.totalorder %s33, %s36
    %p45 = scmp.eq.s32.totalorder %s28, 1
    %p46 = por %p44, %p45
    %p47 = scmp.ne.s32.totalorder %s36, %s37
    %p48 = scmp.eq.s32.totalorder %s28, 0
    %p49 = por %p47, %p48
    %p50 = scmp.ne.s32.totalorder %s36, %s37
    %p51 = scmp.eq.s32.totalorder %s29, 1
    %p52 = por %p50, %p51
    %p54 = scmp.ne.s32.totalorder %s37, %s53
    %p55 = scmp.eq.s32.totalorder %s29, 0
    %p56 = por %p54, %p55
    %s57 = ssub.s32 %s23, %s30
    %p58 = scmp.eq.s32.totalorder %s57, 0
    %s60 = sadd.s32 %s59, 1
    %s61 = scalar_select %p58, %s59, %s60
    %p64 = pneg %p58
    %p65 = scmp.eq.s32.totalorder %s23, 1
    %p66 = por %p64, %p65
    %p67 = scmp.ne.s32.totalorder %s59, %s62
    %p68 = scmp.eq.s32.totalorder %s23, 0
    %p69 = por %p67, %p68
    %p70 = scmp.ne.s32.totalorder %s59, %s62
    %p71 = scmp.eq.s32.totalorder %s28, 1
    %p72 = por %p70, %p71
    %p73 = scmp.ne.s32.totalorder %s62, %s63
    %p74 = scmp.eq.s32.totalorder %s28, 0
    %p75 = por %p73, %p74
    %p76 = scmp.ne.s32.totalorder %s62, %s63
    %p77 = scmp.eq.s32.totalorder %s29, 1
    %p78 = por %p76, %p77
    %p80 = scmp.ne.s32.totalorder %s63, %s79
    %p81 = scmp.eq.s32.totalorder %s29, 0
    %p82 = por %p80, %p81
    %s84 = sadd.s32 %s83, 1
    %p87 = scmp.eq.s32.totalorder %s23, 1
    %p88 = scmp.ne.s32.totalorder %s83, %s85
    %p89 = scmp.eq.s32.totalorder %s23, 0
    %p90 = por %p88, %p89
    %p91 = scmp.ne.s32.totalorder %s83, %s85
    %p92 = scmp.eq.s32.totalorder %s28, 1
    %p93 = por %p91, %p92
    %p94 = scmp.ne.s32.totalorder %s85, %s86
    %p95 = scmp.eq.s32.totalorder %s28, 0
    %p96 = por %p94, %p95
    %p97 = scmp.ne.s32.totalorder %s85, %s86
    %p98 = scmp.eq.s32.totalorder %s29, 1
    %p99 = por %p97, %p98
    %p101 = scmp.ne.s32.totalorder %s86, %s100
    %p102 = scmp.eq.s32.totalorder %s29, 0
    %p103 = por %p101, %p102
    %s105 = sadd.s32 %s104, 1
    %p108 = scmp.eq.s32.totalorder %s23, 1
    %p109 = scmp.ne.s32.totalorder %s104, %s106
    %p110 = scmp.eq.s32.totalorder %s23, 0
    %p111 = por %p109, %p110
    %p112 = scmp.ne.s32.totalorder %s104, %s106
    %p113 = scmp.eq.s32.totalorder %s28, 1
    %p114 = por %p112, %p113
    %p115 = scmp.ne.s32.totalorder %s106, %s107
    %p116 = scmp.eq.s32.totalorder %s28, 0
    %p117 = por %p115, %p116
    %p118 = scmp.ne.s32.totalorder %s106, %s107
    %p119 = scmp.eq.s32.totalorder %s29, 1
    %p120 = por %p118, %p119
    %p122 = scmp.ne.s32.totalorder %s107, %s121
    %p123 = scmp.eq.s32.totalorder %s29, 0
    %p124 = por %p122, %p123
    %s126 = sadd.s32 %s125, 1
    %p129 = scmp.eq.s32.totalorder %s23, 1
    %p130 = scmp.ne.s32.totalorder %s125, %s127
    %p131 = scmp.eq.s32.totalorder %s23, 0
    %p132 = por %p130, %p131
    %p133 = scmp.ne.s32.totalorder %s125, %s127
    %p134 = scmp.eq.s32.totalorder %s28, 1
    %p135 = por %p133, %p134
    %p136 = scmp.ne.s32.totalorder %s127, %s128
    %p137 = scmp.eq.s32.totalorder %s28, 0
    %p138 = por %p136, %p137
    %p139 = scmp.ne.s32.totalorder %s127, %s128
    %p140 = scmp.eq.s32.totalorder %s29, 1
    %p141 = por %p139, %p140
    %p143 = scmp.ne.s32.totalorder %s128, %s142
    %p144 = scmp.eq.s32.totalorder %s29, 0
    %p145 = por %p143, %p144
    %s146 = ssub.s32 %s23, %s30
    %p147 = scmp.eq.s32.totalorder %s146, 0
    %s149 = sadd.s32 %s148, 1
    %s150 = scalar_select %p147, %s148, %s149
    %p153 = pneg %p147
    %p154 = scmp.eq.s32.totalorder %s23, 1
    %p155 = por %p153, %p154
    %p156 = scmp.ne.s32.totalorder %s148, %s151
    %p157 = scmp.eq.s32.totalorder %s23, 0
    %p158 = por %p156, %p157
    %p159 = scmp.ne.s32.totalorder %s148, %s151
    %p160 = scmp.eq.s32.totalorder %s28, 1
    %p161 = por %p159, %p160
    %p162 = scmp.ne.s32.totalorder %s151, %s152
    %p163 = scmp.eq.s32.totalorder %s28, 0
    %p164 = por %p162, %p163
    %p165 = scmp.ne.s32.totalorder %s151, %s152
    %p166 = scmp.eq.s32.totalorder %s29, 1
    %p167 = por %p165, %p166
    %p169 = scmp.ne.s32.totalorder %s152, %s168
    %p170 = scmp.eq.s32.totalorder %s29, 0
    %p171 = por %p169, %p170
    %s172 = ssub.s32 %s23, %s30
    %p173 = scmp.eq.s32.totalorder %s172, 0
    %s175 = sadd.s32 %s174, 1
    %s176 = scalar_select %p173, %s174, %s175
    %p179 = pneg %p173
    %p180 = scmp.eq.s32.totalorder %s23, 1
    %p181 = por %p179, %p180
    %p182 = scmp.ne.s32.totalorder %s174, %s177
    %p183 = scmp.eq.s32.totalorder %s23, 0
    %p184 = por %p182, %p183
    %p185 = scmp.ne.s32.totalorder %s174, %s177
    %p186 = scmp.eq.s32.totalorder %s28, 1
    %p187 = por %p185, %p186
    %p188 = scmp.ne.s32.totalorder %s177, %s178
    %p189 = scmp.eq.s32.totalorder %s28, 0
    %p190 = por %p188, %p189
    %p191 = scmp.ne.s32.totalorder %s177, %s178
    %p192 = scmp.eq.s32.totalorder %s29, 1
    %p193 = por %p191, %p192
    %p195 = scmp.ne.s32.totalorder %s178, %s194
    %p196 = scmp.eq.s32.totalorder %s29, 0
    %p197 = por %p195, %p196
    %s198 = ssub.s32 %s23, %s30
    %p199 = scmp.eq.s32.totalorder %s198, 0
    %s201 = sadd.s32 %s200, 1
    %s202 = scalar_select %p199, %s200, %s201
    %p205 = pneg %p199
    %p206 = scmp.eq.s32.totalorder %s23, 1
    %p207 = por %p205, %p206
    %p208 = scmp.ne.s32.totalorder %s200, %s203
    %p209 = scmp.eq.s32.totalorder %s23, 0
    %p210 = por %p208, %p209
    %p211 = scmp.ne.s32.totalorder %s200, %s203
    %p212 = scmp.eq.s32.totalorder %s28, 1
    %p213 = por %p211, %p212
    %p214 = scmp.ne.s32.totalorder %s203, %s204
    %p215 = scmp.eq.s32.totalorder %s28, 0
    %p216 = por %p214, %p215
    %p217 = scmp.ne.s32.totalorder %s203, %s204
    %p218 = scmp.eq.s32.totalorder %s29, 1
    %p219 = por %p217, %p218
    %p221 = scmp.ne.s32.totalorder %s204, %s220
    %p222 = scmp.eq.s32.totalorder %s29, 0
    %p223 = por %p221, %p222
    %s224 = ssub.s32 %s23, %s30
    %p225 = scmp.eq.s32.totalorder %s224, 0
    %s227 = sadd.s32 %s226, 1
    %s228 = scalar_select %p225, %s226, %s227
    %p231 = pneg %p225
    %p232 = scmp.eq.s32.totalorder %s23, 1
    %p233 = por %p231, %p232
    %p234 = scmp.ne.s32.totalorder %s226, %s229
    %p235 = scmp.eq.s32.totalorder %s23, 0
    %p236 = por %p234, %p235
    %p237 = scmp.ne.s32.totalorder %s226, %s229
    %p238 = scmp.eq.s32.totalorder %s28, 1
    %p239 = por %p237, %p238
    %p240 = scmp.ne.s32.totalorder %s229, %s230
    %p241 = scmp.eq.s32.totalorder %s28, 0
    %p242 = por %p240, %p241
    %p243 = scmp.ne.s32.totalorder %s229, %s230
    %p244 = scmp.eq.s32.totalorder %s29, 1
    %p245 = por %p243, %p244
    %p247 = scmp.ne.s32.totalorder %s230, %s246
    %p248 = scmp.eq.s32.totalorder %s29, 0
    %p249 = por %p247, %p248
    %s250 = ssub.s32 %s23, %s30
    %p251 = scmp.eq.s32.totalorder %s250, 0
    %s253 = sadd.s32 %s252, 1
    %s254 = scalar_select %p251, %s252, %s253
    %p257 = pneg %p251
    %p258 = scmp.eq.s32.totalorder %s23, 1
    %p259 = por %p257, %p258
    %p260 = scmp.ne.s32.totalorder %s252, %s255
    %p261 = scmp.eq.s32.totalorder %s23, 0
    %p262 = por %p260, %p261
    %p263 = scmp.ne.s32.totalorder %s252, %s255
    %p264 = scmp.eq.s32.totalorder %s28, 1
    %p265 = por %p263, %p264
    %p266 = scmp.ne.s32.totalorder %s255, %s256
    %p267 = scmp.eq.s32.totalorder %s28, 0
    %p268 = por %p266, %p267
    %p269 = scmp.ne.s32.totalorder %s255, %s256
    %p270 = scmp.eq.s32.totalorder %s29, 1
    %p271 = por %p269, %p270
    %p273 = scmp.ne.s32.totalorder %s256, %s272
    %p274 = scmp.eq.s32.totalorder %s29, 0
    %p275 = por %p273, %p274
    %s276 = ssub.s32 %s23, %s30
    %p277 = scmp.eq.s32.totalorder %s276, 0
    %s279 = sadd.s32 %s278, 1
    %s280 = scalar_select %p277, %s278, %s279
    %p283 = pneg %p277
    %p284 = scmp.eq.s32.totalorder %s23, 1
    %p285 = por %p283, %p284
    %p286 = scmp.ne.s32.totalorder %s278, %s281
    %p287 = scmp.eq.s32.totalorder %s23, 0
    %p288 = por %p286, %p287
    %p289 = scmp.ne.s32.totalorder %s278, %s281
    %p290 = scmp.eq.s32.totalorder %s28, 1
    %p291 = por %p289, %p290
    %p292 = scmp.ne.s32.totalorder %s281, %s282
    %p293 = scmp.eq.s32.totalorder %s28, 0
    %p294 = por %p292, %p293
    %p295 = scmp.ne.s32.totalorder %s281, %s282
    %p296 = scmp.eq.s32.totalorder %s29, 1
    %p297 = por %p295, %p296
    %p299 = scmp.ne.s32.totalorder %s282, %s298
    %p300 = scmp.eq.s32.totalorder %s29, 0
    %p301 = por %p299, %p300
    %s302 = ssub.s32 %s23, %s30
    %p303 = scmp.eq.s32.totalorder %s302, 0
    %s305 = sadd.s32 %s304, 1
    %s306 = scalar_select %p303, %s304, %s305
    %p309 = pneg %p303
    %p310 = scmp.eq.s32.totalorder %s23, 1
    %p311 = por %p309, %p310
    %p312 = scmp.ne.s32.totalorder %s304, %s307
    %p313 = scmp.eq.s32.totalorder %s23, 0
    %p314 = por %p312, %p313
    %p315 = scmp.ne.s32.totalorder %s304, %s307
    %p316 = scmp.eq.s32.totalorder %s28, 1
    %p317 = por %p315, %p316
    %p318 = scmp.ne.s32.totalorder %s307, %s308
    %p319 = scmp.eq.s32.totalorder %s28, 0
    %p320 = por %p318, %p319
    %p321 = scmp.ne.s32.totalorder %s307, %s308
    %p322 = scmp.eq.s32.totalorder %s29, 1
    %p323 = por %p321, %p322
    %p325 = scmp.ne.s32.totalorder %s308, %s324
    %p326 = scmp.eq.s32.totalorder %s29, 0
    %p327 = por %p325, %p326
    %s328 = ssub.s32 %s23, %s30
    %p329 = scmp.eq.s32.totalorder %s328, 0
    %s331 = sadd.s32 %s330, 1
    %s332 = scalar_select %p329, %s330, %s331
    %p335 = pneg %p329
    %p336 = scmp.eq.s32.totalorder %s23, 1
    %p337 = por %p335, %p336
    %p338 = scmp.ne.s32.totalorder %s330, %s333
    %p339 = scmp.eq.s32.totalorder %s23, 0
    %p340 = por %p338, %p339
    %p341 = scmp.ne.s32.totalorder %s330, %s333
    %p342 = scmp.eq.s32.totalorder %s28, 1
    %p343 = por %p341, %p342
    %p344 = scmp.ne.s32.totalorder %s333, %s334
    %p345 = scmp.eq.s32.totalorder %s28, 0
    %p346 = por %p344, %p345
    %p347 = scmp.ne.s32.totalorder %s333, %s334
    %p348 = scmp.eq.s32.totalorder %s29, 1
    %p349 = por %p347, %p348
    %p351 = scmp.ne.s32.totalorder %s334, %s350
    %p352 = scmp.eq.s32.totalorder %s29, 0
    %p353 = por %p351, %p352
    %s354 = ssub.s32 %s23, %s30
    %p355 = scmp.eq.s32.totalorder %s354, 0
    %s357 = sadd.s32 %s356, 1
    %s358 = scalar_select %p355, %s356, %s357
    %p361 = pneg %p355
    %p362 = scmp.eq.s32.totalorder %s23, 1
    %p363 = por %p361, %p362
    %p364 = scmp.ne.s32.totalorder %s356, %s359
    %p365 = scmp.eq.s32.totalorder %s23, 0
    %p366 = por %p364, %p365
    %p367 = scmp.ne.s32.totalorder %s356, %s359
    %p368 = scmp.eq.s32.totalorder %s28, 1
    %p369 = por %p367, %p368
    %p370 = scmp.ne.s32.totalorder %s359, %s360
    %p371 = scmp.eq.s32.totalorder %s28, 0
    %p372 = por %p370, %p371
    %p373 = scmp.ne.s32.totalorder %s359, %s360
    %p374 = scmp.eq.s32.totalorder %s29, 1
    %p375 = por %p373, %p374
    %p377 = scmp.ne.s32.totalorder %s360, %s376
    %p378 = scmp.eq.s32.totalorder %s29, 0
    %p379 = por %p377, %p378
    %s380 = ssub.s32 %s23, %s30
    %p381 = scmp.eq.s32.totalorder %s380, 0
    %s383 = sadd.s32 %s382, 1
    %s384 = scalar_select %p381, %s382, %s383
    %p387 = pneg %p381
    %p388 = scmp.eq.s32.totalorder %s23, 1
    %p389 = por %p387, %p388
    %p390 = scmp.ne.s32.totalorder %s382, %s385
    %p391 = scmp.eq.s32.totalorder %s23, 0
    %p392 = por %p390, %p391
    %p393 = scmp.ne.s32.totalorder %s382, %s385
    %p394 = scmp.eq.s32.totalorder %s28, 1
    %p395 = por %p393, %p394
    %p396 = scmp.ne.s32.totalorder %s385, %s386
    %p397 = scmp.eq.s32.totalorder %s28, 0
    %p398 = por %p396, %p397
    %p399 = scmp.ne.s32.totalorder %s385, %s386
    %p400 = scmp.eq.s32.totalorder %s29, 1
    %p401 = por %p399, %p400
    %p403 = scmp.ne.s32.totalorder %s386, %s402
    %p404 = scmp.eq.s32.totalorder %s29, 0
    %p405 = por %p403, %p404
    %s406 = ssub.s32 %s23, %s30
    %p407 = scmp.eq.s32.totalorder %s406, 0
    %s409 = sadd.s32 %s408, 1
    %s410 = scalar_select %p407, %s408, %s409
    %p413 = pneg %p407
    %p414 = scmp.eq.s32.totalorder %s23, 1
    %p415 = por %p413, %p414
    %p416 = scmp.ne.s32.totalorder %s408, %s411
    %p417 = scmp.eq.s32.totalorder %s23, 0
    %p418 = por %p416, %p417
    %p419 = scmp.ne.s32.totalorder %s408, %s411
    %p420 = scmp.eq.s32.totalorder %s28, 1
    %p421 = por %p419, %p420
    %p422 = scmp.ne.s32.totalorder %s411, %s412
    %p423 = scmp.eq.s32.totalorder %s28, 0
    %p424 = por %p422, %p423
    %p425 = scmp.ne.s32.totalorder %s411, %s412
    %p426 = scmp.eq.s32.totalorder %s29, 1
    %p427 = por %p425, %p426
    %p429 = scmp.ne.s32.totalorder %s412, %s428
    %p430 = scmp.eq.s32.totalorder %s29, 0
    %p431 = por %p429, %p430
    %s432 = ssub.s32 %s23, %s30
    %p433 = scmp.eq.s32.totalorder %s432, 0
    %s435 = sadd.s32 %s434, 1
    %s436 = scalar_select %p433, %s434, %s435
    %p439 = pneg %p433
    %p440 = scmp.eq.s32.totalorder %s23, 1
    %p441 = por %p439, %p440
    %p442 = scmp.ne.s32.totalorder %s434, %s437
    %p443 = scmp.eq.s32.totalorder %s23, 0
    %p444 = por %p442, %p443
    %p445 = scmp.ne.s32.totalorder %s434, %s437
    %p446 = scmp.eq.s32.totalorder %s28, 1
    %p447 = por %p445, %p446
    %p448 = scmp.ne.s32.totalorder %s437, %s438
    %p449 = scmp.eq.s32.totalorder %s28, 0
    %p450 = por %p448, %p449
    %p451 = scmp.ne.s32.totalorder %s437, %s438
    %p452 = scmp.eq.s32.totalorder %s29, 1
    %p453 = por %p451, %p452
    %p455 = scmp.ne.s32.totalorder %s438, %s454
    %p456 = scmp.eq.s32.totalorder %s29, 0
    %p457 = por %p455, %p456
    %s458 = ssub.s32 %s23, %s30
    %p459 = scmp.eq.s32.totalorder %s458, 0
    %s461 = sadd.s32 %s460, 1
    %s462 = scalar_select %p459, %s460, %s461
    %p465 = pneg %p459
    %p466 = scmp.eq.s32.totalorder %s23, 1
    %p467 = por %p465, %p466
    %p468 = scmp.ne.s32.totalorder %s460, %s463
    %p469 = scmp.eq.s32.totalorder %s23, 0
    %p470 = por %p468, %p469
    %p471 = scmp.ne.s32.totalorder %s460, %s463
    %p472 = scmp.eq.s32.totalorder %s28, 1
    %p473 = por %p471, %p472
    %p474 = scmp.ne.s32.totalorder %s463, %s464
    %p475 = scmp.eq.s32.totalorder %s28, 0
    %p476 = por %p474, %p475
    %p477 = scmp.ne.s32.totalorder %s463, %s464
    %p478 = scmp.eq.s32.totalorder %s29, 1
    %p479 = por %p477, %p478
    %p481 = scmp.ne.s32.totalorder %s464, %s480
    %p482 = scmp.eq.s32.totalorder %s29, 0
    %p483 = por %p481, %p482
    %p484 = scmp.le.s32.totalorder 1, %s23
    %p485 = scmp.lt.s32.totalorder %s23, 3
    %p486 = pnand %p484, %p485
    %p487 = pneg %p486
    // Predicated region
    $region9: #{sees_encoder_forward.1} parent=5 // pred_check
      _
    $region10: #{sees_encoder_forward.1} parent=5 // pred_check_branch
      %489 = sbr.rel (%p486) target = $region12
    $region11: #{sees_encoder_forward.1} parent=5 // pred_region
      %s490 = ssub.s32 %s23, 1
      // Predicated region
      $region13: #{sees_encoder_forward.1} parent=11 // pred_check
        %p491 = pneg %p96
      $region14: #{sees_encoder_forward.1} parent=11 // pred_check_branch
        %493 = sbr.rel (%p491) target = $region16
      $region15: #{sees_encoder_forward.1} parent=11 // pred_region
        _
      $region16: #{sees_encoder_forward.1} parent=11 // pred_fallthru
        _
      // Predicated region
      $region17: #{sees_encoder_forward.1} parent=11 // pred_check
        %p494 = pneg %p117
      $region18: #{sees_encoder_forward.1} parent=11 // pred_check_branch
        %496 = sbr.rel (%p494) target = $region20
      $region19: #{sees_encoder_forward.1} parent=11 // pred_region
        _
      $region20: #{sees_encoder_forward.1} parent=11 // pred_fallthru
        _
      // Predicated region
      $region21: #{sees_encoder_forward.1} parent=11 // pred_check
        %p497 = pneg %p138
      $region22: #{sees_encoder_forward.1} parent=11 // pred_check_branch
        %499 = sbr.rel (%p497) target = $region24
      $region23: #{sees_encoder_forward.1} parent=11 // pred_region
        _
      $region24: #{sees_encoder_forward.1} parent=11 // pred_fallthru
        _
    $region12: #{sees_encoder_forward.1} parent=5 // pred_fallthru
      _
    %p500 = scmp.lt.s32.totalorder %s23, 2
    // Predicated region
    $region25: #{sees_encoder_forward.1} parent=5 // pred_check
      %p501 = pneg %p500
    $region26: #{sees_encoder_forward.1} parent=5 // pred_check_branch
      %503 = sbr.rel (%p501) target = $region28
    $region27: #{sees_encoder_forward.1} parent=5 // pred_region
      // Predicated region
      $region29: #{sees_encoder_forward.1} parent=27 // pred_check
        %p504 = pneg %p43
      $region30: #{sees_encoder_forward.1} parent=27 // pred_check_branch
        %506 = sbr.rel (%p504) target = $region32
      $region31: #{sees_encoder_forward.1} parent=27 // pred_region
        %p507 = scmp.lt.s32.totalorder %s23, 1
        %s508 = scalar_select %p507, %s23, 1
        %s509 = smul.addr %s508, 2
        %s510 = smul.addr %s509, 8
        %s511 = scalar_lea.vmem %s0, %s510
      $region32: #{sees_encoder_forward.1} parent=27 // pred_fallthru
        _
      // Predicated region
      $region33: #{sees_encoder_forward.1} parent=27 // pred_check
        %p512 = pneg %p69
      $region34: #{sees_encoder_forward.1} parent=27 // pred_check_branch
        %514 = sbr.rel (%p512) target = $region36
      $region35: #{sees_encoder_forward.1} parent=27 // pred_region
        %p515 = scmp.lt.s32.totalorder %s23, 1
        %s516 = scalar_select %p515, %s23, 1
        %s517 = smul.addr %s516, 2
        %s518 = smul.addr %s517, 8
        %s519 = scalar_lea.vmem %s1, %s518
      $region36: #{sees_encoder_forward.1} parent=27 // pred_fallthru
        _
      // Predicated region
      $region37: #{sees_encoder_forward.1} parent=27 // pred_check
        %p520 = pneg %p158
      $region38: #{sees_encoder_forward.1} parent=27 // pred_check_branch
        %522 = sbr.rel (%p520) target = $region40
      $region39: #{sees_encoder_forward.1} parent=27 // pred_region
        %p523 = scmp.lt.s32.totalorder %s23, 1
        %s524 = scalar_select %p523, %s23, 1
        %s525 = smul.addr %s524, 8
        %s526 = smul.addr %s525, 8
        %s527 = scalar_lea.vmem %s5, %s526
      $region40: #{sees_encoder_forward.1} parent=27 // pred_fallthru
        _
      // Predicated region
      $region41: #{sees_encoder_forward.1} parent=27 // pred_check
        %p528 = pneg %p184
      $region42: #{sees_encoder_forward.1} parent=27 // pred_check_branch
        %530 = sbr.rel (%p528) target = $region44
      $region43: #{sees_encoder_forward.1} parent=27 // pred_region
        %p531 = scmp.lt.s32.totalorder %s23, 1
        %s532 = scalar_select %p531, %s23, 1
        %s533 = smul.addr %s532, 2
        %s534 = scalar_lea.vmem %s6, %s533
      $region44: #{sees_encoder_forward.1} parent=27 // pred_fallthru
        _
      // Predicated region
      $region45: #{sees_encoder_forward.1} parent=27 // pred_check
        %p535 = pneg %p210
      $region46: #{sees_encoder_forward.1} parent=27 // pred_check_branch
        %537 = sbr.rel (%p535) target = $region48
      $region47: #{sees_encoder_forward.1} parent=27 // pred_region
        %p538 = scmp.lt.s32.totalorder %s23, 1
        %s539 = scalar_select %p538, %s23, 1
        %s540 = smul.addr %s539, 8
        %s541 = smul.addr %s540, 8
        %s542 = scalar_lea.vmem %s7, %s541
      $region48: #{sees_encoder_forward.1} parent=27 // pred_fallthru
        _
      // Predicated region
      $region49: #{sees_encoder_forward.1} parent=27 // pred_check
        %p543 = pneg %p236
      $region50: #{sees_encoder_forward.1} parent=27 // pred_check_branch
        %545 = sbr.rel (%p543) target = $region52
      $region51: #{sees_encoder_forward.1} parent=27 // pred_region
        %p546 = scmp.lt.s32.totalorder %s23, 1
        %s547 = scalar_select %p546, %s23, 1
        %s548 = smul.addr %s547, 2
        %s549 = scalar_lea.vmem %s8, %s548
      $region52: #{sees_encoder_forward.1} parent=27 // pred_fallthru
        _
      // Predicated region
      $region53: #{sees_encoder_forward.1} parent=27 // pred_check
        %p550 = pneg %p262
      $region54: #{sees_encoder_forward.1} parent=27 // pred_check_branch
        %552 = sbr.rel (%p550) target = $region56
      $region55: #{sees_encoder_forward.1} parent=27 // pred_region
        %p553 = scmp.lt.s32.totalorder %s23, 1
        %s554 = scalar_select %p553, %s23, 1
        %s555 = smul.addr %s554, 2
        %s556 = scalar_lea.vmem %s9, %s555
      $region56: #{sees_encoder_forward.1} parent=27 // pred_fallthru
        _
      // Predicated region
      $region57: #{sees_encoder_forward.1} parent=27 // pred_check
        %p557 = pneg %p288
      $region58: #{sees_encoder_forward.1} parent=27 // pred_check_branch
        %559 = sbr.rel (%p557) target = $region60
      $region59: #{sees_encoder_forward.1} parent=27 // pred_region
        %p560 = scmp.lt.s32.totalorder %s23, 1
        %s561 = scalar_select %p560, %s23, 1
        %s562 = smul.addr %s561, 2
        %s563 = scalar_lea.vmem %s10, %s562
      $region60: #{sees_encoder_forward.1} parent=27 // pred_fallthru
        _
      // Predicated region
      $region61: #{sees_encoder_forward.1} parent=27 // pred_check
        %p564 = pneg %p314
      $region62: #{sees_encoder_forward.1} parent=27 // pred_check_branch
        %566 = sbr.rel (%p564) target = $region64
      $region63: #{sees_encoder_forward.1} parent=27 // pred_region
        %p567 = scmp.lt.s32.totalorder %s23, 1
        %s568 = scalar_select %p567, %s23, 1
        %s569 = smul.addr %s568, 8
        %s570 = smul.addr %s569, 8
        %s571 = scalar_lea.vmem %s11, %s570
      $region64: #{sees_encoder_forward.1} parent=27 // pred_fallthru
        _
      // Predicated region
      $region65: #{sees_encoder_forward.1} parent=27 // pred_check
        %p572 = pneg %p340
      $region66: #{sees_encoder_forward.1} parent=27 // pred_check_branch
        %574 = sbr.rel (%p572) target = $region68
      $region67: #{sees_encoder_forward.1} parent=27 // pred_region
        %p575 = scmp.lt.s32.totalorder %s23, 1
        %s576 = scalar_select %p575, %s23, 1
        %s577 = smul.addr %s576, 2
        %s578 = scalar_lea.vmem %s12, %s577
      $region68: #{sees_encoder_forward.1} parent=27 // pred_fallthru
        _
      // Predicated region
      $region69: #{sees_encoder_forward.1} parent=27 // pred_check
        %p579 = pneg %p366
      $region70: #{sees_encoder_forward.1} parent=27 // pred_check_branch
        %581 = sbr.rel (%p579) target = $region72
      $region71: #{sees_encoder_forward.1} parent=27 // pred_region
        %p582 = scmp.lt.s32.totalorder %s23, 1
        %s583 = scalar_select %p582, %s23, 1
        %s584 = smul.addr %s583, 16
        %s585 = smul.addr %s584, 8
        %s586 = scalar_lea.vmem %s13, %s585
      $region72: #{sees_encoder_forward.1} parent=27 // pred_fallthru
        _
      // Predicated region
      $region73: #{sees_encoder_forward.1} parent=27 // pred_check
        %p587 = pneg %p392
      $region74: #{sees_encoder_forward.1} parent=27 // pred_check_branch
        %589 = sbr.rel (%p587) target = $region76
      $region75: #{sees_encoder_forward.1} parent=27 // pred_region
        %p590 = scmp.lt.s32.totalorder %s23, 1
        %s591 = scalar_select %p590, %s23, 1
        %s592 = smul.addr %s591, 2
        %s593 = scalar_lea.vmem %s14, %s592
      $region76: #{sees_encoder_forward.1} parent=27 // pred_fallthru
        _
      // Predicated region
      $region77: #{sees_encoder_forward.1} parent=27 // pred_check
        %p594 = pneg %p418
      $region78: #{sees_encoder_forward.1} parent=27 // pred_check_branch
        %596 = sbr.rel (%p594) target = $region80
      $region79: #{sees_encoder_forward.1} parent=27 // pred_region
        %p597 = scmp.lt.s32.totalorder %s23, 1
        %s598 = scalar_select %p597, %s23, 1
        %s599 = smul.addr %s598, 2
        %s600 = scalar_lea.vmem %s15, %s599
      $region80: #{sees_encoder_forward.1} parent=27 // pred_fallthru
        _
      // Predicated region
      $region81: #{sees_encoder_forward.1} parent=27 // pred_check
        %p601 = pneg %p444
      $region82: #{sees_encoder_forward.1} parent=27 // pred_check_branch
        %603 = sbr.rel (%p601) target = $region84
      $region83: #{sees_encoder_forward.1} parent=27 // pred_region
        %p604 = scmp.lt.s32.totalorder %s23, 1
        %s605 = scalar_select %p604, %s23, 1
        %s606 = smul.addr %s605, 2
        %s607 = scalar_lea.vmem %s16, %s606
      $region84: #{sees_encoder_forward.1} parent=27 // pred_fallthru
        _
    $region28: #{sees_encoder_forward.1} parent=5 // pred_fallthru
      _
    %p608 = scmp.le.s32.totalorder 1, %s23
    %p609 = scmp.lt.s32.totalorder %s23, 3
    %p610 = pnand %p608, %p609
    %p611 = pneg %p610
    // Predicated region
    $region85: #{sees_encoder_forward.1} parent=5 // pred_check
      _
    $region86: #{sees_encoder_forward.1} parent=5 // pred_check_branch
      %613 = sbr.rel (%p610) target = $region88
    $region87: #{sees_encoder_forward.1} parent=5 // pred_region
      %s614 = ssub.s32 %s23, 1
      %p615 = scmp.lt.s32.totalorder %s28, 1
      %s616 = scalar_select %p615, %s28, 1
      %s617 = smul.addr %s616, 2
      %s618 = smul.addr %s617, 8
      %s619 = scalar_lea.vmem %s0, %s618
      %p620 = pneg %p49
      %p621 = pneg %p46
      %p622 = scmp.lt.s32.totalorder %s28, 1
      %s623 = scalar_select %p622, %s28, 1
      %s624 = smul.addr %s623, 2
      %s625 = smul.addr %s624, 8
      %s626 = scalar_lea.vmem %s1, %s625
      %p627 = pneg %p75
      %p628 = pneg %p72
      %p629 = pneg %p96
      %p630 = pneg %p93
      %p631 = pneg %p117
      %p632 = pneg %p114
      %p633 = pneg %p138
      %p634 = pneg %p135
      %p635 = scmp.lt.s32.totalorder %s28, 1
      %s636 = scalar_select %p635, %s28, 1
      %s637 = smul.addr %s636, 8
      %s638 = smul.addr %s637, 8
      %s639 = scalar_lea.vmem %s5, %s638
      %p640 = pneg %p164
      %p641 = pneg %p161
      %p642 = scmp.lt.s32.totalorder %s28, 1
      %s643 = scalar_select %p642, %s28, 1
      %s644 = smul.addr %s643, 2
      %s645 = scalar_lea.vmem %s6, %s644
      %p646 = pneg %p190
      %p647 = pneg %p187
      %p648 = scmp.lt.s32.totalorder %s28, 1
      %s649 = scalar_select %p648, %s28, 1
      %s650 = smul.addr %s649, 8
      %s651 = smul.addr %s650, 8
      %s652 = scalar_lea.vmem %s7, %s651
      %p653 = pneg %p216
      %p654 = pneg %p213
      %p655 = scmp.lt.s32.totalorder %s28, 1
      %s656 = scalar_select %p655, %s28, 1
      %s657 = smul.addr %s656, 2
      %s658 = scalar_lea.vmem %s8, %s657
      %p659 = pneg %p242
      %p660 = pneg %p239
      %p661 = scmp.lt.s32.totalorder %s28, 1
      %s662 = scalar_select %p661, %s28, 1
      %s663 = smul.addr %s662, 2
      %s664 = scalar_lea.vmem %s9, %s663
      %p665 = pneg %p268
      %p666 = pneg %p265
      %p667 = scmp.lt.s32.totalorder %s28, 1
      %s668 = scalar_select %p667, %s28, 1
      %s669 = smul.addr %s668, 2
      %s670 = scalar_lea.vmem %s10, %s669
      %p671 = pneg %p294
      %p672 = pneg %p291
      %p673 = scmp.lt.s32.totalorder %s28, 1
      %s674 = scalar_select %p673, %s28, 1
      %s675 = smul.addr %s674, 8
      %s676 = smul.addr %s675, 8
      %s677 = scalar_lea.vmem %s11, %s676
      %p678 = pneg %p320
      %p679 = pneg %p317
      %p680 = scmp.lt.s32.totalorder %s28, 1
      %s681 = scalar_select %p680, %s28, 1
      %s682 = smul.addr %s681, 2
      %s683 = scalar_lea.vmem %s12, %s682
      %p684 = pneg %p346
      %p685 = pneg %p343
      %p686 = scmp.lt.s32.totalorder %s28, 1
      %s687 = scalar_select %p686, %s28, 1
      %s688 = smul.addr %s687, 16
      %s689 = smul.addr %s688, 8
      %s690 = scalar_lea.vmem %s13, %s689
      %p691 = pneg %p372
      %p692 = pneg %p369
      %p693 = scmp.lt.s32.totalorder %s28, 1
      %s694 = scalar_select %p693, %s28, 1
      %s695 = smul.addr %s694, 2
      %s696 = scalar_lea.vmem %s14, %s695
      %p697 = pneg %p398
      %p698 = pneg %p395
      %p699 = scmp.lt.s32.totalorder %s28, 1
      %s700 = scalar_select %p699, %s28, 1
      %s701 = smul.addr %s700, 2
      %s702 = scalar_lea.vmem %s15, %s701
      %p703 = pneg %p424
      %p704 = pneg %p421
      %p705 = scmp.lt.s32.totalorder %s28, 1
      %s706 = scalar_select %p705, %s28, 1
      %s707 = smul.addr %s706, 2
      %s708 = scalar_lea.vmem %s16, %s707
      %p709 = pneg %p450
      %p710 = pneg %p447
      %p711 = pneg %p476
      %p712 = pneg %p473
      %p713 = scmp.lt.s32.totalorder %s28, 1
      %s714 = scalar_select %p713, %s28, 1
      %s715 = smul.addr %s714, 2
      %s716 = smul.addr %s715, 8
      %s717 = scalar_lea.vmem %s17, %s716
      %p718 = scmp.lt.s32.totalorder %s28, 1
      %s719 = scalar_select %p718, %s28, 1
      %s720 = smul.addr %s719, 2
      %s721 = smul.addr %s720, 8
      %s722 = scalar_lea.vmem %s0, %s721
      %p723 = scmp.lt.s32.totalorder %s28, 1
      %s724 = scalar_select %p723, %s28, 1
      %s725 = smul.addr %s724, 2
      %s726 = smul.addr %s725, 8
      %s727 = scalar_lea.vmem %s1, %s726
      %p728 = scmp.lt.s32.totalorder %s28, 1
      %s729 = scalar_select %p728, %s28, 1
      %s730 = smul.addr %s729, 8
      %s731 = smul.addr %s730, 8
      %s732 = scalar_lea.vmem %s5, %s731
      %p733 = scmp.lt.s32.totalorder %s28, 1
      %s734 = scalar_select %p733, %s28, 1
      %s735 = smul.addr %s734, 2
      %s736 = scalar_lea.vmem %s6, %s735
      %p737 = scmp.lt.s32.totalorder %s28, 1
      %s738 = scalar_select %p737, %s28, 1
      %s739 = smul.addr %s738, 8
      %s740 = smul.addr %s739, 8
      %s741 = scalar_lea.vmem %s7, %s740
      %p742 = scmp.lt.s32.totalorder %s28, 1
      %s743 = scalar_select %p742, %s28, 1
      %s744 = smul.addr %s743, 2
      %s745 = scalar_lea.vmem %s8, %s744
      %p746 = scmp.lt.s32.totalorder %s28, 1
      %s747 = scalar_select %p746, %s28, 1
      %s748 = smul.addr %s747, 2
      %s749 = scalar_lea.vmem %s9, %s748
      %p750 = scmp.lt.s32.totalorder %s28, 1
      %s751 = scalar_select %p750, %s28, 1
      %s752 = smul.addr %s751, 2
      %s753 = scalar_lea.vmem %s10, %s752
      %p754 = scmp.lt.s32.totalorder %s28, 1
      %s755 = scalar_select %p754, %s28, 1
      %s756 = smul.addr %s755, 8
      %s757 = smul.addr %s756, 8
      %s758 = scalar_lea.vmem %s11, %s757
      %p759 = scmp.lt.s32.totalorder %s28, 1
      %s760 = scalar_select %p759, %s28, 1
      %s761 = smul.addr %s760, 2
      %s762 = scalar_lea.vmem %s12, %s761
      %p763 = scmp.lt.s32.totalorder %s28, 1
      %s764 = scalar_select %p763, %s28, 1
      %s765 = smul.addr %s764, 16
      %s766 = smul.addr %s765, 8
      %s767 = scalar_lea.vmem %s13, %s766
      %p768 = scmp.lt.s32.totalorder %s28, 1
      %s769 = scalar_select %p768, %s28, 1
      %s770 = smul.addr %s769, 2
      %s771 = scalar_lea.vmem %s14, %s770
      %p772 = scmp.lt.s32.totalorder %s28, 1
      %s773 = scalar_select %p772, %s28, 1
      %s774 = smul.addr %s773, 2
      %s775 = scalar_lea.vmem %s15, %s774
      %p776 = scmp.lt.s32.totalorder %s28, 1
      %s777 = scalar_select %p776, %s28, 1
      %s778 = smul.addr %s777, 2
      %s779 = scalar_lea.vmem %s16, %s778
      %p780 = scmp.lt.s32.totalorder %s28, 1
      %s781 = scalar_select %p780, %s28, 1
      %s782 = smul.addr %s781, 2
      %s783 = smul.addr %s782, 8
      %s784 = scalar_lea.vmem %s17, %s783
      %v785 = vld [vmem:[%s722] sm:$0xff]
      %v786 = vld [vmem:[%s722 + $0x8] sm:$0xff]
      %v787 = vld [vmem:[%s3] sm:$0xf]
      %v788 = vld [vmem:[%s4] sm:$0x1]
      %v790 = vperm.slane %v788, 0
      %vm792 = vcmask 31744
      %v794 = vsel %vm792, %v785, 0
      %v797 = vsel %vm792, %v786, 0
      %vm799 = vcmask 1043456
      %v801 = vsel %vm799, %v787, 0
      %803 = vmatpush.msra.mxu0 0.0
      %804 = vmatpush.msra.mxu0 0.0
      %805 = vmatpush.msra.mxu0 0.0
      %806 = vmatpush.msra.mxu0 0.0
      %807 = vmatpush.msra.mxu0 0.0
      %808 = vmatpush.msra.mxu0 0.0
      %809 = vmatpush.msra.mxu0 0.0
      %810 = vmatpush.msra.mxu0 0.0
      %811 = vmatpush.msra.mxu0 0.0
      %812 = vmatpush.msra.mxu0 0.0
      %813 = vmatpush.msra.mxu0 0.0
      %814 = vmatpush.msra.mxu0 0.0
      %815 = vmatpush.msra.mxu0 0.0
      %816 = vmatpush.msra.mxu0 0.0
      %817 = vmatpush.msra.mxu0 0.0
      %818 = vmatpush.msra.mxu0 %v801
      %819 = vmatmul.f32.gmra.mxu0 %v794
      %v820 = vpop.f32.mrf.mxu0
      %v821 = vadd.f32 %v790, %v820
      %822 = vmatmul.f32.gmra.mxu0 %v797
      %v823 = vpop.f32.mrf.mxu0
      %v824 = vadd.f32 %v790, %v823
      %825 = vdwg.mxu0
      %v826 = vld [vmem:[%s2] sm:$0x1]
      %v827 = vld [vmem:[%s2 + $0x1] sm:$0x1]
      %v828 = vld [vmem:[%s2 + $0x2] sm:$0x1]
      %v829 = vld [vmem:[%s2 + $0x3] sm:$0x1]
      %v830 = vld [vmem:[%s732] sm:$0xff]
      %v831 = vld [vmem:[%s732 + $0x8] sm:$0xff]
      %v832 = vld [vmem:[%s732 + $0x10] sm:$0xff]
      %v833 = vld [vmem:[%s732 + $0x18] sm:$0xff]
      %v834 = vld [vmem:[%s736] sm:$0x1]
      %v836 = vperm.slane %v834, 0
      %vm838 = vcmask 261120
      %v840 = vsel %vm838, %v821, 0
      %v843 = vsel %vm838, %v824, 0
      %845 = vmatpush.msra.mxu0 0.0
      %846 = vmatpush.msra.mxu0 0.0
      %847 = vmatpush.msra.mxu0 0.0
      %848 = vmatpush.msra.mxu0 0.0
      %849 = vmatpush.msra.mxu0 0.0
      %850 = vmatpush.msra.mxu0 0.0
      %851 = vmatpush.msra.mxu0 0.0
      %852 = vmatpush.msra.mxu0 0.0
      %853 = vmatpush.msra.mxu0 0.0
      %854 = vmatpush.msra.mxu0 0.0
      %855 = vmatpush.msra.mxu0 0.0
      %856 = vmatpush.msra.mxu0 0.0
      %857 = vmatpush.msra.mxu0 %v833
      %858 = vmatpush.msra.mxu0 %v832
      %859 = vmatpush.msra.mxu0 %v831
      %860 = vmatpush.msra.mxu0 %v830
      %861 = vmatmul.f32.gmra.mxu0 %v840
      %v862 = vpop.f32.mrf.mxu0
      %v863 = vadd.f32 %v836, %v862
      %864 = vmatmul.f32.gmra.mxu0 %v843
      %v865 = vpop.f32.mrf.mxu0
      %v866 = vadd.f32 %v836, %v865
      %867 = vdwg.mxu0
      %v869 = vperm.slane %v826, 0
      %v871 = vmul.f32 %v863, %v869
      %v872 = vmul.f32 %v866, %v869
      %874 = vrot.lane.b32.xlu0 %v863, 96
      %v875 = vpop.permute.xlu0 %874
      %v877 = vsel %vm838, %v871, 0
      %v879 = vsel %vm838, %v875, 0
      %881 = vmatpush.xpose.msra.mxu0 0.0
      %882 = vmatpush.xpose.msra.mxu0 0.0
      %883 = vmatpush.xpose.msra.mxu0 0.0
      %884 = vmatpush.xpose.msra.mxu0 0.0
      %885 = vmatpush.xpose.msra.mxu0 0.0
      %886 = vmatpush.xpose.msra.mxu0 0.0
      %887 = vmatpush.xpose.msra.mxu0 0.0
      %888 = vmatpush.xpose.msra.mxu0 0.0
      %889 = vmatpush.xpose.msra.mxu0 0.0
      %890 = vmatpush.xpose.msra.mxu0 0.0
      %891 = vmatpush.xpose.msra.mxu0 0.0
      %892 = vmatpush.xpose.msra.mxu0 0.0
      %893 = vmatpush.xpose.msra.mxu0 0.0
      %894 = vmatpush.xpose.msra.mxu0 0.0
      %895 = vmatpush.xpose.msra.mxu0 0.0
      %896 = vmatpush.xpose.msra.mxu0 %v879
      %897 = vmatmul.f32.gmra.mxu0 %v877
      %v898 = vpop.f32.mrf.mxu0
      %v899 = vadd.f32 0.0, %v898
      %900 = vdwg.mxu0
      %902 = vrot.lane.b32.xlu0 %v866, 96
      %v903 = vpop.permute.xlu0 %902
      %v905 = vsel %vm838, %v872, 0
      %v907 = vsel %vm838, %v903, 0
      %909 = vmatpush.xpose.msra.mxu0 0.0
      %910 = vmatpush.xpose.msra.mxu0 0.0
      %911 = vmatpush.xpose.msra.mxu0 0.0
      %912 = vmatpush.xpose.msra.mxu0 0.0
      %913 = vmatpush.xpose.msra.mxu0 0.0
      %914 = vmatpush.xpose.msra.mxu0 0.0
      %915 = vmatpush.xpose.msra.mxu0 0.0
      %916 = vmatpush.xpose.msra.mxu0 0.0
      %917 = vmatpush.xpose.msra.mxu0 0.0
      %918 = vmatpush.xpose.msra.mxu0 0.0
      %919 = vmatpush.xpose.msra.mxu0 0.0
      %920 = vmatpush.xpose.msra.mxu0 0.0
      %921 = vmatpush.xpose.msra.mxu0 0.0
      %922 = vmatpush.xpose.msra.mxu0 0.0
      %923 = vmatpush.xpose.msra.mxu0 0.0
      %924 = vmatpush.xpose.msra.mxu0 %v907
      %925 = vmatmul.f32.gmra.mxu0 %v905
      %v926 = vpop.f32.mrf.mxu0
      %v927 = vadd.f32 0.0, %v926
      %928 = vdwg.mxu0
      %v929 = vmul.f32 %v899, 0.35355338
      %v930 = vmul.f32 %v927, 0.35355338
      %vm931 = vcmask 64512
      %v932 = vsel %vm931, %v929, -inf
      %933 = vmax.xlane.f32.xlu0 %v932
      %v934 = vpop.xlane.xlu0 %933
      %v935 = vsel %vm931, %v930, -inf
      %936 = vmax.xlane.f32.xlu0 %v935
      %v937 = vpop.xlane.xlu0 %936
      %v938 = vsub.f32 %v929, %v934
      %v939 = vsub.f32 %v930, %v937
      %v940 = vmul.f32 %v938, 1.442695
      %v941 = vpow.pop %v940
      %v942 = vmul.f32 %v939, 1.442695
      %v943 = vpow.pop %v942
      %v944 = vsel %vm931, %v941, 0.0
      %945 = vadd.xlane.f32.xlu0 %v944
      %v946 = vpop.xlane.xlu0 %945
      %v947 = vsel %vm931, %v943, 0.0
      %948 = vadd.xlane.f32.xlu0 %v947
      %v949 = vpop.xlane.xlu0 %948
      %v950 = vrcp.pop %v946
      %v951 = vrcp.pop %v949
      %v952 = vmul.f32 %v941, %v950
      %v953 = vmul.f32 %v943, %v951
      %954 = vrot.lane.b32.xlu0 %v869, 64
      %v955 = vpop.permute.xlu0 %954
      %v957 = vmul.f32 %v863, %v955
      %v958 = vmul.f32 %v866, %v955
      %v960 = vperm.slane %v827, 0
      %v962 = vmul.f32 %v863, %v960
      %v963 = vmul.f32 %v866, %v960
      %v965 = vsel %vm838, %v962, 0
      %967 = vmatpush.xpose.msra.mxu0 0.0
      %968 = vmatpush.xpose.msra.mxu0 0.0
      %969 = vmatpush.xpose.msra.mxu0 0.0
      %970 = vmatpush.xpose.msra.mxu0 0.0
      %971 = vmatpush.xpose.msra.mxu0 0.0
      %972 = vmatpush.xpose.msra.mxu0 0.0
      %973 = vmatpush.xpose.msra.mxu0 0.0
      %974 = vmatpush.xpose.msra.mxu0 0.0
      %975 = vmatpush.xpose.msra.mxu0 0.0
      %976 = vmatpush.xpose.msra.mxu0 0.0
      %977 = vmatpush.xpose.msra.mxu0 0.0
      %978 = vmatpush.xpose.msra.mxu0 0.0
      %979 = vmatpush.xpose.msra.mxu0 0.0
      %980 = vmatpush.xpose.msra.mxu0 0.0
      %981 = vmatpush.xpose.msra.mxu0 0.0
      %982 = vmatpush.xpose.msra.mxu0 %v879
      %983 = vmatmul.f32.gmra.mxu0 %v965
      %v984 = vpop.f32.mrf.mxu0
      %v985 = vadd.f32 0.0, %v984
      %986 = vdwg.mxu0
      %v988 = vsel %vm838, %v963, 0
      %990 = vmatpush.xpose.msra.mxu0 0.0
      %991 = vmatpush.xpose.msra.mxu0 0.0
      %992 = vmatpush.xpose.msra.mxu0 0.0
      %993 = vmatpush.xpose.msra.mxu0 0.0
      %994 = vmatpush.xpose.msra.mxu0 0.0
      %995 = vmatpush.xpose.msra.mxu0 0.0
      %996 = vmatpush.xpose.msra.mxu0 0.0
      %997 = vmatpush.xpose.msra.mxu0 0.0
      %998 = vmatpush.xpose.msra.mxu0 0.0
      %999 = vmatpush.xpose.msra.mxu0 0.0
      %1000 = vmatpush.xpose.msra.mxu0 0.0
      %1001 = vmatpush.xpose.msra.mxu0 0.0
      %1002 = vmatpush.xpose.msra.mxu0 0.0
      %1003 = vmatpush.xpose.msra.mxu0 0.0
      %1004 = vmatpush.xpose.msra.mxu0 0.0
      %1005 = vmatpush.xpose.msra.mxu0 %v907
      %1006 = vmatmul.f32.gmra.mxu0 %v988
      %v1007 = vpop.f32.mrf.mxu0
      %v1008 = vadd.f32 0.0, %v1007
      %1009 = vdwg.mxu0
      %v1010 = vmul.f32 %v985, 0.35355338
      %v1011 = vmul.f32 %v1008, 0.35355338
      %v1012 = vsel %vm931, %v1010, -inf
      %1013 = vmax.xlane.f32.xlu0 %v1012
      %v1014 = vpop.xlane.xlu0 %1013
      %v1015 = vsel %vm931, %v1011, -inf
      %1016 = vmax.xlane.f32.xlu0 %v1015
      %v1017 = vpop.xlane.xlu0 %1016
      %v1018 = vsub.f32 %v1010, %v1014
      %v1019 = vsub.f32 %v1011, %v1017
      %v1020 = vmul.f32 %v1018, 1.442695
      %v1021 = vpow.pop %v1020
      %v1022 = vmul.f32 %v1019, 1.442695
      %v1023 = vpow.pop %v1022
      %v1024 = vsel %vm931, %v1021, 0.0
      %1025 = vadd.xlane.f32.xlu0 %v1024
      %v1026 = vpop.xlane.xlu0 %1025
      %v1027 = vsel %vm931, %v1023, 0.0
      %1028 = vadd.xlane.f32.xlu0 %v1027
      %v1029 = vpop.xlane.xlu0 %1028
      %v1030 = vrcp.pop %v1026
      %v1031 = vrcp.pop %v1029
      %v1032 = vmul.f32 %v1021, %v1030
      %v1033 = vmul.f32 %v1023, %v1031
      %1034 = vrot.lane.b32.xlu0 %v960, 64
      %v1035 = vpop.permute.xlu0 %1034
      %v1037 = vmul.f32 %v863, %v1035
      %v1038 = vmul.f32 %v866, %v1035
      %1040 = vrot.lane.b32.xlu0 %v1037, 64
      %v1041 = vpop.permute.xlu0 %1040
      %v1044 = vsel %vm931, %v1032, 0
      %1046 = vmatpush.msra.mxu0 0.0
      %1047 = vmatpush.msra.mxu0 0.0
      %1048 = vmatpush.msra.mxu0 0.0
      %1049 = vmatpush.msra.mxu0 0.0
      %1050 = vmatpush.msra.mxu0 0.0
      %1051 = vmatpush.msra.mxu0 0.0
      %1052 = vmatpush.msra.mxu0 0.0
      %1053 = vmatpush.msra.mxu0 0.0
      %1054 = vmatpush.msra.mxu0 0.0
      %1055 = vmatpush.msra.mxu0 0.0
      %1056 = vmatpush.msra.mxu0 0.0
      %1057 = vmatpush.msra.mxu0 0.0
      %1058 = vmatpush.msra.mxu0 0.0
      %1059 = vmatpush.msra.mxu0 0.0
      %1060 = vmatpush.msra.mxu0 0.0
      %1061 = vmatpush.msra.mxu0 %v1041
      %1062 = vmatmul.f32.gmra.mxu0 %v1044
      %v1063 = vpop.f32.mrf.mxu0
      %v1064 = vadd.f32 0.0, %v1063
      %1065 = vdwg.mxu0
      %1067 = vrot.lane.b32.xlu0 %v1038, 64
      %v1068 = vpop.permute.xlu0 %1067
      %v1071 = vsel %vm931, %v1033, 0
      %1073 = vmatpush.msra.mxu0 0.0
      %1074 = vmatpush.msra.mxu0 0.0
      %1075 = vmatpush.msra.mxu0 0.0
      %1076 = vmatpush.msra.mxu0 0.0
      %1077 = vmatpush.msra.mxu0 0.0
      %1078 = vmatpush.msra.mxu0 0.0
      %1079 = vmatpush.msra.mxu0 0.0
      %1080 = vmatpush.msra.mxu0 0.0
      %1081 = vmatpush.msra.mxu0 0.0
      %1082 = vmatpush.msra.mxu0 0.0
      %1083 = vmatpush.msra.mxu0 0.0
      %1084 = vmatpush.msra.mxu0 0.0
      %1085 = vmatpush.msra.mxu0 0.0
      %1086 = vmatpush.msra.mxu0 0.0
      %1087 = vmatpush.msra.mxu0 0.0
      %1088 = vmatpush.msra.mxu0 %v1068
      %1089 = vmatmul.f32.gmra.mxu0 %v1071
      %v1090 = vpop.f32.mrf.mxu0
      %v1091 = vadd.f32 0.0, %v1090
      %1092 = vdwg.mxu0
      %1094 = vrot.lane.b32.xlu0 %v957, 64
      %v1095 = vpop.permute.xlu0 %1094
      %v1098 = vsel %vm931, %v952, 0
      %1100 = vmatpush.msra.mxu0 0.0
      %1101 = vmatpush.msra.mxu0 0.0
      %1102 = vmatpush.msra.mxu0 0.0
      %1103 = vmatpush.msra.mxu0 0.0
      %1104 = vmatpush.msra.mxu0 0.0
      %1105 = vmatpush.msra.mxu0 0.0
      %1106 = vmatpush.msra.mxu0 0.0
      %1107 = vmatpush.msra.mxu0 0.0
      %1108 = vmatpush.msra.mxu0 0.0
      %1109 = vmatpush.msra.mxu0 0.0
      %1110 = vmatpush.msra.mxu0 0.0
      %1111 = vmatpush.msra.mxu0 0.0
      %1112 = vmatpush.msra.mxu0 0.0
      %1113 = vmatpush.msra.mxu0 0.0
      %1114 = vmatpush.msra.mxu0 0.0
      %1115 = vmatpush.msra.mxu0 %v1095
      %1116 = vmatmul.f32.gmra.mxu0 %v1098
      %v1117 = vpop.f32.mrf.mxu0
      %v1118 = vadd.f32 %v1064, %v1117
      %1119 = vdwg.mxu0
      %1121 = vrot.lane.b32.xlu0 %v958, 64
      %v1122 = vpop.permute.xlu0 %1121
      %v1125 = vsel %vm931, %v953, 0
      %1127 = vmatpush.msra.mxu0 0.0
      %1128 = vmatpush.msra.mxu0 0.0
      %1129 = vmatpush.msra.mxu0 0.0
      %1130 = vmatpush.msra.mxu0 0.0
      %1131 = vmatpush.msra.mxu0 0.0
      %1132 = vmatpush.msra.mxu0 0.0
      %1133 = vmatpush.msra.mxu0 0.0
      %1134 = vmatpush.msra.mxu0 0.0
      %1135 = vmatpush.msra.mxu0 0.0
      %1136 = vmatpush.msra.mxu0 0.0
      %1137 = vmatpush.msra.mxu0 0.0
      %1138 = vmatpush.msra.mxu0 0.0
      %1139 = vmatpush.msra.mxu0 0.0
      %1140 = vmatpush.msra.mxu0 0.0
      %1141 = vmatpush.msra.mxu0 0.0
      %1142 = vmatpush.msra.mxu0 %v1122
      %1143 = vmatmul.f32.gmra.mxu0 %v1125
      %v1144 = vpop.f32.mrf.mxu0
      %v1145 = vadd.f32 %v1091, %v1144
      %1146 = vdwg.mxu0
      %v1148 = vperm.slane %v828, 0
      %v1150 = vmul.f32 %v863, %v1148
      %v1151 = vmul.f32 %v866, %v1148
      %v1153 = vsel %vm838, %v1150, 0
      %1155 = vmatpush.xpose.msra.mxu0 0.0
      %1156 = vmatpush.xpose.msra.mxu0 0.0
      %1157 = vmatpush.xpose.msra.mxu0 0.0
      %1158 = vmatpush.xpose.msra.mxu0 0.0
      %1159 = vmatpush.xpose.msra.mxu0 0.0
      %1160 = vmatpush.xpose.msra.mxu0 0.0
      %1161 = vmatpush.xpose.msra.mxu0 0.0
      %1162 = vmatpush.xpose.msra.mxu0 0.0
      %1163 = vmatpush.xpose.msra.mxu0 0.0
      %1164 = vmatpush.xpose.msra.mxu0 0.0
      %1165 = vmatpush.xpose.msra.mxu0 0.0
      %1166 = vmatpush.xpose.msra.mxu0 0.0
      %1167 = vmatpush.xpose.msra.mxu0 0.0
      %1168 = vmatpush.xpose.msra.mxu0 0.0
      %1169 = vmatpush.xpose.msra.mxu0 0.0
      %1170 = vmatpush.xpose.msra.mxu0 %v879
      %1171 = vmatmul.f32.gmra.mxu0 %v1153
      %v1172 = vpop.f32.mrf.mxu0
      %v1173 = vadd.f32 0.0, %v1172
      %1174 = vdwg.mxu0
      %v1176 = vsel %vm838, %v1151, 0
      %1178 = vmatpush.xpose.msra.mxu0 0.0
      %1179 = vmatpush.xpose.msra.mxu0 0.0
      %1180 = vmatpush.xpose.msra.mxu0 0.0
      %1181 = vmatpush.xpose.msra.mxu0 0.0
      %1182 = vmatpush.xpose.msra.mxu0 0.0
      %1183 = vmatpush.xpose.msra.mxu0 0.0
      %1184 = vmatpush.xpose.msra.mxu0 0.0
      %1185 = vmatpush.xpose.msra.mxu0 0.0
      %1186 = vmatpush.xpose.msra.mxu0 0.0
      %1187 = vmatpush.xpose.msra.mxu0 0.0
      %1188 = vmatpush.xpose.msra.mxu0 0.0
      %1189 = vmatpush.xpose.msra.mxu0 0.0
      %1190 = vmatpush.xpose.msra.mxu0 0.0
      %1191 = vmatpush.xpose.msra.mxu0 0.0
      %1192 = vmatpush.xpose.msra.mxu0 0.0
      %1193 = vmatpush.xpose.msra.mxu0 %v907
      %1194 = vmatmul.f32.gmra.mxu0 %v1176
      %v1195 = vpop.f32.mrf.mxu0
      %v1196 = vadd.f32 0.0, %v1195
      %1197 = vdwg.mxu0
      %v1198 = vmul.f32 %v1173, 0.35355338
      %v1199 = vmul.f32 %v1196, 0.35355338
      %v1200 = vsel %vm931, %v1198, -inf
      %1201 = vmax.xlane.f32.xlu0 %v1200
      %v1202 = vpop.xlane.xlu0 %1201
      %v1203 = vsel %vm931, %v1199, -inf
      %1204 = vmax.xlane.f32.xlu0 %v1203
      %v1205 = vpop.xlane.xlu0 %1204
      %v1206 = vsub.f32 %v1198, %v1202
      %v1207 = vsub.f32 %v1199, %v1205
      %v1208 = vmul.f32 %v1206, 1.442695
      %v1209 = vpow.pop %v1208
      %v1210 = vmul.f32 %v1207, 1.442695
      %v1211 = vpow.pop %v1210
      %v1212 = vsel %vm931, %v1209, 0.0
      %1213 = vadd.xlane.f32.xlu0 %v1212
      %v1214 = vpop.xlane.xlu0 %1213
      %v1215 = vsel %vm931, %v1211, 0.0
      %1216 = vadd.xlane.f32.xlu0 %v1215
      %v1217 = vpop.xlane.xlu0 %1216
      %v1218 = vrcp.pop %v1214
      %v1219 = vrcp.pop %v1217
      %v1220 = vmul.f32 %v1209, %v1218
      %v1221 = vmul.f32 %v1211, %v1219
      %1222 = vrot.lane.b32.xlu0 %v1148, 64
      %v1223 = vpop.permute.xlu0 %1222
      %v1225 = vmul.f32 %v863, %v1223
      %v1226 = vmul.f32 %v866, %v1223
      %1228 = vrot.lane.b32.xlu0 %v1225, 64
      %v1229 = vpop.permute.xlu0 %1228
      %v1232 = vsel %vm931, %v1220, 0
      %1234 = vmatpush.msra.mxu0 0.0
      %1235 = vmatpush.msra.mxu0 0.0
      %1236 = vmatpush.msra.mxu0 0.0
      %1237 = vmatpush.msra.mxu0 0.0
      %1238 = vmatpush.msra.mxu0 0.0
      %1239 = vmatpush.msra.mxu0 0.0
      %1240 = vmatpush.msra.mxu0 0.0
      %1241 = vmatpush.msra.mxu0 0.0
      %1242 = vmatpush.msra.mxu0 0.0
      %1243 = vmatpush.msra.mxu0 0.0
      %1244 = vmatpush.msra.mxu0 0.0
      %1245 = vmatpush.msra.mxu0 0.0
      %1246 = vmatpush.msra.mxu0 0.0
      %1247 = vmatpush.msra.mxu0 0.0
      %1248 = vmatpush.msra.mxu0 0.0
      %1249 = vmatpush.msra.mxu0 %v1229
      %1250 = vmatmul.f32.gmra.mxu0 %v1232
      %v1251 = vpop.f32.mrf.mxu0
      %v1252 = vadd.f32 0.0, %v1251
      %1253 = vdwg.mxu0
      %1255 = vrot.lane.b32.xlu0 %v1226, 64
      %v1256 = vpop.permute.xlu0 %1255
      %v1259 = vsel %vm931, %v1221, 0
      %1261 = vmatpush.msra.mxu0 0.0
      %1262 = vmatpush.msra.mxu0 0.0
      %1263 = vmatpush.msra.mxu0 0.0
      %1264 = vmatpush.msra.mxu0 0.0
      %1265 = vmatpush.msra.mxu0 0.0
      %1266 = vmatpush.msra.mxu0 0.0
      %1267 = vmatpush.msra.mxu0 0.0
      %1268 = vmatpush.msra.mxu0 0.0
      %1269 = vmatpush.msra.mxu0 0.0
      %1270 = vmatpush.msra.mxu0 0.0
      %1271 = vmatpush.msra.mxu0 0.0
      %1272 = vmatpush.msra.mxu0 0.0
      %1273 = vmatpush.msra.mxu0 0.0
      %1274 = vmatpush.msra.mxu0 0.0
      %1275 = vmatpush.msra.mxu0 0.0
      %1276 = vmatpush.msra.mxu0 %v1256
      %1277 = vmatmul.f32.gmra.mxu0 %v1259
      %v1278 = vpop.f32.mrf.mxu0
      %v1279 = vadd.f32 0.0, %v1278
      %1280 = vdwg.mxu0
      %v1281 = vadd.f32 %v1118, %v1252
      %v1282 = vadd.f32 %v1145, %v1279
      %v1284 = vperm.slane %v829, 0
      %v1286 = vmul.f32 %v863, %v1284
      %v1287 = vmul.f32 %v866, %v1284
      %v1289 = vsel %vm838, %v1286, 0
      %1291 = vmatpush.xpose.msra.mxu0 0.0
      %1292 = vmatpush.xpose.msra.mxu0 0.0
      %1293 = vmatpush.xpose.msra.mxu0 0.0
      %1294 = vmatpush.xpose.msra.mxu0 0.0
      %1295 = vmatpush.xpose.msra.mxu0 0.0
      %1296 = vmatpush.xpose.msra.mxu0 0.0
      %1297 = vmatpush.xpose.msra.mxu0 0.0
      %1298 = vmatpush.xpose.msra.mxu0 0.0
      %1299 = vmatpush.xpose.msra.mxu0 0.0
      %1300 = vmatpush.xpose.msra.mxu0 0.0
      %1301 = vmatpush.xpose.msra.mxu0 0.0
      %1302 = vmatpush.xpose.msra.mxu0 0.0
      %1303 = vmatpush.xpose.msra.mxu0 0.0
      %1304 = vmatpush.xpose.msra.mxu0 0.0
      %1305 = vmatpush.xpose.msra.mxu0 0.0
      %1306 = vmatpush.xpose.msra.mxu0 %v879
      %1307 = vmatmul.f32.gmra.mxu0 %v1289
      %v1308 = vpop.f32.mrf.mxu0
      %v1309 = vadd.f32 0.0, %v1308
      %1310 = vdwg.mxu0
      %v1312 = vsel %vm838, %v1287, 0
      %1314 = vmatpush.xpose.msra.mxu0 0.0
      %1315 = vmatpush.xpose.msra.mxu0 0.0
      %1316 = vmatpush.xpose.msra.mxu0 0.0
      %1317 = vmatpush.xpose.msra.mxu0 0.0
      %1318 = vmatpush.xpose.msra.mxu0 0.0
      %1319 = vmatpush.xpose.msra.mxu0 0.0
      %1320 = vmatpush.xpose.msra.mxu0 0.0
      %1321 = vmatpush.xpose.msra.mxu0 0.0
      %1322 = vmatpush.xpose.msra.mxu0 0.0
      %1323 = vmatpush.xpose.msra.mxu0 0.0
      %1324 = vmatpush.xpose.msra.mxu0 0.0
      %1325 = vmatpush.xpose.msra.mxu0 0.0
      %1326 = vmatpush.xpose.msra.mxu0 0.0
      %1327 = vmatpush.xpose.msra.mxu0 0.0
      %1328 = vmatpush.xpose.msra.mxu0 0.0
      %1329 = vmatpush.xpose.msra.mxu0 %v907
      %1330 = vmatmul.f32.gmra.mxu0 %v1312
      %v1331 = vpop.f32.mrf.mxu0
      %v1332 = vadd.f32 0.0, %v1331
      %1333 = vdwg.mxu0
      %v1334 = vmul.f32 %v1309, 0.35355338
      %v1335 = vmul.f32 %v1332, 0.35355338
      %v1336 = vsel %vm931, %v1334, -inf
      %1337 = vmax.xlane.f32.xlu0 %v1336
      %v1338 = vpop.xlane.xlu0 %1337
      %v1339 = vsel %vm931, %v1335, -inf
      %1340 = vmax.xlane.f32.xlu0 %v1339
      %v1341 = vpop.xlane.xlu0 %1340
      %v1342 = vsub.f32 %v1334, %v1338
      %v1343 = vsub.f32 %v1335, %v1341
      %v1344 = vmul.f32 %v1342, 1.442695
      %v1345 = vpow.pop %v1344
      %v1346 = vmul.f32 %v1343, 1.442695
      %v1347 = vpow.pop %v1346
      %v1348 = vsel %vm931, %v1345, 0.0
      %1349 = vadd.xlane.f32.xlu0 %v1348
      %v1350 = vpop.xlane.xlu0 %1349
      %v1351 = vsel %vm931, %v1347, 0.0
      %1352 = vadd.xlane.f32.xlu0 %v1351
      %v1353 = vpop.xlane.xlu0 %1352
      %v1354 = vrcp.pop %v1350
      %v1355 = vrcp.pop %v1353
      %v1356 = vmul.f32 %v1345, %v1354
      %v1357 = vmul.f32 %v1347, %v1355
      %1358 = vrot.lane.b32.xlu0 %v1284, 64
      %v1359 = vpop.permute.xlu0 %1358
      %v1361 = vmul.f32 %v863, %v1359
      %v1362 = vmul.f32 %v866, %v1359
      %1364 = vrot.lane.b32.xlu0 %v1361, 64
      %v1365 = vpop.permute.xlu0 %1364
      %v1368 = vsel %vm931, %v1356, 0
      %1370 = vmatpush.msra.mxu0 0.0
      %1371 = vmatpush.msra.mxu0 0.0
      %1372 = vmatpush.msra.mxu0 0.0
      %1373 = vmatpush.msra.mxu0 0.0
      %1374 = vmatpush.msra.mxu0 0.0
      %1375 = vmatpush.msra.mxu0 0.0
      %1376 = vmatpush.msra.mxu0 0.0
      %1377 = vmatpush.msra.mxu0 0.0
      %1378 = vmatpush.msra.mxu0 0.0
      %1379 = vmatpush.msra.mxu0 0.0
      %1380 = vmatpush.msra.mxu0 0.0
      %1381 = vmatpush.msra.mxu0 0.0
      %1382 = vmatpush.msra.mxu0 0.0
      %1383 = vmatpush.msra.mxu0 0.0
      %1384 = vmatpush.msra.mxu0 0.0
      %1385 = vmatpush.msra.mxu0 %v1365
      %1386 = vmatmul.f32.gmra.mxu0 %v1368
      %v1387 = vpop.f32.mrf.mxu0
      %v1388 = vadd.f32 0.0, %v1387
      %1389 = vdwg.mxu0
      %1391 = vrot.lane.b32.xlu0 %v1362, 64
      %v1392 = vpop.permute.xlu0 %1391
      %v1395 = vsel %vm931, %v1357, 0
      %1397 = vmatpush.msra.mxu0 0.0
      %1398 = vmatpush.msra.mxu0 0.0
      %1399 = vmatpush.msra.mxu0 0.0
      %1400 = vmatpush.msra.mxu0 0.0
      %1401 = vmatpush.msra.mxu0 0.0
      %1402 = vmatpush.msra.mxu0 0.0
      %1403 = vmatpush.msra.mxu0 0.0
      %1404 = vmatpush.msra.mxu0 0.0
      %1405 = vmatpush.msra.mxu0 0.0
      %1406 = vmatpush.msra.mxu0 0.0
      %1407 = vmatpush.msra.mxu0 0.0
      %1408 = vmatpush.msra.mxu0 0.0
      %1409 = vmatpush.msra.mxu0 0.0
      %1410 = vmatpush.msra.mxu0 0.0
      %1411 = vmatpush.msra.mxu0 0.0
      %1412 = vmatpush.msra.mxu0 %v1392
      %1413 = vmatmul.f32.gmra.mxu0 %v1395
      %v1414 = vpop.f32.mrf.mxu0
      %v1415 = vadd.f32 0.0, %v1414
      %1416 = vdwg.mxu0
      %v1417 = vadd.f32 %v1281, %v1388
      %v1418 = vadd.f32 %v1282, %v1415
      %v1419 = vld [vmem:[%s741] sm:$0xff]
      %v1420 = vld [vmem:[%s741 + $0x8] sm:$0xff]
      %v1421 = vld [vmem:[%s741 + $0x10] sm:$0xff]
      %v1422 = vld [vmem:[%s741 + $0x18] sm:$0xff]
      %v1423 = vld [vmem:[%s745] sm:$0x1]
      %v1425 = vperm.slane %v1423, 0
      %v1428 = vsel %vm838, %v1417, 0
      %v1431 = vsel %vm838, %v1418, 0
      %1433 = vmatpush.msra.mxu0 0.0
      %1434 = vmatpush.msra.mxu0 0.0
      %1435 = vmatpush.msra.mxu0 0.0
      %1436 = vmatpush.msra.mxu0 0.0
      %1437 = vmatpush.msra.mxu0 0.0
      %1438 = vmatpush.msra.mxu0 0.0
      %1439 = vmatpush.msra.mxu0 0.0
      %1440 = vmatpush.msra.mxu0 0.0
      %1441 = vmatpush.msra.mxu0 0.0
      %1442 = vmatpush.msra.mxu0 0.0
      %1443 = vmatpush.msra.mxu0 0.0
      %1444 = vmatpush.msra.mxu0 0.0
      %1445 = vmatpush.msra.mxu0 %v1422
      %1446 = vmatpush.msra.mxu0 %v1421
      %1447 = vmatpush.msra.mxu0 %v1420
      %1448 = vmatpush.msra.mxu0 %v1419
      %1449 = vmatmul.f32.gmra.mxu0 %v1428
      %v1450 = vpop.f32.mrf.mxu0
      %v1451 = vadd.f32 %v1425, %v1450
      %1452 = vmatmul.f32.gmra.mxu0 %v1431
      %v1453 = vpop.f32.mrf.mxu0
      %v1454 = vadd.f32 %v1425, %v1453
      %1455 = vdwg.mxu0
      %v1456 = vadd.f32 %v821, %v1451
      %v1457 = vadd.f32 %v824, %v1454
      %v1458 = vld [vmem:[%s749] sm:$0x1]
      %v1459 = vld [vmem:[%s753] sm:$0x1]
      %v1460 = vsel %vm838, %v1456, 0.0
      %1461 = vadd.xlane.f32.xlu0 %v1460
      %v1462 = vpop.xlane.xlu0 %1461
      %v1463 = vsel %vm838, %v1457, 0.0
      %1464 = vadd.xlane.f32.xlu0 %v1463
      %v1465 = vpop.xlane.xlu0 %1464
      %v1466 = vrcp.pop 32.0
      %v1467 = vmul.f32 32.0, %v1466
      %v1468 = vsub.f32 1.0, %v1467
      %v1469 = vmul.f32 %v1466, %v1468
      %v1470 = vadd.f32 %v1466, %v1469
      %vm1471 = vweird.f32 %v1466
      %v1472 = vsel %vm1471, %v1466, %v1470
      %v1473 = vmul.f32 %v1462, %v1472
      %v1474 = vmul.f32 %v1465, %v1472
      %v1475 = vsub.f32 %v1456, %v1473
      %v1476 = vsub.f32 %v1457, %v1474
      %v1477 = vmul.f32 %v1475, %v1475
      %v1478 = vmul.f32 %v1476, %v1476
      %v1479 = vsel %vm838, %v1477, 0.0
      %1480 = vadd.xlane.f32.xlu0 %v1479
      %v1481 = vpop.xlane.xlu0 %1480
      %v1482 = vsel %vm838, %v1478, 0.0
      %1483 = vadd.xlane.f32.xlu0 %v1482
      %v1484 = vpop.xlane.xlu0 %1483
      %v1485 = vmul.f32 %v1481, %v1472
      %v1486 = vmul.f32 %v1484, %v1472
      %v1487 = vadd.f32 %v1485, 1e-05
      %v1488 = vadd.f32 %v1486, 1e-05
      %v1489 = vrsqrt.pop %v1487
      %v1490 = vmul.f32 %v1489, %v1487
      %v1491 = vmul.f32 %v1490, %v1489
      %v1492 = vmul.f32 0.5, %v1491
      %v1493 = vsub.f32 1.5, %v1492
      %v1494 = vmul.f32 %v1489, %v1493
      %vm1495 = vweird.f32 %v1487
      %vm1496 = vweird.f32 %v1489
      %vm1497 = vmor %vm1495, %vm1496
      %v1498 = vsel %vm1497, %v1489, %v1494
      %v1499 = vrsqrt.pop %v1488
      %v1500 = vmul.f32 %v1499, %v1488
      %v1501 = vmul.f32 %v1500, %v1499
      %v1502 = vmul.f32 0.5, %v1501
      %v1503 = vsub.f32 1.5, %v1502
      %v1504 = vmul.f32 %v1499, %v1503
      %vm1505 = vweird.f32 %v1488
      %vm1506 = vweird.f32 %v1499
      %vm1507 = vmor %vm1505, %vm1506
      %v1508 = vsel %vm1507, %v1499, %v1504
      %v1509 = vmul.f32 %v1475, %v1498
      %v1510 = vmul.f32 %v1476, %v1508
      %v1512 = vperm.slane %v1458, 0
      %v1514 = vmul.f32 %v1509, %v1512
      %v1515 = vmul.f32 %v1510, %v1512
      %v1517 = vperm.slane %v1459, 0
      %v1519 = vadd.f32 %v1514, %v1517
      %v1520 = vadd.f32 %v1515, %v1517
      %v1521 = vld [vmem:[%s758] sm:$0xff]
      %v1522 = vld [vmem:[%s758 + $0x8] sm:$0xff]
      %v1523 = vld [vmem:[%s758 + $0x10] sm:$0xff]
      %v1524 = vld [vmem:[%s758 + $0x18] sm:$0xff]
      %v1525 = vld [vmem:[%s762] sm:$0x1]
      %v1527 = vperm.slane %v1525, 0
      %v1530 = vsel %vm838, %v1519, 0
      %v1533 = vsel %vm838, %v1520, 0
      %1535 = vmatpush.msra.mxu0 0.0
      %1536 = vmatpush.msra.mxu0 0.0
      %1537 = vmatpush.msra.mxu0 0.0
      %1538 = vmatpush.msra.mxu0 0.0
      %1539 = vmatpush.msra.mxu0 0.0
      %1540 = vmatpush.msra.mxu0 0.0
      %1541 = vmatpush.msra.mxu0 0.0
      %1542 = vmatpush.msra.mxu0 0.0
      %1543 = vmatpush.msra.mxu0 0.0
      %1544 = vmatpush.msra.mxu0 0.0
      %1545 = vmatpush.msra.mxu0 0.0
      %1546 = vmatpush.msra.mxu0 0.0
      %1547 = vmatpush.msra.mxu0 %v1524
      %1548 = vmatpush.msra.mxu0 %v1523
      %1549 = vmatpush.msra.mxu0 %v1522
      %1550 = vmatpush.msra.mxu0 %v1521
      %1551 = vmatmul.f32.gmra.mxu0 %v1530
      %v1552 = vpop.f32.mrf.mxu0
      %v1553 = vadd.f32 %v1527, %v1552
      %1554 = vmatmul.f32.gmra.mxu0 %v1533
      %v1555 = vpop.f32.mrf.mxu0
      %v1556 = vadd.f32 %v1527, %v1555
      %1557 = vdwg.mxu0
      %v1558 = vmax.f32 %v1553, 0.0
      %v1559 = vmax.f32 %v1556, 0.0
      %v1560 = vld [vmem:[%s767] sm:$0xff]
      %v1561 = vld [vmem:[%s767 + $0x8] sm:$0xff]
      %v1562 = vld [vmem:[%s767 + $0x10] sm:$0xff]
      %v1563 = vld [vmem:[%s767 + $0x18] sm:$0xff]
      %v1564 = vld [vmem:[%s767 + $0x20] sm:$0xff]
      %v1565 = vld [vmem:[%s767 + $0x28] sm:$0xff]
      %v1566 = vld [vmem:[%s767 + $0x30] sm:$0xff]
      %v1567 = vld [vmem:[%s767 + $0x38] sm:$0xff]
      %v1568 = vld [vmem:[%s771] sm:$0x1]
      %v1570 = vperm.slane %v1568, 0
      %vm1572 = vcmask 523264
      %v1574 = vsel %vm1572, %v1558, 0
      %v1577 = vsel %vm1572, %v1559, 0
      %1579 = vmatpush.msra.mxu0 0.0
      %1580 = vmatpush.msra.mxu0 0.0
      %1581 = vmatpush.msra.mxu0 0.0
      %1582 = vmatpush.msra.mxu0 0.0
      %1583 = vmatpush.msra.mxu0 0.0
      %1584 = vmatpush.msra.mxu0 0.0
      %1585 = vmatpush.msra.mxu0 0.0
      %1586 = vmatpush.msra.mxu0 0.0
      %1587 = vmatpush.msra.mxu0 %v1567
      %1588 = vmatpush.msra.mxu0 %v1566
      %1589 = vmatpush.msra.mxu0 %v1565
      %1590 = vmatpush.msra.mxu0 %v1564
      %1591 = vmatpush.msra.mxu0 %v1563
      %1592 = vmatpush.msra.mxu0 %v1562
      %1593 = vmatpush.msra.mxu0 %v1561
      %1594 = vmatpush.msra.mxu0 %v1560
      %1595 = vmatmul.f32.gmra.mxu0 %v1574
      %v1596 = vpop.f32.mrf.mxu0
      %v1597 = vadd.f32 %v1570, %v1596
      %1598 = vmatmul.f32.gmra.mxu0 %v1577
      %v1599 = vpop.f32.mrf.mxu0
      %v1600 = vadd.f32 %v1570, %v1599
      %1601 = vdwg.mxu0
      %v1602 = vadd.f32 %v1519, %v1597
      %v1603 = vadd.f32 %v1520, %v1600
      %v1604 = vld [vmem:[%s775] sm:$0x1]
      %v1605 = vld [vmem:[%s779] sm:$0x1]
      %v1606 = vsel %vm838, %v1602, 0.0
      %1607 = vadd.xlane.f32.xlu0 %v1606
      %v1608 = vpop.xlane.xlu0 %1607
      %v1609 = vsel %vm838, %v1603, 0.0
      %1610 = vadd.xlane.f32.xlu0 %v1609
      %v1611 = vpop.xlane.xlu0 %1610
      %v1612 = vmul.f32 %v1608, %v1472
      %v1613 = vmul.f32 %v1611, %v1472
      %v1614 = vsub.f32 %v1602, %v1612
      %v1615 = vsub.f32 %v1603, %v1613
      %v1616 = vmul.f32 %v1614, %v1614
      %v1617 = vmul.f32 %v1615, %v1615
      %v1618 = vsel %vm838, %v1616, 0.0
      %1619 = vadd.xlane.f32.xlu0 %v1618
      %v1620 = vpop.xlane.xlu0 %1619
      %v1621 = vsel %vm838, %v1617, 0.0
      %1622 = vadd.xlane.f32.xlu0 %v1621
      %v1623 = vpop.xlane.xlu0 %1622
      %v1624 = vmul.f32 %v1620, %v1472
      %v1625 = vmul.f32 %v1623, %v1472
      %v1626 = vadd.f32 %v1624, 1e-05
      %v1627 = vadd.f32 %v1625, 1e-05
      %v1628 = vrsqrt.pop %v1626
      %v1629 = vmul.f32 %v1628, %v1626
      %v1630 = vmul.f32 %v1629, %v1628
      %v1631 = vmul.f32 0.5, %v1630
      %v1632 = vsub.f32 1.5, %v1631
      %v1633 = vmul.f32 %v1628, %v1632
      %vm1634 = vweird.f32 %v1626
      %vm1635 = vweird.f32 %v1628
      %vm1636 = vmor %vm1634, %vm1635
      %v1637 = vsel %vm1636, %v1628, %v1633
      %v1638 = vrsqrt.pop %v1627
      %v1639 = vmul.f32 %v1638, %v1627
      %v1640 = vmul.f32 %v1639, %v1638
      %v1641 = vmul.f32 0.5, %v1640
      %v1642 = vsub.f32 1.5, %v1641
      %v1643 = vmul.f32 %v1638, %v1642
      %vm1644 = vweird.f32 %v1627
      %vm1645 = vweird.f32 %v1638
      %vm1646 = vmor %vm1644, %vm1645
      %v1647 = vsel %vm1646, %v1638, %v1643
      %v1648 = vmul.f32 %v1614, %v1637
      %v1649 = vmul.f32 %v1615, %v1647
      %v1651 = vperm.slane %v1604, 0
      %v1653 = vmul.f32 %v1648, %v1651
      %v1654 = vmul.f32 %v1649, %v1651
      %v1656 = vperm.slane %v1605, 0
      %v1658 = vadd.f32 %v1653, %v1656
      %v1659 = vadd.f32 %v1654, %v1656
      %s1660 = scalar_lea.vmem %s732, 32
      %v1661 = vld [vmem:[%s1660] sm:$0xff]
      %v1662 = vld [vmem:[%s1660 + $0x8] sm:$0xff]
      %v1663 = vld [vmem:[%s1660 + $0x10] sm:$0xff]
      %v1664 = vld [vmem:[%s1660 + $0x18] sm:$0xff]
      %s1665 = scalar_lea.vmem %s736, 1
      %v1666 = vld [vmem:[%s1665] sm:$0x1]
      %v1668 = vperm.slane %v1666, 0
      %v1671 = vsel %vm838, %v1658, 0
      %v1674 = vsel %vm838, %v1659, 0
      %1676 = vmatpush.msra.mxu0 0.0
      %1677 = vmatpush.msra.mxu0 0.0
      %1678 = vmatpush.msra.mxu0 0.0
      %1679 = vmatpush.msra.mxu0 0.0
      %1680 = vmatpush.msra.mxu0 0.0
      %1681 = vmatpush.msra.mxu0 0.0
      %1682 = vmatpush.msra.mxu0 0.0
      %1683 = vmatpush.msra.mxu0 0.0
      %1684 = vmatpush.msra.mxu0 0.0
      %1685 = vmatpush.msra.mxu0 0.0
      %1686 = vmatpush.msra.mxu0 0.0
      %1687 = vmatpush.msra.mxu0 0.0
      %1688 = vmatpush.msra.mxu0 %v1664
      %1689 = vmatpush.msra.mxu0 %v1663
      %1690 = vmatpush.msra.mxu0 %v1662
      %1691 = vmatpush.msra.mxu0 %v1661
      %1692 = vmatmul.f32.gmra.mxu0 %v1671
      %v1693 = vpop.f32.mrf.mxu0
      %v1694 = vadd.f32 %v1668, %v1693
      %1695 = vmatmul.f32.gmra.mxu0 %v1674
      %v1696 = vpop.f32.mrf.mxu0
      %v1697 = vadd.f32 %v1668, %v1696
      %1698 = vdwg.mxu0
      %v1699 = vmul.f32 %v1694, %v869
      %v1700 = vmul.f32 %v1697, %v869
      %1702 = vrot.lane.b32.xlu0 %v1694, 96
      %v1703 = vpop.permute.xlu0 %1702
      %v1705 = vsel %vm838, %v1699, 0
      %v1707 = vsel %vm838, %v1703, 0
      %1709 = vmatpush.xpose.msra.mxu0 0.0
      %1710 = vmatpush.xpose.msra.mxu0 0.0
      %1711 = vmatpush.xpose.msra.mxu0 0.0
      %1712 = vmatpush.xpose.msra.mxu0 0.0
      %1713 = vmatpush.xpose.msra.mxu0 0.0
      %1714 = vmatpush.xpose.msra.mxu0 0.0
      %1715 = vmatpush.xpose.msra.mxu0 0.0
      %1716 = vmatpush.xpose.msra.mxu0 0.0
      %1717 = vmatpush.xpose.msra.mxu0 0.0
      %1718 = vmatpush.xpose.msra.mxu0 0.0
      %1719 = vmatpush.xpose.msra.mxu0 0.0
      %1720 = vmatpush.xpose.msra.mxu0 0.0
      %1721 = vmatpush.xpose.msra.mxu0 0.0
      %1722 = vmatpush.xpose.msra.mxu0 0.0
      %1723 = vmatpush.xpose.msra.mxu0 0.0
      %1724 = vmatpush.xpose.msra.mxu0 %v1707
      %1725 = vmatmul.f32.gmra.mxu0 %v1705
      %v1726 = vpop.f32.mrf.mxu0
      %v1727 = vadd.f32 0.0, %v1726
      %1728 = vdwg.mxu0
      %1730 = vrot.lane.b32.xlu0 %v1697, 96
      %v1731 = vpop.permute.xlu0 %1730
      %v1733 = vsel %vm838, %v1700, 0
      %v1735 = vsel %vm838, %v1731, 0
      %1737 = vmatpush.xpose.msra.mxu0 0.0
      %1738 = vmatpush.xpose.msra.mxu0 0.0
      %1739 = vmatpush.xpose.msra.mxu0 0.0
      %1740 = vmatpush.xpose.msra.mxu0 0.0
      %1741 = vmatpush.xpose.msra.mxu0 0.0
      %1742 = vmatpush.xpose.msra.mxu0 0.0
      %1743 = vmatpush.xpose.msra.mxu0 0.0
      %1744 = vmatpush.xpose.msra.mxu0 0.0
      %1745 = vmatpush.xpose.msra.mxu0 0.0
      %1746 = vmatpush.xpose.msra.mxu0 0.0
      %1747 = vmatpush.xpose.msra.mxu0 0.0
      %1748 = vmatpush.xpose.msra.mxu0 0.0
      %1749 = vmatpush.xpose.msra.mxu0 0.0
      %1750 = vmatpush.xpose.msra.mxu0 0.0
      %1751 = vmatpush.xpose.msra.mxu0 0.0
      %1752 = vmatpush.xpose.msra.mxu0 %v1735
      %1753 = vmatmul.f32.gmra.mxu0 %v1733
      %v1754 = vpop.f32.mrf.mxu0
      %v1755 = vadd.f32 0.0, %v1754
      %1756 = vdwg.mxu0
      %v1757 = vmul.f32 %v1727, 0.35355338
      %v1758 = vmul.f32 %v1755, 0.35355338
      %v1759 = vsel %vm931, %v1757, -inf
      %1760 = vmax.xlane.f32.xlu0 %v1759
      %v1761 = vpop.xlane.xlu0 %1760
      %v1762 = vsel %vm931, %v1758, -inf
      %1763 = vmax.xlane.f32.xlu0 %v1762
      %v1764 = vpop.xlane.xlu0 %1763
      %v1765 = vsub.f32 %v1757, %v1761
      %v1766 = vsub.f32 %v1758, %v1764
      %v1767 = vmul.f32 %v1765, 1.442695
      %v1768 = vpow.pop %v1767
      %v1769 = vmul.f32 %v1766, 1.442695
      %v1770 = vpow.pop %v1769
      %v1771 = vsel %vm931, %v1768, 0.0
      %1772 = vadd.xlane.f32.xlu0 %v1771
      %v1773 = vpop.xlane.xlu0 %1772
      %v1774 = vsel %vm931, %v1770, 0.0
      %1775 = vadd.xlane.f32.xlu0 %v1774
      %v1776 = vpop.xlane.xlu0 %1775
      %v1777 = vrcp.pop %v1773
      %v1778 = vrcp.pop %v1776
      %v1779 = vmul.f32 %v1768, %v1777
      %v1780 = vmul.f32 %v1770, %v1778
      %v1781 = vmul.f32 %v1694, %v955
      %v1782 = vmul.f32 %v1697, %v955
      %v1783 = vmul.f32 %v1694, %v960
      %v1784 = vmul.f32 %v1697, %v960
      %v1786 = vsel %vm838, %v1783, 0
      %1788 = vmatpush.xpose.msra.mxu0 0.0
      %1789 = vmatpush.xpose.msra.mxu0 0.0
      %1790 = vmatpush.xpose.msra.mxu0 0.0
      %1791 = vmatpush.xpose.msra.mxu0 0.0
      %1792 = vmatpush.xpose.msra.mxu0 0.0
      %1793 = vmatpush.xpose.msra.mxu0 0.0
      %1794 = vmatpush.xpose.msra.mxu0 0.0
      %1795 = vmatpush.xpose.msra.mxu0 0.0
      %1796 = vmatpush.xpose.msra.mxu0 0.0
      %1797 = vmatpush.xpose.msra.mxu0 0.0
      %1798 = vmatpush.xpose.msra.mxu0 0.0
      %1799 = vmatpush.xpose.msra.mxu0 0.0
      %1800 = vmatpush.xpose.msra.mxu0 0.0
      %1801 = vmatpush.xpose.msra.mxu0 0.0
      %1802 = vmatpush.xpose.msra.mxu0 0.0
      %1803 = vmatpush.xpose.msra.mxu0 %v1707
      %1804 = vmatmul.f32.gmra.mxu0 %v1786
      %v1805 = vpop.f32.mrf.mxu0
      %v1806 = vadd.f32 0.0, %v1805
      %1807 = vdwg.mxu0
      %v1809 = vsel %vm838, %v1784, 0
      %1811 = vmatpush.xpose.msra.mxu0 0.0
      %1812 = vmatpush.xpose.msra.mxu0 0.0
      %1813 = vmatpush.xpose.msra.mxu0 0.0
      %1814 = vmatpush.xpose.msra.mxu0 0.0
      %1815 = vmatpush.xpose.msra.mxu0 0.0
      %1816 = vmatpush.xpose.msra.mxu0 0.0
      %1817 = vmatpush.xpose.msra.mxu0 0.0
      %1818 = vmatpush.xpose.msra.mxu0 0.0
      %1819 = vmatpush.xpose.msra.mxu0 0.0
      %1820 = vmatpush.xpose.msra.mxu0 0.0
      %1821 = vmatpush.xpose.msra.mxu0 0.0
      %1822 = vmatpush.xpose.msra.mxu0 0.0
      %1823 = vmatpush.xpose.msra.mxu0 0.0
      %1824 = vmatpush.xpose.msra.mxu0 0.0
      %1825 = vmatpush.xpose.msra.mxu0 0.0
      %1826 = vmatpush.xpose.msra.mxu0 %v1735
      %1827 = vmatmul.f32.gmra.mxu0 %v1809
      %v1828 = vpop.f32.mrf.mxu0
      %v1829 = vadd.f32 0.0, %v1828
      %1830 = vdwg.mxu0
      %v1831 = vmul.f32 %v1806, 0.35355338
      %v1832 = vmul.f32 %v1829, 0.35355338
      %v1833 = vsel %vm931, %v1831, -inf
      %1834 = vmax.xlane.f32.xlu0 %v1833
      %v1835 = vpop.xlane.xlu0 %1834
      %v1836 = vsel %vm931, %v1832, -inf
      %1837 = vmax.xlane.f32.xlu0 %v1836
      %v1838 = vpop.xlane.xlu0 %1837
      %v1839 = vsub.f32 %v1831, %v1835
      %v1840 = vsub.f32 %v1832, %v1838
      %v1841 = vmul.f32 %v1839, 1.442695
      %v1842 = vpow.pop %v1841
      %v1843 = vmul.f32 %v1840, 1.442695
      %v1844 = vpow.pop %v1843
      %v1845 = vsel %vm931, %v1842, 0.0
      %1846 = vadd.xlane.f32.xlu0 %v1845
      %v1847 = vpop.xlane.xlu0 %1846
      %v1848 = vsel %vm931, %v1844, 0.0
      %1849 = vadd.xlane.f32.xlu0 %v1848
      %v1850 = vpop.xlane.xlu0 %1849
      %v1851 = vrcp.pop %v1847
      %v1852 = vrcp.pop %v1850
      %v1853 = vmul.f32 %v1842, %v1851
      %v1854 = vmul.f32 %v1844, %v1852
      %v1855 = vmul.f32 %v1694, %v1035
      %v1856 = vmul.f32 %v1697, %v1035
      %1858 = vrot.lane.b32.xlu0 %v1855, 64
      %v1859 = vpop.permute.xlu0 %1858
      %v1862 = vsel %vm931, %v1853, 0
      %1864 = vmatpush.msra.mxu0 0.0
      %1865 = vmatpush.msra.mxu0 0.0
      %1866 = vmatpush.msra.mxu0 0.0
      %1867 = vmatpush.msra.mxu0 0.0
      %1868 = vmatpush.msra.mxu0 0.0
      %1869 = vmatpush.msra.mxu0 0.0
      %1870 = vmatpush.msra.mxu0 0.0
      %1871 = vmatpush.msra.mxu0 0.0
      %1872 = vmatpush.msra.mxu0 0.0
      %1873 = vmatpush.msra.mxu0 0.0
      %1874 = vmatpush.msra.mxu0 0.0
      %1875 = vmatpush.msra.mxu0 0.0
      %1876 = vmatpush.msra.mxu0 0.0
      %1877 = vmatpush.msra.mxu0 0.0
      %1878 = vmatpush.msra.mxu0 0.0
      %1879 = vmatpush.msra.mxu0 %v1859
      %1880 = vmatmul.f32.gmra.mxu0 %v1862
      %v1881 = vpop.f32.mrf.mxu0
      %v1882 = vadd.f32 0.0, %v1881
      %1883 = vdwg.mxu0
      %1885 = vrot.lane.b32.xlu0 %v1856, 64
      %v1886 = vpop.permute.xlu0 %1885
      %v1889 = vsel %vm931, %v1854, 0
      %1891 = vmatpush.msra.mxu0 0.0
      %1892 = vmatpush.msra.mxu0 0.0
      %1893 = vmatpush.msra.mxu0 0.0
      %1894 = vmatpush.msra.mxu0 0.0
      %1895 = vmatpush.msra.mxu0 0.0
      %1896 = vmatpush.msra.mxu0 0.0
      %1897 = vmatpush.msra.mxu0 0.0
      %1898 = vmatpush.msra.mxu0 0.0
      %1899 = vmatpush.msra.mxu0 0.0
      %1900 = vmatpush.msra.mxu0 0.0
      %1901 = vmatpush.msra.mxu0 0.0
      %1902 = vmatpush.msra.mxu0 0.0
      %1903 = vmatpush.msra.mxu0 0.0
      %1904 = vmatpush.msra.mxu0 0.0
      %1905 = vmatpush.msra.mxu0 0.0
      %1906 = vmatpush.msra.mxu0 %v1886
      %1907 = vmatmul.f32.gmra.mxu0 %v1889
      %v1908 = vpop.f32.mrf.mxu0
      %v1909 = vadd.f32 0.0, %v1908
      %1910 = vdwg.mxu0
      %1912 = vrot.lane.b32.xlu0 %v1781, 64
      %v1913 = vpop.permute.xlu0 %1912
      %v1916 = vsel %vm931, %v1779, 0
      %1918 = vmatpush.msra.mxu0 0.0
      %1919 = vmatpush.msra.mxu0 0.0
      %1920 = vmatpush.msra.mxu0 0.0
      %1921 = vmatpush.msra.mxu0 0.0
      %1922 = vmatpush.msra.mxu0 0.0
      %1923 = vmatpush.msra.mxu0 0.0
      %1924 = vmatpush.msra.mxu0 0.0
      %1925 = vmatpush.msra.mxu0 0.0
      %1926 = vmatpush.msra.mxu0 0.0
      %1927 = vmatpush.msra.mxu0 0.0
      %1928 = vmatpush.msra.mxu0 0.0
      %1929 = vmatpush.msra.mxu0 0.0
      %1930 = vmatpush.msra.mxu0 0.0
      %1931 = vmatpush.msra.mxu0 0.0
      %1932 = vmatpush.msra.mxu0 0.0
      %1933 = vmatpush.msra.mxu0 %v1913
      %1934 = vmatmul.f32.gmra.mxu0 %v1916
      %v1935 = vpop.f32.mrf.mxu0
      %v1936 = vadd.f32 %v1882, %v1935
      %1937 = vdwg.mxu0
      %1939 = vrot.lane.b32.xlu0 %v1782, 64
      %v1940 = vpop.permute.xlu0 %1939
      %v1943 = vsel %vm931, %v1780, 0
      %1945 = vmatpush.msra.mxu0 0.0
      %1946 = vmatpush.msra.mxu0 0.0
      %1947 = vmatpush.msra.mxu0 0.0
      %1948 = vmatpush.msra.mxu0 0.0
      %1949 = vmatpush.msra.mxu0 0.0
      %1950 = vmatpush.msra.mxu0 0.0
      %1951 = vmatpush.msra.mxu0 0.0
      %1952 = vmatpush.msra.mxu0 0.0
      %1953 = vmatpush.msra.mxu0 0.0
      %1954 = vmatpush.msra.mxu0 0.0
      %1955 = vmatpush.msra.mxu0 0.0
      %1956 = vmatpush.msra.mxu0 0.0
      %1957 = vmatpush.msra.mxu0 0.0
      %1958 = vmatpush.msra.mxu0 0.0
      %1959 = vmatpush.msra.mxu0 0.0
      %1960 = vmatpush.msra.mxu0 %v1940
      %1961 = vmatmul.f32.gmra.mxu0 %v1943
      %v1962 = vpop.f32.mrf.mxu0
      %v1963 = vadd.f32 %v1909, %v1962
      %1964 = vdwg.mxu0
      %v1965 = vmul.f32 %v1694, %v1148
      %v1966 = vmul.f32 %v1697, %v1148
      %v1968 = vsel %vm838, %v1965, 0
      %1970 = vmatpush.xpose.msra.mxu0 0.0
      %1971 = vmatpush.xpose.msra.mxu0 0.0
      %1972 = vmatpush.xpose.msra.mxu0 0.0
      %1973 = vmatpush.xpose.msra.mxu0 0.0
      %1974 = vmatpush.xpose.msra.mxu0 0.0
      %1975 = vmatpush.xpose.msra.mxu0 0.0
      %1976 = vmatpush.xpose.msra.mxu0 0.0
      %1977 = vmatpush.xpose.msra.mxu0 0.0
      %1978 = vmatpush.xpose.msra.mxu0 0.0
      %1979 = vmatpush.xpose.msra.mxu0 0.0
      %1980 = vmatpush.xpose.msra.mxu0 0.0
      %1981 = vmatpush.xpose.msra.mxu0 0.0
      %1982 = vmatpush.xpose.msra.mxu0 0.0
      %1983 = vmatpush.xpose.msra.mxu0 0.0
      %1984 = vmatpush.xpose.msra.mxu0 0.0
      %1985 = vmatpush.xpose.msra.mxu0 %v1707
      %1986 = vmatmul.f32.gmra.mxu0 %v1968
      %v1987 = vpop.f32.mrf.mxu0
      %v1988 = vadd.f32 0.0, %v1987
      %1989 = vdwg.mxu0
      %v1991 = vsel %vm838, %v1966, 0
      %1993 = vmatpush.xpose.msra.mxu0 0.0
      %1994 = vmatpush.xpose.msra.mxu0 0.0
      %1995 = vmatpush.xpose.msra.mxu0 0.0
      %1996 = vmatpush.xpose.msra.mxu0 0.0
      %1997 = vmatpush.xpose.msra.mxu0 0.0
      %1998 = vmatpush.xpose.msra.mxu0 0.0
      %1999 = vmatpush.xpose.msra.mxu0 0.0
      %2000 = vmatpush.xpose.msra.mxu0 0.0
      %2001 = vmatpush.xpose.msra.mxu0 0.0
      %2002 = vmatpush.xpose.msra.mxu0 0.0
      %2003 = vmatpush.xpose.msra.mxu0 0.0
      %2004 = vmatpush.xpose.msra.mxu0 0.0
      %2005 = vmatpush.xpose.msra.mxu0 0.0
      %2006 = vmatpush.xpose.msra.mxu0 0.0
      %2007 = vmatpush.xpose.msra.mxu0 0.0
      %2008 = vmatpush.xpose.msra.mxu0 %v1735
      %2009 = vmatmul.f32.gmra.mxu0 %v1991
      %v2010 = vpop.f32.mrf.mxu0
      %v2011 = vadd.f32 0.0, %v2010
      %2012 = vdwg.mxu0
      %v2013 = vmul.f32 %v1988, 0.35355338
      %v2014 = vmul.f32 %v2011, 0.35355338
      %v2015 = vsel %vm931, %v2013, -inf
      %2016 = vmax.xlane.f32.xlu0 %v2015
      %v2017 = vpop.xlane.xlu0 %2016
      %v2018 = vsel %vm931, %v2014, -inf
      %2019 = vmax.xlane.f32.xlu0 %v2018
      %v2020 = vpop.xlane.xlu0 %2019
      %v2021 = vsub.f32 %v2013, %v2017
      %v2022 = vsub.f32 %v2014, %v2020
      %v2023 = vmul.f32 %v2021, 1.442695
      %v2024 = vpow.pop %v2023
      %v2025 = vmul.f32 %v2022, 1.442695
      %v2026 = vpow.pop %v2025
      %v2027 = vsel %vm931, %v2024, 0.0
      %2028 = vadd.xlane.f32.xlu0 %v2027
      %v2029 = vpop.xlane.xlu0 %2028
      %v2030 = vsel %vm931, %v2026, 0.0
      %2031 = vadd.xlane.f32.xlu0 %v2030
      %v2032 = vpop.xlane.xlu0 %2031
      %v2033 = vrcp.pop %v2029
      %v2034 = vrcp.pop %v2032
      %v2035 = vmul.f32 %v2024, %v2033
      %v2036 = vmul.f32 %v2026, %v2034
      %v2037 = vmul.f32 %v1694, %v1223
      %v2038 = vmul.f32 %v1697, %v1223
      %2040 = vrot.lane.b32.xlu0 %v2037, 64
      %v2041 = vpop.permute.xlu0 %2040
      %v2044 = vsel %vm931, %v2035, 0
      %2046 = vmatpush.msra.mxu0 0.0
      %2047 = vmatpush.msra.mxu0 0.0
      %2048 = vmatpush.msra.mxu0 0.0
      %2049 = vmatpush.msra.mxu0 0.0
      %2050 = vmatpush.msra.mxu0 0.0
      %2051 = vmatpush.msra.mxu0 0.0
      %2052 = vmatpush.msra.mxu0 0.0
      %2053 = vmatpush.msra.mxu0 0.0
      %2054 = vmatpush.msra.mxu0 0.0
      %2055 = vmatpush.msra.mxu0 0.0
      %2056 = vmatpush.msra.mxu0 0.0
      %2057 = vmatpush.msra.mxu0 0.0
      %2058 = vmatpush.msra.mxu0 0.0
      %2059 = vmatpush.msra.mxu0 0.0
      %2060 = vmatpush.msra.mxu0 0.0
      %2061 = vmatpush.msra.mxu0 %v2041
      %2062 = vmatmul.f32.gmra.mxu0 %v2044
      %v2063 = vpop.f32.mrf.mxu0
      %v2064 = vadd.f32 0.0, %v2063
      %2065 = vdwg.mxu0
      %2067 = vrot.lane.b32.xlu0 %v2038, 64
      %v2068 = vpop.permute.xlu0 %2067
      %v2071 = vsel %vm931, %v2036, 0
      %2073 = vmatpush.msra.mxu0 0.0
      %2074 = vmatpush.msra.mxu0 0.0
      %2075 = vmatpush.msra.mxu0 0.0
      %2076 = vmatpush.msra.mxu0 0.0
      %2077 = vmatpush.msra.mxu0 0.0
      %2078 = vmatpush.msra.mxu0 0.0
      %2079 = vmatpush.msra.mxu0 0.0
      %2080 = vmatpush.msra.mxu0 0.0
      %2081 = vmatpush.msra.mxu0 0.0
      %2082 = vmatpush.msra.mxu0 0.0
      %2083 = vmatpush.msra.mxu0 0.0
      %2084 = vmatpush.msra.mxu0 0.0
      %2085 = vmatpush.msra.mxu0 0.0
      %2086 = vmatpush.msra.mxu0 0.0
      %2087 = vmatpush.msra.mxu0 0.0
      %2088 = vmatpush.msra.mxu0 %v2068
      %2089 = vmatmul.f32.gmra.mxu0 %v2071
      %v2090 = vpop.f32.mrf.mxu0
      %v2091 = vadd.f32 0.0, %v2090
      %2092 = vdwg.mxu0
      %v2093 = vadd.f32 %v1936, %v2064
      %v2094 = vadd.f32 %v1963, %v2091
      %v2095 = vmul.f32 %v1694, %v1284
      %v2096 = vmul.f32 %v1697, %v1284
      %v2098 = vsel %vm838, %v2095, 0
      %2100 = vmatpush.xpose.msra.mxu0 0.0
      %2101 = vmatpush.xpose.msra.mxu0 0.0
      %2102 = vmatpush.xpose.msra.mxu0 0.0
      %2103 = vmatpush.xpose.msra.mxu0 0.0
      %2104 = vmatpush.xpose.msra.mxu0 0.0
      %2105 = vmatpush.xpose.msra.mxu0 0.0
      %2106 = vmatpush.xpose.msra.mxu0 0.0
      %2107 = vmatpush.xpose.msra.mxu0 0.0
      %2108 = vmatpush.xpose.msra.mxu0 0.0
      %2109 = vmatpush.xpose.msra.mxu0 0.0
      %2110 = vmatpush.xpose.msra.mxu0 0.0
      %2111 = vmatpush.xpose.msra.mxu0 0.0
      %2112 = vmatpush.xpose.msra.mxu0 0.0
      %2113 = vmatpush.xpose.msra.mxu0 0.0
      %2114 = vmatpush.xpose.msra.mxu0 0.0
      %2115 = vmatpush.xpose.msra.mxu0 %v1707
      %2116 = vmatmul.f32.gmra.mxu0 %v2098
      %v2117 = vpop.f32.mrf.mxu0
      %v2118 = vadd.f32 0.0, %v2117
      %2119 = vdwg.mxu0
      %v2121 = vsel %vm838, %v2096, 0
      %2123 = vmatpush.xpose.msra.mxu0 0.0
      %2124 = vmatpush.xpose.msra.mxu0 0.0
      %2125 = vmatpush.xpose.msra.mxu0 0.0
      %2126 = vmatpush.xpose.msra.mxu0 0.0
      %2127 = vmatpush.xpose.msra.mxu0 0.0
      %2128 = vmatpush.xpose.msra.mxu0 0.0
      %2129 = vmatpush.xpose.msra.mxu0 0.0
      %2130 = vmatpush.xpose.msra.mxu0 0.0
      %2131 = vmatpush.xpose.msra.mxu0 0.0
      %2132 = vmatpush.xpose.msra.mxu0 0.0
      %2133 = vmatpush.xpose.msra.mxu0 0.0
      %2134 = vmatpush.xpose.msra.mxu0 0.0
      %2135 = vmatpush.xpose.msra.mxu0 0.0
      %2136 = vmatpush.xpose.msra.mxu0 0.0
      %2137 = vmatpush.xpose.msra.mxu0 0.0
      %2138 = vmatpush.xpose.msra.mxu0 %v1735
      %2139 = vmatmul.f32.gmra.mxu0 %v2121
      %v2140 = vpop.f32.mrf.mxu0
      %v2141 = vadd.f32 0.0, %v2140
      %2142 = vdwg.mxu0
      %v2143 = vmul.f32 %v2118, 0.35355338
      %v2144 = vmul.f32 %v2141, 0.35355338
      %v2145 = vsel %vm931, %v2143, -inf
      %2146 = vmax.xlane.f32.xlu0 %v2145
      %v2147 = vpop.xlane.xlu0 %2146
      %v2148 = vsel %vm931, %v2144, -inf
      %2149 = vmax.xlane.f32.xlu0 %v2148
      %v2150 = vpop.xlane.xlu0 %2149
      %v2151 = vsub.f32 %v2143, %v2147
      %v2152 = vsub.f32 %v2144, %v2150
      %v2153 = vmul.f32 %v2151, 1.442695
      %v2154 = vpow.pop %v2153
      %v2155 = vmul.f32 %v2152, 1.442695
      %v2156 = vpow.pop %v2155
      %v2157 = vsel %vm931, %v2154, 0.0
      %2158 = vadd.xlane.f32.xlu0 %v2157
      %v2159 = vpop.xlane.xlu0 %2158
      %v2160 = vsel %vm931, %v2156, 0.0
      %2161 = vadd.xlane.f32.xlu0 %v2160
      %v2162 = vpop.xlane.xlu0 %2161
      %v2163 = vrcp.pop %v2159
      %v2164 = vrcp.pop %v2162
      %v2165 = vmul.f32 %v2154, %v2163
      %v2166 = vmul.f32 %v2156, %v2164
      %v2167 = vmul.f32 %v1694, %v1359
      %v2168 = vmul.f32 %v1697, %v1359
      %2170 = vrot.lane.b32.xlu0 %v2167, 64
      %v2171 = vpop.permute.xlu0 %2170
      %v2174 = vsel %vm931, %v2165, 0
      %2176 = vmatpush.msra.mxu0 0.0
      %2177 = vmatpush.msra.mxu0 0.0
      %2178 = vmatpush.msra.mxu0 0.0
      %2179 = vmatpush.msra.mxu0 0.0
      %2180 = vmatpush.msra.mxu0 0.0
      %2181 = vmatpush.msra.mxu0 0.0
      %2182 = vmatpush.msra.mxu0 0.0
      %2183 = vmatpush.msra.mxu0 0.0
      %2184 = vmatpush.msra.mxu0 0.0
      %2185 = vmatpush.msra.mxu0 0.0
      %2186 = vmatpush.msra.mxu0 0.0
      %2187 = vmatpush.msra.mxu0 0.0
      %2188 = vmatpush.msra.mxu0 0.0
      %2189 = vmatpush.msra.mxu0 0.0
      %2190 = vmatpush.msra.mxu0 0.0
      %2191 = vmatpush.msra.mxu0 %v2171
      %2192 = vmatmul.f32.gmra.mxu0 %v2174
      %v2193 = vpop.f32.mrf.mxu0
      %v2194 = vadd.f32 0.0, %v2193
      %2195 = vdwg.mxu0
      %2197 = vrot.lane.b32.xlu0 %v2168, 64
      %v2198 = vpop.permute.xlu0 %2197
      %v2201 = vsel %vm931, %v2166, 0
      %2203 = vmatpush.msra.mxu0 0.0
      %2204 = vmatpush.msra.mxu0 0.0
      %2205 = vmatpush.msra.mxu0 0.0
      %2206 = vmatpush.msra.mxu0 0.0
      %2207 = vmatpush.msra.mxu0 0.0
      %2208 = vmatpush.msra.mxu0 0.0
      %2209 = vmatpush.msra.mxu0 0.0
      %2210 = vmatpush.msra.mxu0 0.0
      %2211 = vmatpush.msra.mxu0 0.0
      %2212 = vmatpush.msra.mxu0 0.0
      %2213 = vmatpush.msra.mxu0 0.0
      %2214 = vmatpush.msra.mxu0 0.0
      %2215 = vmatpush.msra.mxu0 0.0
      %2216 = vmatpush.msra.mxu0 0.0
      %2217 = vmatpush.msra.mxu0 0.0
      %2218 = vmatpush.msra.mxu0 %v2198
      %2219 = vmatmul.f32.gmra.mxu0 %v2201
      %v2220 = vpop.f32.mrf.mxu0
      %v2221 = vadd.f32 0.0, %v2220
      %2222 = vdwg.mxu0
      %v2223 = vadd.f32 %v2093, %v2194
      %v2224 = vadd.f32 %v2094, %v2221
      %s2225 = scalar_lea.vmem %s741, 32
      %v2226 = vld [vmem:[%s2225] sm:$0xff]
      %v2227 = vld [vmem:[%s2225 + $0x8] sm:$0xff]
      %v2228 = vld [vmem:[%s2225 + $0x10] sm:$0xff]
      %v2229 = vld [vmem:[%s2225 + $0x18] sm:$0xff]
      %s2230 = scalar_lea.vmem %s745, 1
      %v2231 = vld [vmem:[%s2230] sm:$0x1]
      %v2233 = vperm.slane %v2231, 0
      %v2236 = vsel %vm838, %v2223, 0
      %v2239 = vsel %vm838, %v2224, 0
      %2241 = vmatpush.msra.mxu0 0.0
      %2242 = vmatpush.msra.mxu0 0.0
      %2243 = vmatpush.msra.mxu0 0.0
      %2244 = vmatpush.msra.mxu0 0.0
      %2245 = vmatpush.msra.mxu0 0.0
      %2246 = vmatpush.msra.mxu0 0.0
      %2247 = vmatpush.msra.mxu0 0.0
      %2248 = vmatpush.msra.mxu0 0.0
      %2249 = vmatpush.msra.mxu0 0.0
      %2250 = vmatpush.msra.mxu0 0.0
      %2251 = vmatpush.msra.mxu0 0.0
      %2252 = vmatpush.msra.mxu0 0.0
      %2253 = vmatpush.msra.mxu0 %v2229
      %2254 = vmatpush.msra.mxu0 %v2228
      %2255 = vmatpush.msra.mxu0 %v2227
      %2256 = vmatpush.msra.mxu0 %v2226
      %2257 = vmatmul.f32.gmra.mxu0 %v2236
      %v2258 = vpop.f32.mrf.mxu0
      %v2259 = vadd.f32 %v2233, %v2258
      %2260 = vmatmul.f32.gmra.mxu0 %v2239
      %v2261 = vpop.f32.mrf.mxu0
      %v2262 = vadd.f32 %v2233, %v2261
      %2263 = vdwg.mxu0
      %v2264 = vadd.f32 %v1658, %v2259
      %v2265 = vadd.f32 %v1659, %v2262
      %s2266 = scalar_lea.vmem %s749, 1
      %v2267 = vld [vmem:[%s2266] sm:$0x1]
      %s2268 = scalar_lea.vmem %s753, 1
      %v2269 = vld [vmem:[%s2268] sm:$0x1]
      %v2270 = vsel %vm838, %v2264, 0.0
      %2271 = vadd.xlane.f32.xlu0 %v2270
      %v2272 = vpop.xlane.xlu0 %2271
      %v2273 = vsel %vm838, %v2265, 0.0
      %2274 = vadd.xlane.f32.xlu0 %v2273
      %v2275 = vpop.xlane.xlu0 %2274
      %v2276 = vmul.f32 %v2272, %v1472
      %v2277 = vmul.f32 %v2275, %v1472
      %v2278 = vsub.f32 %v2264, %v2276
      %v2279 = vsub.f32 %v2265, %v2277
      %v2280 = vmul.f32 %v2278, %v2278
      %v2281 = vmul.f32 %v2279, %v2279
      %v2282 = vsel %vm838, %v2280, 0.0
      %2283 = vadd.xlane.f32.xlu0 %v2282
      %v2284 = vpop.xlane.xlu0 %2283
      %v2285 = vsel %vm838, %v2281, 0.0
      %2286 = vadd.xlane.f32.xlu0 %v2285
      %v2287 = vpop.xlane.xlu0 %2286
      %v2288 = vmul.f32 %v2284, %v1472
      %v2289 = vmul.f32 %v2287, %v1472
      %v2290 = vadd.f32 %v2288, 1e-05
      %v2291 = vadd.f32 %v2289, 1e-05
      %v2292 = vrsqrt.pop %v2290
      %v2293 = vmul.f32 %v2292, %v2290
      %v2294 = vmul.f32 %v2293, %v2292
      %v2295 = vmul.f32 0.5, %v2294
      %v2296 = vsub.f32 1.5, %v2295
      %v2297 = vmul.f32 %v2292, %v2296
      %vm2298 = vweird.f32 %v2290
      %vm2299 = vweird.f32 %v2292
      %vm2300 = vmor %vm2298, %vm2299
      %v2301 = vsel %vm2300, %v2292, %v2297
      %v2302 = vrsqrt.pop %v2291
      %v2303 = vmul.f32 %v2302, %v2291
      %v2304 = vmul.f32 %v2303, %v2302
      %v2305 = vmul.f32 0.5, %v2304
      %v2306 = vsub.f32 1.5, %v2305
      %v2307 = vmul.f32 %v2302, %v2306
      %vm2308 = vweird.f32 %v2291
      %vm2309 = vweird.f32 %v2302
      %vm2310 = vmor %vm2308, %vm2309
      %v2311 = vsel %vm2310, %v2302, %v2307
      %v2312 = vmul.f32 %v2278, %v2301
      %v2313 = vmul.f32 %v2279, %v2311
      %v2315 = vperm.slane %v2267, 0
      %v2317 = vmul.f32 %v2312, %v2315
      %v2318 = vmul.f32 %v2313, %v2315
      %v2320 = vperm.slane %v2269, 0
      %v2322 = vadd.f32 %v2317, %v2320
      %v2323 = vadd.f32 %v2318, %v2320
      %s2324 = scalar_lea.vmem %s758, 32
      %v2325 = vld [vmem:[%s2324] sm:$0xff]
      %v2326 = vld [vmem:[%s2324 + $0x8] sm:$0xff]
      %v2327 = vld [vmem:[%s2324 + $0x10] sm:$0xff]
      %v2328 = vld [vmem:[%s2324 + $0x18] sm:$0xff]
      %s2329 = scalar_lea.vmem %s762, 1
      %v2330 = vld [vmem:[%s2329] sm:$0x1]
      %v2332 = vperm.slane %v2330, 0
      %v2335 = vsel %vm838, %v2322, 0
      %v2338 = vsel %vm838, %v2323, 0
      %2340 = vmatpush.msra.mxu0 0.0
      %2341 = vmatpush.msra.mxu0 0.0
      %2342 = vmatpush.msra.mxu0 0.0
      %2343 = vmatpush.msra.mxu0 0.0
      %2344 = vmatpush.msra.mxu0 0.0
      %2345 = vmatpush.msra.mxu0 0.0
      %2346 = vmatpush.msra.mxu0 0.0
      %2347 = vmatpush.msra.mxu0 0.0
      %2348 = vmatpush.msra.mxu0 0.0
      %2349 = vmatpush.msra.mxu0 0.0
      %2350 = vmatpush.msra.mxu0 0.0
      %2351 = vmatpush.msra.mxu0 0.0
      %2352 = vmatpush.msra.mxu0 %v2328
      %2353 = vmatpush.msra.mxu0 %v2327
      %2354 = vmatpush.msra.mxu0 %v2326
      %2355 = vmatpush.msra.mxu0 %v2325
      %2356 = vmatmul.f32.gmra.mxu0 %v2335
      %v2357 = vpop.f32.mrf.mxu0
      %v2358 = vadd.f32 %v2332, %v2357
      %2359 = vmatmul.f32.gmra.mxu0 %v2338
      %v2360 = vpop.f32.mrf.mxu0
      %v2361 = vadd.f32 %v2332, %v2360
      %2362 = vdwg.mxu0
      %v2363 = vmax.f32 %v2358, 0.0
      %v2364 = vmax.f32 %v2361, 0.0
      %s2365 = scalar_lea.vmem %s767, 64
      %v2366 = vld [vmem:[%s2365] sm:$0xff]
      %v2367 = vld [vmem:[%s2365 + $0x8] sm:$0xff]
      %v2368 = vld [vmem:[%s2365 + $0x10] sm:$0xff]
      %v2369 = vld [vmem:[%s2365 + $0x18] sm:$0xff]
      %v2370 = vld [vmem:[%s2365 + $0x20] sm:$0xff]
      %v2371 = vld [vmem:[%s2365 + $0x28] sm:$0xff]
      %v2372 = vld [vmem:[%s2365 + $0x30] sm:$0xff]
      %v2373 = vld [vmem:[%s2365 + $0x38] sm:$0xff]
      %s2374 = scalar_lea.vmem %s771, 1
      %v2375 = vld [vmem:[%s2374] sm:$0x1]
      %v2377 = vperm.slane %v2375, 0
      %v2380 = vsel %vm1572, %v2363, 0
      %v2383 = vsel %vm1572, %v2364, 0
      %2385 = vmatpush.msra.mxu0 0.0
      %2386 = vmatpush.msra.mxu0 0.0
      %2387 = vmatpush.msra.mxu0 0.0
      %2388 = vmatpush.msra.mxu0 0.0
      %2389 = vmatpush.msra.mxu0 0.0
      %2390 = vmatpush.msra.mxu0 0.0
      %2391 = vmatpush.msra.mxu0 0.0
      %2392 = vmatpush.msra.mxu0 0.0
      %2393 = vmatpush.msra.mxu0 %v2373
      %2394 = vmatpush.msra.mxu0 %v2372
      %2395 = vmatpush.msra.mxu0 %v2371
      %2396 = vmatpush.msra.mxu0 %v2370
      %2397 = vmatpush.msra.mxu0 %v2369
      %2398 = vmatpush.msra.mxu0 %v2368
      %2399 = vmatpush.msra.mxu0 %v2367
      %2400 = vmatpush.msra.mxu0 %v2366
      %2401 = vmatmul.f32.gmra.mxu0 %v2380
      %v2402 = vpop.f32.mrf.mxu0
      %v2403 = vadd.f32 %v2377, %v2402
      %2404 = vmatmul.f32.gmra.mxu0 %v2383
      %v2405 = vpop.f32.mrf.mxu0
      %v2406 = vadd.f32 %v2377, %v2405
      %2407 = vdwg.mxu0
      %v2408 = vadd.f32 %v2322, %v2403
      %v2409 = vadd.f32 %v2323, %v2406
      %s2410 = scalar_lea.vmem %s775, 1
      %v2411 = vld [vmem:[%s2410] sm:$0x1]
      %s2412 = scalar_lea.vmem %s779, 1
      %v2413 = vld [vmem:[%s2412] sm:$0x1]
      %v2414 = vsel %vm838, %v2408, 0.0
      %2415 = vadd.xlane.f32.xlu0 %v2414
      %v2416 = vpop.xlane.xlu0 %2415
      %v2417 = vsel %vm838, %v2409, 0.0
      %2418 = vadd.xlane.f32.xlu0 %v2417
      %v2419 = vpop.xlane.xlu0 %2418
      %v2420 = vmul.f32 %v2416, %v1472
      %v2421 = vmul.f32 %v2419, %v1472
      %v2422 = vsub.f32 %v2408, %v2420
      %v2423 = vsub.f32 %v2409, %v2421
      %v2424 = vmul.f32 %v2422, %v2422
      %v2425 = vmul.f32 %v2423, %v2423
      %v2426 = vsel %vm838, %v2424, 0.0
      %2427 = vadd.xlane.f32.xlu0 %v2426
      %v2428 = vpop.xlane.xlu0 %2427
      %v2429 = vsel %vm838, %v2425, 0.0
      %2430 = vadd.xlane.f32.xlu0 %v2429
      %v2431 = vpop.xlane.xlu0 %2430
      %v2432 = vmul.f32 %v2428, %v1472
      %v2433 = vmul.f32 %v2431, %v1472
      %v2434 = vadd.f32 %v2432, 1e-05
      %v2435 = vadd.f32 %v2433, 1e-05
      %v2436 = vrsqrt.pop %v2434
      %v2437 = vmul.f32 %v2436, %v2434
      %v2438 = vmul.f32 %v2437, %v2436
      %v2439 = vmul.f32 0.5, %v2438
      %v2440 = vsub.f32 1.5, %v2439
      %v2441 = vmul.f32 %v2436, %v2440
      %vm2442 = vweird.f32 %v2434
      %vm2443 = vweird.f32 %v2436
      %vm2444 = vmor %vm2442, %vm2443
      %v2445 = vsel %vm2444, %v2436, %v2441
      %v2446 = vrsqrt.pop %v2435
      %v2447 = vmul.f32 %v2446, %v2435
      %v2448 = vmul.f32 %v2447, %v2446
      %v2449 = vmul.f32 0.5, %v2448
      %v2450 = vsub.f32 1.5, %v2449
      %v2451 = vmul.f32 %v2446, %v2450
      %vm2452 = vweird.f32 %v2435
      %vm2453 = vweird.f32 %v2446
      %vm2454 = vmor %vm2452, %vm2453
      %v2455 = vsel %vm2454, %v2446, %v2451
      %v2456 = vmul.f32 %v2422, %v2445
      %v2457 = vmul.f32 %v2423, %v2455
      %v2459 = vperm.slane %v2411, 0
      %v2461 = vmul.f32 %v2456, %v2459
      %v2462 = vmul.f32 %v2457, %v2459
      %v2464 = vperm.slane %v2413, 0
      %v2466 = vadd.f32 %v2461, %v2464
      %v2467 = vadd.f32 %v2462, %v2464
      %v2468 = vld [vmem:[%s727] sm:$0xff]
      %v2469 = vld [vmem:[%s727 + $0x8] sm:$0xff]
      %2471 = vset.pattern.permute.xlu0 0
      %2472 = vperm.xlu0 %2471, %v2468
      %v2473 = vpop.permute.xlu0 %2472
      %2476 = vset.pattern.permute.xlu0 0
      %2477 = vperm.xlu0 %2476, %v2469
      %v2478 = vpop.permute.xlu0 %2477
      %v2480 = vmul.f32 %v2466, %v2473
      %v2481 = vmul.f32 %v2467, %v2478
      %2482 = vst.msk [vmem:[%s784] sm:$0xff] %vm838, %v2480
      %2483 = vst.msk [vmem:[%s784 + $0x8] sm:$0xff] %vm838, %v2481
      %p2484 = scmp.lt.s32.totalorder %s28, 1
      %s2485 = scalar_select %p2484, %s28, 1
      %s2486 = smul.addr %s2485, 2
      %s2487 = smul.addr %s2486, 8
      %s2488 = scalar_lea.vmem %s17, %s2487
      // Predicated region
      $region89: #{sees_encoder_forward.1} parent=87 // pred_check
        %p2489 = pneg %p473
      $region90: #{sees_encoder_forward.1} parent=87 // pred_check_branch
        %2491 = sbr.rel (%p2489) target = $region92
      $region91: #{sees_encoder_forward.1} parent=87 // pred_region
        _
      $region92: #{sees_encoder_forward.1} parent=87 // pred_fallthru
        _
    $region88: #{sees_encoder_forward.1} parent=5 // pred_fallthru
      _
    %p2492 = scmp.le.s32.totalorder 2, %s23
    // Predicated region
    $region93: #{sees_encoder_forward.1} parent=5 // pred_check
      %p2493 = pneg %p2492
    $region94: #{sees_encoder_forward.1} parent=5 // pred_check_branch
      %2495 = sbr.rel (%p2493) target = $region96
    $region95: #{sees_encoder_forward.1} parent=5 // pred_region
      %s2496 = ssub.s32 %s23, 2
      // Predicated region
      $region97: #{sees_encoder_forward.1} parent=95 // pred_check
        %p2497 = pneg %p479
      $region98: #{sees_encoder_forward.1} parent=95 // pred_check_branch
        %2499 = sbr.rel (%p2497) target = $region100
      $region99: #{sees_encoder_forward.1} parent=95 // pred_region
        %p2500 = scmp.lt.s32.totalorder %s29, 1
        %s2501 = scalar_select %p2500, %s29, 1
        %s2502 = smul.addr %s2501, 2
        %s2503 = smul.addr %s2502, 8
        %s2504 = scalar_lea.vmem %s17, %s2503
      $region100: #{sees_encoder_forward.1} parent=95 // pred_fallthru
        _
    $region96: #{sees_encoder_forward.1} parent=5 // pred_fallthru
      _
  $region6: #{sees_encoder_forward.1} parent=0 // loop_footer
    %s27 = sadd.s32 1, %s23
  $region7: #{sees_encoder_forward.1} parent=0 // loop_footer_branch
    %22 = sbr.rel target = $region3
  $region8: #{sees_encoder_forward.1} parent=0 // loop_exit
    _

</llo_original>
